<compile_context>
chip_gen: v6e
topology: v6e:2x2x1
jax: 0.10.0
libtpu: 0.0.40
codegen_flags: <defaults>
</compile_context>

<pallas_src>
import jax
import jax.numpy as jnp
from jax import lax
from jax.experimental import pallas as pl
from jax.experimental.pallas import tpu as pltpu


# ---------------------------------------------------------------------------
# 4-phase decomposition of ConvTranspose2d(k=3, stride=2, padding=1, out_pad=1)
#
# out[2i+r, 2j+s] = sum over taps ((dy,dx),(kh,kw)) of x[i+dy, j+dx] @ W[:, :, kh, kw]
# (torch weight layout (in, out, kh, kw); x zero-padded by one row/col at
#  bottom/right so i+1 / j+1 are always valid).
# ---------------------------------------------------------------------------
_PHASE_TAPS = (
    ((0, 0), (((0, 0), (1, 1)),)),
    ((0, 1), (((0, 0), (1, 2)), ((0, 1), (1, 0)))),
    ((1, 0), (((0, 0), (2, 1)), ((1, 0), (0, 1)))),
    ((1, 1), (((0, 0), (2, 2)), ((0, 1), (2, 0)), ((1, 0), (0, 2)), ((1, 1), (0, 0)))),
)


# ---------------------------------------------------------------------------
# Kernel 1: transposed conv (4 phases) + folded BN + ReLU, one image per step.
# ---------------------------------------------------------------------------
def _upconv_phase_kernel(x_ref, w_ref, shift_ref, o_ref):
    # x_ref:     (1, H+1, W+1, Cin)  f32   (one zero row/col at bottom/right)
    # w_ref:     (3, 3, Cin, Cout)   bf16  (torch kh,kw indexing; BN scale folded)
    # shift_ref: (1, Cout)           f32   (conv bias + BN shift, folded)
    # o_ref:     (4, H, W, Cout)     f32   phase-major: row 2*r+s holds parity (r,s)
    H, W, Cout = o_ref.shape[1], o_ref.shape[2], o_ref.shape[3]
    shift = shift_ref[0, :]

    def row(y, carry):
        for (r, s), taps in _PHASE_TAPS:
            acc = jnp.zeros((W, Cout), jnp.float32)
            for (dy, dx), (kh, kw) in taps:
                xs = x_ref[0, y + dy, dx:dx + W, :].astype(jnp.bfloat16)   # (W, Cin)
                acc = acc + jnp.dot(xs, w_ref[kh, kw],
                                    preferred_element_type=jnp.float32)
            o_ref[2 * r + s, y, :, :] = jnp.maximum(acc + shift, 0.0)
        return carry

    lax.fori_loop(0, H, row, 0)


def upconv_phases(x_pad, up_w, up_shift):
    """x_pad: (B, H+1, W+1, Cin) f32 -> phases (B*4, H, W, Cout) f32."""
    B, Hp1, Wp1, Cin = x_pad.shape
    H, W = Hp1 - 1, Wp1 - 1
    Cout = up_w.shape[-1]
    return pl.pallas_call(
        _upconv_phase_kernel,
        out_shape=jax.ShapeDtypeStruct((B * 4, H, W, Cout), jnp.float32),
        grid=(B,),
        in_specs=[
            pl.BlockSpec((1, Hp1, Wp1, Cin), lambda n: (n, 0, 0, 0)),
            pl.BlockSpec((3, 3, Cin, Cout), lambda n: (0, 0, 0, 0)),   # resident
            pl.BlockSpec((1, Cout), lambda n: (0, 0)),                  # resident
        ],
        out_specs=pl.BlockSpec((4, H, W, Cout), lambda n: (n, 0, 0, 0)),
        compiler_params=pltpu.CompilerParams(dimension_semantics=("parallel",)),
    )(x_pad, up_w, up_shift.reshape(1, Cout))


# ---------------------------------------------------------------------------
# Kernel 2: ConvBlock2d = [conv3x3+BN+ReLU] x2, fused, one image per step.
# conv1 consumes the skip connection WITHOUT materializing the channel concat:
# its weight is split into a u-half and a down-half that accumulate together.
# ---------------------------------------------------------------------------
def _convblock_kernel(u_ref, d_ref, w1u_ref, w1d_ref, b1_ref, w2_ref, b2_ref,
                      o_ref, h_ref):
    # u_ref, d_ref: (1, H2+2, W2+2, C) f32  (zero-padded borders)
    # w1u/w1d/w2 :  (3, 3, C, C)       bf16 (BN scale folded)
    # b1/b2      :  (1, C)             f32  (conv bias + BN shift)
    # o_ref      :  (1, H2, W2, C)     f32
    # h_ref      :  (H2+2, W2+2, C)    f32  VMEM scratch (conv1 output, zero border)
    H2, W2, C = o_ref.shape[1], o_ref.shape[2], o_ref.shape[3]
    b1 = b1_ref[0, :]
    b2 = b2_ref[0, :]
    h_ref[...] = jnp.zeros_like(h_ref)   # zero border for conv2's implicit padding

    def conv1_row(y, carry):
        acc = jnp.zeros((W2, C), jnp.float32)
        for kh in range(3):
            for kw in range(3):
                uu = u_ref[0, y + kh, kw:kw + W2, :].astype(jnp.bfloat16)
                dd = d_ref[0, y + kh, kw:kw + W2, :].astype(jnp.bfloat16)
                acc = acc + jnp.dot(uu, w1u_ref[kh, kw],
                                    preferred_element_type=jnp.float32)
                acc = acc + jnp.dot(dd, w1d_ref[kh, kw],
                                    preferred_element_type=jnp.float32)
        h_ref[y + 1, 1:1 + W2, :] = jnp.maximum(acc + b1, 0.0)
        return carry

    lax.fori_loop(0, H2, conv1_row, 0)

    def conv2_row(y, carry):
        acc = jnp.zeros((W2, C), jnp.float32)
        for kh in range(3):
            for kw in range(3):
                hh = h_ref[y + kh, kw:kw + W2, :].astype(jnp.bfloat16)
                acc = acc + jnp.dot(hh, w2_ref[kh, kw],
                                    preferred_element_type=jnp.float32)
        o_ref[0, y, :, :] = jnp.maximum(acc + b2, 0.0)
        return carry

    lax.fori_loop(0, H2, conv2_row, 0)


def convblock(u_pad, d_pad, params):
    """u_pad, d_pad: (B, H2+2, W2+2, C) f32 -> (B, H2, W2, C) f32."""
    B, Hp, Wp, C = u_pad.shape
    H2, W2 = Hp - 2, Wp - 2
    return pl.pallas_call(
        _convblock_kernel,
        out_shape=jax.ShapeDtypeStruct((B, H2, W2, C), jnp.float32),
        grid=(B,),
        in_specs=[
            pl.BlockSpec((1, Hp, Wp, C), lambda n: (n, 0, 0, 0)),
            pl.BlockSpec((1, Hp, Wp, C), lambda n: (n, 0, 0, 0)),
            pl.BlockSpec((3, 3, C, C), lambda n: (0, 0, 0, 0)),
            pl.BlockSpec((3, 3, C, C), lambda n: (0, 0, 0, 0)),
            pl.BlockSpec((1, C), lambda n: (0, 0)),
            pl.BlockSpec((3, 3, C, C), lambda n: (0, 0, 0, 0)),
            pl.BlockSpec((1, C), lambda n: (0, 0)),
        ],
        out_specs=pl.BlockSpec((1, H2, W2, C), lambda n: (n, 0, 0, 0)),
        scratch_shapes=[pltpu.VMEM((Hp, Wp, C), jnp.float32)],
        compiler_params=pltpu.CompilerParams(dimension_semantics=("parallel",)),
    )(u_pad, d_pad, params["c1_w_u"], params["c1_w_d"],
      params["c1_shift"].reshape(1, C), params["c2_w"],
      params["c2_shift"].reshape(1, C))


# ---------------------------------------------------------------------------
# Parameter construction (deterministic, synthetic).  BN scale is folded into
# the conv weights; bias+BN shift folded into a single per-channel shift.
# ---------------------------------------------------------------------------
def _fold_bn(conv_bias, gamma, beta, mean, var, eps=1e-5):
    scale = gamma / jnp.sqrt(var + eps)
    shift = (conv_bias - mean) * scale + beta
    return scale, shift


def _bn_params(keys, ch):
    gamma = 1.0 + 0.1 * jax.random.normal(keys[0], (ch,), jnp.float32)
    beta = 0.1 * jax.random.normal(keys[1], (ch,), jnp.float32)
    mean = 0.1 * jax.random.normal(keys[2], (ch,), jnp.float32)
    var = 1.0 + 0.5 * jax.random.uniform(keys[3], (ch,), jnp.float32)
    return gamma, beta, mean, var


def make_params(in_ch, out_ch, key):
    ks = jax.random.split(key, 18)
    p = {}

    # up_conv: ConvTranspose2d(in_ch, out_ch, 3, stride=2, padding=1, output_padding=1) + BN
    wt = 0.1 * jax.random.normal(ks[0], (in_ch, out_ch, 3, 3), jnp.float32)   # (in,out,kh,kw)
    bt = 0.1 * jax.random.normal(ks[1], (out_ch,), jnp.float32)
    g, bb, mu, vv = _bn_params(ks[2:6], out_ch)
    sc, sh = _fold_bn(bt, g, bb, mu, vv)
    p["up_w"] = (wt * sc[None, :, None, None]).transpose(2, 3, 0, 1).astype(jnp.bfloat16)
    p["up_shift"] = sh

    # conv1: Conv2d(2*out_ch, out_ch, 3, padding=1) + BN  (weight split u-half / down-half)
    c1_in = 2 * out_ch
    w1 = 0.1 * jax.random.normal(ks[6], (out_ch, c1_in, 3, 3), jnp.float32)   # (out,in,kh,kw)
    b1 = 0.1 * jax.random.normal(ks[7], (out_ch,), jnp.float32)
    g, bb, mu, vv = _bn_params(ks[8:12], out_ch)
    sc, sh = _fold_bn(b1, g, bb, mu, vv)
    w1_hwio = w1.transpose(2, 3, 1, 0) * sc[None, None, None, :]              # (kh,kw,in,out)
    p["c1_w_u"] = w1_hwio[:, :, :out_ch, :].astype(jnp.bfloat16)
    p["c1_w_d"] = w1_hwio[:, :, out_ch:, :].astype(jnp.bfloat16)
    p["c1_shift"] = sh

    # conv2: Conv2d(out_ch, out_ch, 3, padding=1) + BN
    w2 = 0.1 * jax.random.normal(ks[12], (out_ch, out_ch, 3, 3), jnp.float32)
    b2 = 0.1 * jax.random.normal(ks[13], (out_ch,), jnp.float32)
    g, bb, mu, vv = _bn_params(ks[14:18], out_ch)
    sc, sh = _fold_bn(b2, g, bb, mu, vv)
    p["c2_w"] = (w2.transpose(2, 3, 1, 0) * sc[None, None, None, :]).astype(jnp.bfloat16)
    p["c2_shift"] = sh
    return p


# ---------------------------------------------------------------------------
# UpBlock2d forward (Pallas path).  PyTorch-facing: NCHW in, NCHW out.
# ---------------------------------------------------------------------------
@jax.jit
def upblock2d_forward(x_nchw, down_nchw, params):
    x = jnp.transpose(x_nchw, (0, 2, 3, 1))         # -> NHWC
    down = jnp.transpose(down_nchw, (0, 2, 3, 1))   # -> NHWC
    B, H, W, _ = x.shape
    Cout = params["up_shift"].shape[0]
    H2, W2 = 2 * H, 2 * W

    # Transposed conv via 4-phase sub-pixel decomposition (no dilated buffer,
    # no im2col).  Phases are interleaved by a cheap transpose/reshape of the
    # small phase tensor (one 1x copy, not a 9x patch expansion).
    xp = jnp.pad(x, ((0, 0), (0, 1), (0, 1), (0, 0)))
    u_ph = upconv_phases(xp, params["up_w"], params["up_shift"])     # (B*4, H, W, Cout)
    u = (u_ph.reshape(B, 2, 2, H, W, Cout)
             .transpose(0, 3, 1, 4, 2, 5)
             .reshape(B, H2, W2, Cout))

    # conv1+conv2 fused kernel; skip concat handled by split weights.
    u_pad = jnp.pad(u, ((0, 0), (1, 1), (1, 1), (0, 0)))
    d_pad = jnp.pad(down, ((0, 0), (1, 1), (1, 1), (0, 0)))
    out = convblock(u_pad, d_pad, params)                            # (B, H2, W2, Cout)
    return jnp.transpose(out, (0, 3, 1, 2))                          # -> NCHW


# ---------------------------------------------------------------------------
# Pure-JAX (lax.conv) reference.  Conv inputs/weights are rounded to bf16 to
# mirror the kernel's bf16 MXU operands (accumulation stays f32), so the
# comparison tolerance only has to absorb accumulation-order noise.
# ---------------------------------------------------------------------------
@jax.jit
def upblock2d_reference(x_nchw, down_nchw, p):
    f32, bf16 = jnp.float32, jnp.bfloat16
    x = jnp.transpose(x_nchw, (0, 2, 3, 1)).astype(bf16).astype(f32)
    down = jnp.transpose(down_nchw, (0, 2, 3, 1)).astype(bf16).astype(f32)

    # ConvTranspose == dilated conv with spatially-flipped, channel-swapped kernel.
    w_up_fwd = jnp.flip(p["up_w"].astype(f32), axis=(0, 1))
    u = lax.conv_general_dilated(
        x, w_up_fwd, window_strides=(1, 1), padding=[(1, 2), (1, 2)],
        lhs_dilation=(2, 2), dimension_numbers=("NHWC", "HWIO", "NHWC"))
    u = jnp.maximum(u + p["up_shift"], 0.0).astype(bf16).astype(f32)

    cat = jnp.concatenate([u, down], axis=-1)
    w1 = jnp.concatenate([p["c1_w_u"], p["c1_w_d"]], axis=2).astype(f32)
    h = lax.conv_general_dilated(cat, w1, (1, 1), [(1, 1), (1, 1)],
                                 dimension_numbers=("NHWC", "HWIO", "NHWC"))
    h = jnp.maximum(h + p["c1_shift"], 0.0).astype(bf16).astype(f32)

    h = lax.conv_general_dilated(h, p["c2_w"].astype(f32), (1, 1), [(1, 1), (1, 1)],
                                 dimension_numbers=("NHWC", "HWIO", "NHWC"))
    h = jnp.maximum(h + p["c2_shift"], 0.0)
    return jnp.transpose(h, (0, 3, 1, 2))


# ---------------------------------------------------------------------------
if __name__ == "__main__":
    in_ch, out_ch = 4, 4
    B, H, W = 2, 8, 8   # x is the coarse feature map; down_features is 2x resolution

    key = jax.random.PRNGKey(0)
    k_x, k_d, k_p = jax.random.split(key, 3)
    x = jax.random.normal(k_x, (B, in_ch, H, W), jnp.float32)                        # NCHW
    down_features = jax.random.normal(k_d, (B, out_ch, 2 * H, 2 * W), jnp.float32)   # NCHW

    params = make_params(in_ch, out_ch, k_p)

    out = jax.block_until_ready(upblock2d_forward(x, down_features, params))
    assert out.shape == (B, out_ch, 2 * H, 2 * W), out.shape

    ref = jax.block_until_ready(upblock2d_reference(x, down_features, params))
    max_err = float(jnp.max(jnp.abs(out - ref)))
    # bf16 MXU operands in both paths; residual error is accumulation order +
    # rare 1-ulp bf16 re-rounding at layer boundaries -> well inside 1e-2.
    assert jnp.allclose(out, ref, rtol=1e-2, atol=1e-2), max_err

    print("KERNEL_OK")
</pallas_src>

<mosaic_0001>
module attributes {stable_mosaic.version = 11 : i64} {
  func.func @_upconv_phase_kernel(%arg0: i32, %arg1: memref<1x9x9x4xf32, #tpu.memory_space<vmem>>, %arg2: memref<3x3x4x4xbf16, #tpu.memory_space<vmem>>, %arg3: memref<1x4xf32, #tpu.memory_space<vmem>>, %arg4: memref<4x8x8x4xf32, #tpu.memory_space<vmem>>) attributes {dimension_semantics = [#tpu.dimension_semantics<parallel>], iteration_bounds = array<i64: 2>, scalar_prefetch = 0 : i64, scratch_operands = 0 : i64, tpu.core_type = #tpu.core_type<tc>, window_params = [{transform_indices = @transform_0, window_bounds = array<i64: 1, 9, 9, 4>}, {pipeline_mode = #tpu.pipeline_mode<synchronous>, transform_indices = @transform_1, window_bounds = array<i64: 3, 3, 4, 4>}, {pipeline_mode = #tpu.pipeline_mode<synchronous>, transform_indices = @transform_2, window_bounds = array<i64: 1, 4>}, {transform_indices = @transform_3, window_bounds = array<i64: 4, 8, 8, 4>}]} {
    %c0 = arith.constant 0 : index
    %c0_0 = arith.constant 0 : index
    %0 = vector.load %arg3[%c0, %c0_0] : memref<1x4xf32, #tpu.memory_space<vmem>>, vector<1x4xf32>
    %1 = vector.shape_cast %0 : vector<1x4xf32> to vector<4xf32>
    %c0_i32 = arith.constant 0 : i32
    %c8_i32 = arith.constant 8 : i32
    %2 = arith.addi %c0_i32, %c8_i32 : i32
    %c1_i32 = arith.constant 1 : i32
    scf.for %arg5 = %c0_i32 to %2 step %c1_i32  : i32 {
      %cst = arith.constant 0.000000e+00 : f32
      %3 = vector.broadcast %cst : f32 to vector<8x4xf32>
      %c0_i32_2 = arith.constant 0 : i32
      %4 = arith.addi %arg5, %c0_i32_2 : i32
      %c0_3 = arith.constant 0 : index
      %5 = arith.index_cast %4 : i32 to index
      %c0_4 = arith.constant 0 : index
      %c0_5 = arith.constant 0 : index
      %6 = vector.load %arg1[%c0_3, %5, %c0_4, %c0_5] : memref<1x9x9x4xf32, #tpu.memory_space<vmem>>, vector<1x1x8x4xf32>
      %7 = vector.shape_cast %6 : vector<1x1x8x4xf32> to vector<8x4xf32>
      %8 = arith.truncf %7 : vector<8x4xf32> to vector<8x4xbf16>
      %c1 = arith.constant 1 : index
      %c1_6 = arith.constant 1 : index
      %c0_7 = arith.constant 0 : index
      %c0_8 = arith.constant 0 : index
      %9 = vector.load %arg2[%c1, %c1_6, %c0_7, %c0_8] : memref<3x3x4x4xbf16, #tpu.memory_space<vmem>>, vector<1x1x4x4xbf16>
      %10 = vector.shape_cast %9 : vector<1x1x4x4xbf16> to vector<4x4xbf16>
      %cst_9 = arith.constant dense<0.000000e+00> : vector<8x4xf32>
      %11 = tpu.matmul %8, %10, %cst_9 {dimension_numbers = #tpu.dot_dimension_numbers<[1], [0], [0], [1], [0, 0, 1, 1], [], []>} : vector<8x4xbf16>, vector<4x4xbf16>, vector<8x4xf32> -> vector<8x4xf32>
      %12 = arith.addf %3, %11 : vector<8x4xf32>
      %13 = vector.shape_cast %1 : vector<4xf32> to vector<1x4xf32>
      %14 = vector.broadcast %13 : vector<1x4xf32> to vector<8x4xf32>
      %15 = arith.addf %12, %14 : vector<8x4xf32>
      %cst_10 = arith.constant 0.000000e+00 : f32
      %16 = vector.broadcast %cst_10 : f32 to vector<8x4xf32>
      %17 = arith.maximumf %15, %16 : vector<8x4xf32>
      %c0_11 = arith.constant 0 : index
      %18 = arith.index_cast %arg5 : i32 to index
      %c0_12 = arith.constant 0 : index
      %c0_13 = arith.constant 0 : index
      %19 = vector.load %arg4[%c0_11, %18, %c0_12, %c0_13] : memref<4x8x8x4xf32, #tpu.memory_space<vmem>>, vector<1x1x8x4xf32>
      %20 = vector.shape_cast %19 : vector<1x1x8x4xf32> to vector<8x4xf32>
      %21 = vector.shape_cast %17 : vector<8x4xf32> to vector<1x1x8x4xf32>
      tpu.vector_store %arg4[%c0_11, %18, %c0_12, %c0_13], %21 {strides = array<i32>} : memref<4x8x8x4xf32, #tpu.memory_space<vmem>>, vector<1x1x8x4xf32>,
      %cst_14 = arith.constant 0.000000e+00 : f32
      %22 = vector.broadcast %cst_14 : f32 to vector<8x4xf32>
      %c0_i32_15 = arith.constant 0 : i32
      %23 = arith.addi %arg5, %c0_i32_15 : i32
      %c0_16 = arith.constant 0 : index
      %24 = arith.index_cast %23 : i32 to index
      %c0_17 = arith.constant 0 : index
      %c0_18 = arith.constant 0 : index
      %25 = vector.load %arg1[%c0_16, %24, %c0_17, %c0_18] : memref<1x9x9x4xf32, #tpu.memory_space<vmem>>, vector<1x1x8x4xf32>
      %26 = vector.shape_cast %25 : vector<1x1x8x4xf32> to vector<8x4xf32>
      %27 = arith.truncf %26 : vector<8x4xf32> to vector<8x4xbf16>
      %c1_19 = arith.constant 1 : index
      %c2 = arith.constant 2 : index
      %c0_20 = arith.constant 0 : index
      %c0_21 = arith.constant 0 : index
      %28 = vector.load %arg2[%c1_19, %c2, %c0_20, %c0_21] : memref<3x3x4x4xbf16, #tpu.memory_space<vmem>>, vector<1x1x4x4xbf16>
      %29 = vector.shape_cast %28 : vector<1x1x4x4xbf16> to vector<4x4xbf16>
      %cst_22 = arith.constant dense<0.000000e+00> : vector<8x4xf32>
      %30 = tpu.matmul %27, %29, %cst_22 {dimension_numbers = #tpu.dot_dimension_numbers<[1], [0], [0], [1], [0, 0, 1, 1], [], []>} : vector<8x4xbf16>, vector<4x4xbf16>, vector<8x4xf32> -> vector<8x4xf32>
      %31 = arith.addf %22, %30 : vector<8x4xf32>
      %c0_i32_23 = arith.constant 0 : i32
      %32 = arith.addi %arg5, %c0_i32_23 : i32
      %c0_24 = arith.constant 0 : index
      %33 = arith.index_cast %32 : i32 to index
      %c1_25 = arith.constant 1 : index
      %c0_26 = arith.constant 0 : index
      %34 = vector.load %arg1[%c0_24, %33, %c1_25, %c0_26] : memref<1x9x9x4xf32, #tpu.memory_space<vmem>>, vector<1x1x8x4xf32>
      %35 = vector.shape_cast %34 : vector<1x1x8x4xf32> to vector<8x4xf32>
      %36 = arith.truncf %35 : vector<8x4xf32> to vector<8x4xbf16>
      %c1_27 = arith.constant 1 : index
      %c0_28 = arith.constant 0 : index
      %c0_29 = arith.constant 0 : index
      %c0_30 = arith.constant 0 : index
      %37 = vector.load %arg2[%c1_27, %c0_28, %c0_29, %c0_30] : memref<3x3x4x4xbf16, #tpu.memory_space<vmem>>, vector<1x1x4x4xbf16>
      %38 = vector.shape_cast %37 : vector<1x1x4x4xbf16> to vector<4x4xbf16>
      %cst_31 = arith.constant dense<0.000000e+00> : vector<8x4xf32>
      %39 = tpu.matmul %36, %38, %cst_31 {dimension_numbers = #tpu.dot_dimension_numbers<[1], [0], [0], [1], [0, 0, 1, 1], [], []>} : vector<8x4xbf16>, vector<4x4xbf16>, vector<8x4xf32> -> vector<8x4xf32>
      %40 = arith.addf %31, %39 : vector<8x4xf32>
      %41 = vector.shape_cast %1 : vector<4xf32> to vector<1x4xf32>
      %42 = vector.broadcast %41 : vector<1x4xf32> to vector<8x4xf32>
      %43 = arith.addf %40, %42 : vector<8x4xf32>
      %cst_32 = arith.constant 0.000000e+00 : f32
      %44 = vector.broadcast %cst_32 : f32 to vector<8x4xf32>
      %45 = arith.maximumf %43, %44 : vector<8x4xf32>
      %c1_33 = arith.constant 1 : index
      %46 = arith.index_cast %arg5 : i32 to index
      %c0_34 = arith.constant 0 : index
      %c0_35 = arith.constant 0 : index
      %47 = vector.load %arg4[%c1_33, %46, %c0_34, %c0_35] : memref<4x8x8x4xf32, #tpu.memory_space<vmem>>, vector<1x1x8x4xf32>
      %48 = vector.shape_cast %47 : vector<1x1x8x4xf32> to vector<8x4xf32>
      %49 = vector.shape_cast %45 : vector<8x4xf32> to vector<1x1x8x4xf32>
      tpu.vector_store %arg4[%c1_33, %46, %c0_34, %c0_35], %49 {strides = array<i32>} : memref<4x8x8x4xf32, #tpu.memory_space<vmem>>, vector<1x1x8x4xf32>,
      %cst_36 = arith.constant 0.000000e+00 : f32
      %50 = vector.broadcast %cst_36 : f32 to vector<8x4xf32>
      %c0_i32_37 = arith.constant 0 : i32
      %51 = arith.addi %arg5, %c0_i32_37 : i32
      %c0_38 = arith.constant 0 : index
      %52 = arith.index_cast %51 : i32 to index
      %c0_39 = arith.constant 0 : index
      %c0_40 = arith.constant 0 : index
      %53 = vector.load %arg1[%c0_38, %52, %c0_39, %c0_40] : memref<1x9x9x4xf32, #tpu.memory_space<vmem>>, vector<1x1x8x4xf32>
      %54 = vector.shape_cast %53 : vector<1x1x8x4xf32> to vector<8x4xf32>
      %55 = arith.truncf %54 : vector<8x4xf32> to vector<8x4xbf16>
      %c2_41 = arith.constant 2 : index
      %c1_42 = arith.constant 1 : index
      %c0_43 = arith.constant 0 : index
      %c0_44 = arith.constant 0 : index
      %56 = vector.load %arg2[%c2_41, %c1_42, %c0_43, %c0_44] : memref<3x3x4x4xbf16, #tpu.memory_space<vmem>>, vector<1x1x4x4xbf16>
      %57 = vector.shape_cast %56 : vector<1x1x4x4xbf16> to vector<4x4xbf16>
      %cst_45 = arith.constant dense<0.000000e+00> : vector<8x4xf32>
      %58 = tpu.matmul %55, %57, %cst_45 {dimension_numbers = #tpu.dot_dimension_numbers<[1], [0], [0], [1], [0, 0, 1, 1], [], []>} : vector<8x4xbf16>, vector<4x4xbf16>, vector<8x4xf32> -> vector<8x4xf32>
      %59 = arith.addf %50, %58 : vector<8x4xf32>
      %c1_i32_46 = arith.constant 1 : i32
      %60 = arith.addi %arg5, %c1_i32_46 : i32
      %c0_47 = arith.constant 0 : index
      %61 = arith.index_cast %60 : i32 to index
      %c0_48 = arith.constant 0 : index
      %c0_49 = arith.constant 0 : index
      %62 = vector.load %arg1[%c0_47, %61, %c0_48, %c0_49] : memref<1x9x9x4xf32, #tpu.memory_space<vmem>>, vector<1x1x8x4xf32>
      %63 = vector.shape_cast %62 : vector<1x1x8x4xf32> to vector<8x4xf32>
      %64 = arith.truncf %63 : vector<8x4xf32> to vector<8x4xbf16>
      %c0_50 = arith.constant 0 : index
      %c1_51 = arith.constant 1 : index
      %c0_52 = arith.constant 0 : index
      %c0_53 = arith.constant 0 : index
      %65 = vector.load %arg2[%c0_50, %c1_51, %c0_52, %c0_53] : memref<3x3x4x4xbf16, #tpu.memory_space<vmem>>, vector<1x1x4x4xbf16>
      %66 = vector.shape_cast %65 : vector<1x1x4x4xbf16> to vector<4x4xbf16>
      %cst_54 = arith.constant dense<0.000000e+00> : vector<8x4xf32>
      %67 = tpu.matmul %64, %66, %cst_54 {dimension_numbers = #tpu.dot_dimension_numbers<[1], [0], [0], [1], [0, 0, 1, 1], [], []>} : vector<8x4xbf16>, vector<4x4xbf16>, vector<8x4xf32> -> vector<8x4xf32>
      %68 = arith.addf %59, %67 : vector<8x4xf32>
      %69 = vector.shape_cast %1 : vector<4xf32> to vector<1x4xf32>
      %70 = vector.broadcast %69 : vector<1x4xf32> to vector<8x4xf32>
      %71 = arith.addf %68, %70 : vector<8x4xf32>
      %cst_55 = arith.constant 0.000000e+00 : f32
      %72 = vector.broadcast %cst_55 : f32 to vector<8x4xf32>
      %73 = arith.maximumf %71, %72 : vector<8x4xf32>
      %c2_56 = arith.constant 2 : index
      %74 = arith.index_cast %arg5 : i32 to index
      %c0_57 = arith.constant 0 : index
      %c0_58 = arith.constant 0 : index
      %75 = vector.load %arg4[%c2_56, %74, %c0_57, %c0_58] : memref<4x8x8x4xf32, #tpu.memory_space<vmem>>, vector<1x1x8x4xf32>
      %76 = vector.shape_cast %75 : vector<1x1x8x4xf32> to vector<8x4xf32>
      %77 = vector.shape_cast %73 : vector<8x4xf32> to vector<1x1x8x4xf32>
      tpu.vector_store %arg4[%c2_56, %74, %c0_57, %c0_58], %77 {strides = array<i32>} : memref<4x8x8x4xf32, #tpu.memory_space<vmem>>, vector<1x1x8x4xf32>,
      %cst_59 = arith.constant 0.000000e+00 : f32
      %78 = vector.broadcast %cst_59 : f32 to vector<8x4xf32>
      %c0_i32_60 = arith.constant 0 : i32
      %79 = arith.addi %arg5, %c0_i32_60 : i32
      %c0_61 = arith.constant 0 : index
      %80 = arith.index_cast %79 : i32 to index
      %c0_62 = arith.constant 0 : index
      %c0_63 = arith.constant 0 : index
      %81 = vector.load %arg1[%c0_61, %80, %c0_62, %c0_63] : memref<1x9x9x4xf32, #tpu.memory_space<vmem>>, vector<1x1x8x4xf32>
      %82 = vector.shape_cast %81 : vector<1x1x8x4xf32> to vector<8x4xf32>
      %83 = arith.truncf %82 : vector<8x4xf32> to vector<8x4xbf16>
      %c2_64 = arith.constant 2 : index
      %c2_65 = arith.constant 2 : index
      %c0_66 = arith.constant 0 : index
      %c0_67 = arith.constant 0 : index
      %84 = vector.load %arg2[%c2_64, %c2_65, %c0_66, %c0_67] : memref<3x3x4x4xbf16, #tpu.memory_space<vmem>>, vector<1x1x4x4xbf16>
      %85 = vector.shape_cast %84 : vector<1x1x4x4xbf16> to vector<4x4xbf16>
      %cst_68 = arith.constant dense<0.000000e+00> : vector<8x4xf32>
      %86 = tpu.matmul %83, %85, %cst_68 {dimension_numbers = #tpu.dot_dimension_numbers<[1], [0], [0], [1], [0, 0, 1, 1], [], []>} : vector<8x4xbf16>, vector<4x4xbf16>, vector<8x4xf32> -> vector<8x4xf32>
      %87 = arith.addf %78, %86 : vector<8x4xf32>
      %c0_i32_69 = arith.constant 0 : i32
      %88 = arith.addi %arg5, %c0_i32_69 : i32
      %c0_70 = arith.constant 0 : index
      %89 = arith.index_cast %88 : i32 to index
      %c1_71 = arith.constant 1 : index
      %c0_72 = arith.constant 0 : index
      %90 = vector.load %arg1[%c0_70, %89, %c1_71, %c0_72] : memref<1x9x9x4xf32, #tpu.memory_space<vmem>>, vector<1x1x8x4xf32>
      %91 = vector.shape_cast %90 : vector<1x1x8x4xf32> to vector<8x4xf32>
      %92 = arith.truncf %91 : vector<8x4xf32> to vector<8x4xbf16>
      %c2_73 = arith.constant 2 : index
      %c0_74 = arith.constant 0 : index
      %c0_75 = arith.constant 0 : index
      %c0_76 = arith.constant 0 : index
      %93 = vector.load %arg2[%c2_73, %c0_74, %c0_75, %c0_76] : memref<3x3x4x4xbf16, #tpu.memory_space<vmem>>, vector<1x1x4x4xbf16>
      %94 = vector.shape_cast %93 : vector<1x1x4x4xbf16> to vector<4x4xbf16>
      %cst_77 = arith.constant dense<0.000000e+00> : vector<8x4xf32>
      %95 = tpu.matmul %92, %94, %cst_77 {dimension_numbers = #tpu.dot_dimension_numbers<[1], [0], [0], [1], [0, 0, 1, 1], [], []>} : vector<8x4xbf16>, vector<4x4xbf16>, vector<8x4xf32> -> vector<8x4xf32>
      %96 = arith.addf %87, %95 : vector<8x4xf32>
      %c1_i32_78 = arith.constant 1 : i32
      %97 = arith.addi %arg5, %c1_i32_78 : i32
      %c0_79 = arith.constant 0 : index
      %98 = arith.index_cast %97 : i32 to index
      %c0_80 = arith.constant 0 : index
      %c0_81 = arith.constant 0 : index
      %99 = vector.load %arg1[%c0_79, %98, %c0_80, %c0_81] : memref<1x9x9x4xf32, #tpu.memory_space<vmem>>, vector<1x1x8x4xf32>
      %100 = vector.shape_cast %99 : vector<1x1x8x4xf32> to vector<8x4xf32>
      %101 = arith.truncf %100 : vector<8x4xf32> to vector<8x4xbf16>
      %c0_82 = arith.constant 0 : index
      %c2_83 = arith.constant 2 : index
      %c0_84 = arith.constant 0 : index
      %c0_85 = arith.constant 0 : index
      %102 = vector.load %arg2[%c0_82, %c2_83, %c0_84, %c0_85] : memref<3x3x4x4xbf16, #tpu.memory_space<vmem>>, vector<1x1x4x4xbf16>
      %103 = vector.shape_cast %102 : vector<1x1x4x4xbf16> to vector<4x4xbf16>
      %cst_86 = arith.constant dense<0.000000e+00> : vector<8x4xf32>
      %104 = tpu.matmul %101, %103, %cst_86 {dimension_numbers = #tpu.dot_dimension_numbers<[1], [0], [0], [1], [0, 0, 1, 1], [], []>} : vector<8x4xbf16>, vector<4x4xbf16>, vector<8x4xf32> -> vector<8x4xf32>
      %105 = arith.addf %96, %104 : vector<8x4xf32>
      %c1_i32_87 = arith.constant 1 : i32
      %106 = arith.addi %arg5, %c1_i32_87 : i32
      %c0_88 = arith.constant 0 : index
      %107 = arith.index_cast %106 : i32 to index
      %c1_89 = arith.constant 1 : index
      %c0_90 = arith.constant 0 : index
      %108 = vector.load %arg1[%c0_88, %107, %c1_89, %c0_90] : memref<1x9x9x4xf32, #tpu.memory_space<vmem>>, vector<1x1x8x4xf32>
      %109 = vector.shape_cast %108 : vector<1x1x8x4xf32> to vector<8x4xf32>
      %110 = arith.truncf %109 : vector<8x4xf32> to vector<8x4xbf16>
      %c0_91 = arith.constant 0 : index
      %c0_92 = arith.constant 0 : index
      %c0_93 = arith.constant 0 : index
      %c0_94 = arith.constant 0 : index
      %111 = vector.load %arg2[%c0_91, %c0_92, %c0_93, %c0_94] : memref<3x3x4x4xbf16, #tpu.memory_space<vmem>>, vector<1x1x4x4xbf16>
      %112 = vector.shape_cast %111 : vector<1x1x4x4xbf16> to vector<4x4xbf16>
      %cst_95 = arith.constant dense<0.000000e+00> : vector<8x4xf32>
      %113 = tpu.matmul %110, %112, %cst_95 {dimension_numbers = #tpu.dot_dimension_numbers<[1], [0], [0], [1], [0, 0, 1, 1], [], []>} : vector<8x4xbf16>, vector<4x4xbf16>, vector<8x4xf32> -> vector<8x4xf32>
      %114 = arith.addf %105, %113 : vector<8x4xf32>
      %115 = vector.shape_cast %1 : vector<4xf32> to vector<1x4xf32>
      %116 = vector.broadcast %115 : vector<1x4xf32> to vector<8x4xf32>
      %117 = arith.addf %114, %116 : vector<8x4xf32>
      %cst_96 = arith.constant 0.000000e+00 : f32
      %118 = vector.broadcast %cst_96 : f32 to vector<8x4xf32>
      %119 = arith.maximumf %117, %118 : vector<8x4xf32>
      %c3 = arith.constant 3 : index
      %120 = arith.index_cast %arg5 : i32 to index
      %c0_97 = arith.constant 0 : index
      %c0_98 = arith.constant 0 : index
      %121 = vector.load %arg4[%c3, %120, %c0_97, %c0_98] : memref<4x8x8x4xf32, #tpu.memory_space<vmem>>, vector<1x1x8x4xf32>
      %122 = vector.shape_cast %121 : vector<1x1x8x4xf32> to vector<8x4xf32>
      %123 = vector.shape_cast %119 : vector<8x4xf32> to vector<1x1x8x4xf32>
      tpu.vector_store %arg4[%c3, %120, %c0_97, %c0_98], %123 {strides = array<i32>} : memref<4x8x8x4xf32, #tpu.memory_space<vmem>>, vector<1x1x8x4xf32>,
    }
    %c8_i32_1 = arith.constant 8 : i32
    return
  }
  func.func @transform_0(%arg0: i32) -> (i32, i32, i32, i32) {
    %c0_i32 = arith.constant 0 : i32
    %c0_i32_0 = arith.constant 0 : i32
    %c0_i32_1 = arith.constant 0 : i32
    %c0_i32_2 = arith.constant 0 : i32
    return %arg0, %c0_i32, %c0_i32_0, %c0_i32_1 : i32, i32, i32, i32
  }
  func.func @transform_1(%arg0: i32) -> (i32, i32, i32, i32) {
    %c0_i32 = arith.constant 0 : i32
    %c0_i32_0 = arith.constant 0 : i32
    %c0_i32_1 = arith.constant 0 : i32
    %c0_i32_2 = arith.constant 0 : i32
    %c0_i32_3 = arith.constant 0 : i32
    return %c0_i32, %c0_i32_0, %c0_i32_1, %c0_i32_2 : i32, i32, i32, i32
  }
  func.func @transform_2(%arg0: i32) -> (i32, i32) {
    %c0_i32 = arith.constant 0 : i32
    %c0_i32_0 = arith.constant 0 : i32
    %c0_i32_1 = arith.constant 0 : i32
    return %c0_i32, %c0_i32_0 : i32, i32
  }
  func.func @transform_3(%arg0: i32) -> (i32, i32, i32, i32) {
    %c0_i32 = arith.constant 0 : i32
    %c0_i32_0 = arith.constant 0 : i32
    %c0_i32_1 = arith.constant 0 : i32
    %c0_i32_2 = arith.constant 0 : i32
    return %arg0, %c0_i32, %c0_i32_0, %c0_i32_1 : i32, i32, i32, i32
  }
}

module attributes {stable_mosaic.version = 11 : i64} {
  func.func @_convblock_kernel(%arg0: i32, %arg1: memref<1x18x18x4xf32, #tpu.memory_space<vmem>>, %arg2: memref<1x18x18x4xf32, #tpu.memory_space<vmem>>, %arg3: memref<3x3x4x4xbf16, #tpu.memory_space<vmem>>, %arg4: memref<3x3x4x4xbf16, #tpu.memory_space<vmem>>, %arg5: memref<1x4xf32, #tpu.memory_space<vmem>>, %arg6: memref<3x3x4x4xbf16, #tpu.memory_space<vmem>>, %arg7: memref<1x4xf32, #tpu.memory_space<vmem>>, %arg8: memref<1x16x16x4xf32, #tpu.memory_space<vmem>>, %arg9: memref<18x18x4xf32, #tpu.memory_space<vmem>>) attributes {dimension_semantics = [#tpu.dimension_semantics<parallel>], iteration_bounds = array<i64: 2>, scalar_prefetch = 0 : i64, scratch_operands = 1 : i64, tpu.core_type = #tpu.core_type<tc>, window_params = [{transform_indices = @transform_0, window_bounds = array<i64: 1, 18, 18, 4>}, {transform_indices = @transform_1, window_bounds = array<i64: 1, 18, 18, 4>}, {pipeline_mode = #tpu.pipeline_mode<synchronous>, transform_indices = @transform_2, window_bounds = array<i64: 3, 3, 4, 4>}, {pipeline_mode = #tpu.pipeline_mode<synchronous>, transform_indices = @transform_3, window_bounds = array<i64: 3, 3, 4, 4>}, {pipeline_mode = #tpu.pipeline_mode<synchronous>, transform_indices = @transform_4, window_bounds = array<i64: 1, 4>}, {pipeline_mode = #tpu.pipeline_mode<synchronous>, transform_indices = @transform_5, window_bounds = array<i64: 3, 3, 4, 4>}, {pipeline_mode = #tpu.pipeline_mode<synchronous>, transform_indices = @transform_6, window_bounds = array<i64: 1, 4>}, {transform_indices = @transform_7, window_bounds = array<i64: 1, 16, 16, 4>}]} {
    %c0 = arith.constant 0 : index
    %c0_0 = arith.constant 0 : index
    %0 = vector.load %arg5[%c0, %c0_0] : memref<1x4xf32, #tpu.memory_space<vmem>>, vector<1x4xf32>
    %1 = vector.shape_cast %0 : vector<1x4xf32> to vector<4xf32>
    %c0_1 = arith.constant 0 : index
    %c0_2 = arith.constant 0 : index
    %2 = vector.load %arg7[%c0_1, %c0_2] : memref<1x4xf32, #tpu.memory_space<vmem>>, vector<1x4xf32>
    %3 = vector.shape_cast %2 : vector<1x4xf32> to vector<4xf32>
    %cst = arith.constant 0.000000e+00 : f32
    %4 = vector.broadcast %cst : f32 to vector<18x18x4xf32>
    %c0_3 = arith.constant 0 : index
    %c0_4 = arith.constant 0 : index
    %c0_5 = arith.constant 0 : index
    %5 = vector.load %arg9[%c0_3, %c0_4, %c0_5] : memref<18x18x4xf32, #tpu.memory_space<vmem>>, vector<18x18x4xf32>
    tpu.vector_store %arg9[%c0_3, %c0_4, %c0_5], %4 {strides = array<i32>} : memref<18x18x4xf32, #tpu.memory_space<vmem>>, vector<18x18x4xf32>,
    %c0_i32 = arith.constant 0 : i32
    %c16_i32 = arith.constant 16 : i32
    %6 = arith.addi %c0_i32, %c16_i32 : i32
    %c1_i32 = arith.constant 1 : i32
    scf.for %arg10 = %c0_i32 to %6 step %c1_i32  : i32 {
      %cst_11 = arith.constant 0.000000e+00 : f32
      %8 = vector.broadcast %cst_11 : f32 to vector<16x4xf32>
      %c0_i32_12 = arith.constant 0 : i32
      %9 = arith.addi %arg10, %c0_i32_12 : i32
      %c0_13 = arith.constant 0 : index
      %10 = arith.index_cast %9 : i32 to index
      %c0_14 = arith.constant 0 : index
      %c0_15 = arith.constant 0 : index
      %11 = vector.load %arg1[%c0_13, %10, %c0_14, %c0_15] : memref<1x18x18x4xf32, #tpu.memory_space<vmem>>, vector<1x1x16x4xf32>
      %12 = vector.shape_cast %11 : vector<1x1x16x4xf32> to vector<16x4xf32>
      %13 = arith.truncf %12 : vector<16x4xf32> to vector<16x4xbf16>
      %c0_i32_16 = arith.constant 0 : i32
      %14 = arith.addi %arg10, %c0_i32_16 : i32
      %c0_17 = arith.constant 0 : index
      %15 = arith.index_cast %14 : i32 to index
      %c0_18 = arith.constant 0 : index
      %c0_19 = arith.constant 0 : index
      %16 = vector.load %arg2[%c0_17, %15, %c0_18, %c0_19] : memref<1x18x18x4xf32, #tpu.memory_space<vmem>>, vector<1x1x16x4xf32>
      %17 = vector.shape_cast %16 : vector<1x1x16x4xf32> to vector<16x4xf32>
      %18 = arith.truncf %17 : vector<16x4xf32> to vector<16x4xbf16>
      %c0_20 = arith.constant 0 : index
      %c0_21 = arith.constant 0 : index
      %c0_22 = arith.constant 0 : index
      %c0_23 = arith.constant 0 : index
      %19 = vector.load %arg3[%c0_20, %c0_21, %c0_22, %c0_23] : memref<3x3x4x4xbf16, #tpu.memory_space<vmem>>, vector<1x1x4x4xbf16>
      %20 = vector.shape_cast %19 : vector<1x1x4x4xbf16> to vector<4x4xbf16>
      %cst_24 = arith.constant dense<0.000000e+00> : vector<16x4xf32>
      %21 = tpu.matmul %13, %20, %cst_24 {dimension_numbers = #tpu.dot_dimension_numbers<[1], [0], [0], [1], [0, 0, 1, 1], [], []>} : vector<16x4xbf16>, vector<4x4xbf16>, vector<16x4xf32> -> vector<16x4xf32>
      %22 = arith.addf %8, %21 : vector<16x4xf32>
      %c0_25 = arith.constant 0 : index
      %c0_26 = arith.constant 0 : index
      %c0_27 = arith.constant 0 : index
      %c0_28 = arith.constant 0 : index
      %23 = vector.load %arg4[%c0_25, %c0_26, %c0_27, %c0_28] : memref<3x3x4x4xbf16, #tpu.memory_space<vmem>>, vector<1x1x4x4xbf16>
      %24 = vector.shape_cast %23 : vector<1x1x4x4xbf16> to vector<4x4xbf16>
      %cst_29 = arith.constant dense<0.000000e+00> : vector<16x4xf32>
      %25 = tpu.matmul %18, %24, %cst_29 {dimension_numbers = #tpu.dot_dimension_numbers<[1], [0], [0], [1], [0, 0, 1, 1], [], []>} : vector<16x4xbf16>, vector<4x4xbf16>, vector<16x4xf32> -> vector<16x4xf32>
      %26 = arith.addf %22, %25 : vector<16x4xf32>
      %c0_i32_30 = arith.constant 0 : i32
      %27 = arith.addi %arg10, %c0_i32_30 : i32
      %c0_31 = arith.constant 0 : index
      %28 = arith.index_cast %27 : i32 to index
      %c1 = arith.constant 1 : index
      %c0_32 = arith.constant 0 : index
      %29 = vector.load %arg1[%c0_31, %28, %c1, %c0_32] : memref<1x18x18x4xf32, #tpu.memory_space<vmem>>, vector<1x1x16x4xf32>
      %30 = vector.shape_cast %29 : vector<1x1x16x4xf32> to vector<16x4xf32>
      %31 = arith.truncf %30 : vector<16x4xf32> to vector<16x4xbf16>
      %c0_i32_33 = arith.constant 0 : i32
      %32 = arith.addi %arg10, %c0_i32_33 : i32
      %c0_34 = arith.constant 0 : index
      %33 = arith.index_cast %32 : i32 to index
      %c1_35 = arith.constant 1 : index
      %c0_36 = arith.constant 0 : index
      %34 = vector.load %arg2[%c0_34, %33, %c1_35, %c0_36] : memref<1x18x18x4xf32, #tpu.memory_space<vmem>>, vector<1x1x16x4xf32>
      %35 = vector.shape_cast %34 : vector<1x1x16x4xf32> to vector<16x4xf32>
      %36 = arith.truncf %35 : vector<16x4xf32> to vector<16x4xbf16>
      %c0_37 = arith.constant 0 : index
      %c1_38 = arith.constant 1 : index
      %c0_39 = arith.constant 0 : index
      %c0_40 = arith.constant 0 : index
      %37 = vector.load %arg3[%c0_37, %c1_38, %c0_39, %c0_40] : memref<3x3x4x4xbf16, #tpu.memory_space<vmem>>, vector<1x1x4x4xbf16>
      %38 = vector.shape_cast %37 : vector<1x1x4x4xbf16> to vector<4x4xbf16>
      %cst_41 = arith.constant dense<0.000000e+00> : vector<16x4xf32>
      %39 = tpu.matmul %31, %38, %cst_41 {dimension_numbers = #tpu.dot_dimension_numbers<[1], [0], [0], [1], [0, 0, 1, 1], [], []>} : vector<16x4xbf16>, vector<4x4xbf16>, vector<16x4xf32> -> vector<16x4xf32>
      %40 = arith.addf %26, %39 : vector<16x4xf32>
      %c0_42 = arith.constant 0 : index
      %c1_43 = arith.constant 1 : index
      %c0_44 = arith.constant 0 : index
      %c0_45 = arith.constant 0 : index
      %41 = vector.load %arg4[%c0_42, %c1_43, %c0_44, %c0_45] : memref<3x3x4x4xbf16, #tpu.memory_space<vmem>>, vector<1x1x4x4xbf16>
      %42 = vector.shape_cast %41 : vector<1x1x4x4xbf16> to vector<4x4xbf16>
      %cst_46 = arith.constant dense<0.000000e+00> : vector<16x4xf32>
      %43 = tpu.matmul %36, %42, %cst_46 {dimension_numbers = #tpu.dot_dimension_numbers<[1], [0], [0], [1], [0, 0, 1, 1], [], []>} : vector<16x4xbf16>, vector<4x4xbf16>, vector<16x4xf32> -> vector<16x4xf32>
      %44 = arith.addf %40, %43 : vector<16x4xf32>
      %c0_i32_47 = arith.constant 0 : i32
      %45 = arith.addi %arg10, %c0_i32_47 : i32
      %c0_48 = arith.constant 0 : index
      %46 = arith.index_cast %45 : i32 to index
      %c2 = arith.constant 2 : index
      %c0_49 = arith.constant 0 : index
      %47 = vector.load %arg1[%c0_48, %46, %c2, %c0_49] : memref<1x18x18x4xf32, #tpu.memory_space<vmem>>, vector<1x1x16x4xf32>
      %48 = vector.shape_cast %47 : vector<1x1x16x4xf32> to vector<16x4xf32>
      %49 = arith.truncf %48 : vector<16x4xf32> to vector<16x4xbf16>
      %c0_i32_50 = arith.constant 0 : i32
      %50 = arith.addi %arg10, %c0_i32_50 : i32
      %c0_51 = arith.constant 0 : index
      %51 = arith.index_cast %50 : i32 to index
      %c2_52 = arith.constant 2 : index
      %c0_53 = arith.constant 0 : index
      %52 = vector.load %arg2[%c0_51, %51, %c2_52, %c0_53] : memref<1x18x18x4xf32, #tpu.memory_space<vmem>>, vector<1x1x16x4xf32>
      %53 = vector.shape_cast %52 : vector<1x1x16x4xf32> to vector<16x4xf32>
      %54 = arith.truncf %53 : vector<16x4xf32> to vector<16x4xbf16>
      %c0_54 = arith.constant 0 : index
      %c2_55 = arith.constant 2 : index
      %c0_56 = arith.constant 0 : index
      %c0_57 = arith.constant 0 : index
      %55 = vector.load %arg3[%c0_54, %c2_55, %c0_56, %c0_57] : memref<3x3x4x4xbf16, #tpu.memory_space<vmem>>, vector<1x1x4x4xbf16>
      %56 = vector.shape_cast %55 : vector<1x1x4x4xbf16> to vector<4x4xbf16>
      %cst_58 = arith.constant dense<0.000000e+00> : vector<16x4xf32>
      %57 = tpu.matmul %49, %56, %cst_58 {dimension_numbers = #tpu.dot_dimension_numbers<[1], [0], [0], [1], [0, 0, 1, 1], [], []>} : vector<16x4xbf16>, vector<4x4xbf16>, vector<16x4xf32> -> vector<16x4xf32>
      %58 = arith.addf %44, %57 : vector<16x4xf32>
      %c0_59 = arith.constant 0 : index
      %c2_60 = arith.constant 2 : index
      %c0_61 = arith.constant 0 : index
      %c0_62 = arith.constant 0 : index
      %59 = vector.load %arg4[%c0_59, %c2_60, %c0_61, %c0_62] : memref<3x3x4x4xbf16, #tpu.memory_space<vmem>>, vector<1x1x4x4xbf16>
      %60 = vector.shape_cast %59 : vector<1x1x4x4xbf16> to vector<4x4xbf16>
      %cst_63 = arith.constant dense<0.000000e+00> : vector<16x4xf32>
      %61 = tpu.matmul %54, %60, %cst_63 {dimension_numbers = #tpu.dot_dimension_numbers<[1], [0], [0], [1], [0, 0, 1, 1], [], []>} : vector<16x4xbf16>, vector<4x4xbf16>, vector<16x4xf32> -> vector<16x4xf32>
      %62 = arith.addf %58, %61 : vector<16x4xf32>
      %c1_i32_64 = arith.constant 1 : i32
      %63 = arith.addi %arg10, %c1_i32_64 : i32
      %c0_65 = arith.constant 0 : index
      %64 = arith.index_cast %63 : i32 to index
      %c0_66 = arith.constant 0 : index
      %c0_67 = arith.constant 0 : index
      %65 = vector.load %arg1[%c0_65, %64, %c0_66, %c0_67] : memref<1x18x18x4xf32, #tpu.memory_space<vmem>>, vector<1x1x16x4xf32>
      %66 = vector.shape_cast %65 : vector<1x1x16x4xf32> to vector<16x4xf32>
      %67 = arith.truncf %66 : vector<16x4xf32> to vector<16x4xbf16>
      %c1_i32_68 = arith.constant 1 : i32
      %68 = arith.addi %arg10, %c1_i32_68 : i32
      %c0_69 = arith.constant 0 : index
      %69 = arith.index_cast %68 : i32 to index
      %c0_70 = arith.constant 0 : index
      %c0_71 = arith.constant 0 : index
      %70 = vector.load %arg2[%c0_69, %69, %c0_70, %c0_71] : memref<1x18x18x4xf32, #tpu.memory_space<vmem>>, vector<1x1x16x4xf32>
      %71 = vector.shape_cast %70 : vector<1x1x16x4xf32> to vector<16x4xf32>
      %72 = arith.truncf %71 : vector<16x4xf32> to vector<16x4xbf16>
      %c1_72 = arith.constant 1 : index
      %c0_73 = arith.constant 0 : index
      %c0_74 = arith.constant 0 : index
      %c0_75 = arith.constant 0 : index
      %73 = vector.load %arg3[%c1_72, %c0_73, %c0_74, %c0_75] : memref<3x3x4x4xbf16, #tpu.memory_space<vmem>>, vector<1x1x4x4xbf16>
      %74 = vector.shape_cast %73 : vector<1x1x4x4xbf16> to vector<4x4xbf16>
      %cst_76 = arith.constant dense<0.000000e+00> : vector<16x4xf32>
      %75 = tpu.matmul %67, %74, %cst_76 {dimension_numbers = #tpu.dot_dimension_numbers<[1], [0], [0], [1], [0, 0, 1, 1], [], []>} : vector<16x4xbf16>, vector<4x4xbf16>, vector<16x4xf32> -> vector<16x4xf32>
      %76 = arith.addf %62, %75 : vector<16x4xf32>
      %c1_77 = arith.constant 1 : index
      %c0_78 = arith.constant 0 : index
      %c0_79 = arith.constant 0 : index
      %c0_80 = arith.constant 0 : index
      %77 = vector.load %arg4[%c1_77, %c0_78, %c0_79, %c0_80] : memref<3x3x4x4xbf16, #tpu.memory_space<vmem>>, vector<1x1x4x4xbf16>
      %78 = vector.shape_cast %77 : vector<1x1x4x4xbf16> to vector<4x4xbf16>
      %cst_81 = arith.constant dense<0.000000e+00> : vector<16x4xf32>
      %79 = tpu.matmul %72, %78, %cst_81 {dimension_numbers = #tpu.dot_dimension_numbers<[1], [0], [0], [1], [0, 0, 1, 1], [], []>} : vector<16x4xbf16>, vector<4x4xbf16>, vector<16x4xf32> -> vector<16x4xf32>
      %80 = arith.addf %76, %79 : vector<16x4xf32>
      %c1_i32_82 = arith.constant 1 : i32
      %81 = arith.addi %arg10, %c1_i32_82 : i32
      %c0_83 = arith.constant 0 : index
      %82 = arith.index_cast %81 : i32 to index
      %c1_84 = arith.constant 1 : index
      %c0_85 = arith.constant 0 : index
      %83 = vector.load %arg1[%c0_83, %82, %c1_84, %c0_85] : memref<1x18x18x4xf32, #tpu.memory_space<vmem>>, vector<1x1x16x4xf32>
      %84 = vector.shape_cast %83 : vector<1x1x16x4xf32> to vector<16x4xf32>
      %85 = arith.truncf %84 : vector<16x4xf32> to vector<16x4xbf16>
      %c1_i32_86 = arith.constant 1 : i32
      %86 = arith.addi %arg10, %c1_i32_86 : i32
      %c0_87 = arith.constant 0 : index
      %87 = arith.index_cast %86 : i32 to index
      %c1_88 = arith.constant 1 : index
      %c0_89 = arith.constant 0 : index
      %88 = vector.load %arg2[%c0_87, %87, %c1_88, %c0_89] : memref<1x18x18x4xf32, #tpu.memory_space<vmem>>, vector<1x1x16x4xf32>
      %89 = vector.shape_cast %88 : vector<1x1x16x4xf32> to vector<16x4xf32>
      %90 = arith.truncf %89 : vector<16x4xf32> to vector<16x4xbf16>
      %c1_90 = arith.constant 1 : index
      %c1_91 = arith.constant 1 : index
      %c0_92 = arith.constant 0 : index
      %c0_93 = arith.constant 0 : index
      %91 = vector.load %arg3[%c1_90, %c1_91, %c0_92, %c0_93] : memref<3x3x4x4xbf16, #tpu.memory_space<vmem>>, vector<1x1x4x4xbf16>
      %92 = vector.shape_cast %91 : vector<1x1x4x4xbf16> to vector<4x4xbf16>
      %cst_94 = arith.constant dense<0.000000e+00> : vector<16x4xf32>
      %93 = tpu.matmul %85, %92, %cst_94 {dimension_numbers = #tpu.dot_dimension_numbers<[1], [0], [0], [1], [0, 0, 1, 1], [], []>} : vector<16x4xbf16>, vector<4x4xbf16>, vector<16x4xf32> -> vector<16x4xf32>
      %94 = arith.addf %80, %93 : vector<16x4xf32>
      %c1_95 = arith.constant 1 : index
      %c1_96 = arith.constant 1 : index
      %c0_97 = arith.constant 0 : index
      %c0_98 = arith.constant 0 : index
      %95 = vector.load %arg4[%c1_95, %c1_96, %c0_97, %c0_98] : memref<3x3x4x4xbf16, #tpu.memory_space<vmem>>, vector<1x1x4x4xbf16>
      %96 = vector.shape_cast %95 : vector<1x1x4x4xbf16> to vector<4x4xbf16>
      %cst_99 = arith.constant dense<0.000000e+00> : vector<16x4xf32>
      %97 = tpu.matmul %90, %96, %cst_99 {dimension_numbers = #tpu.dot_dimension_numbers<[1], [0], [0], [1], [0, 0, 1, 1], [], []>} : vector<16x4xbf16>, vector<4x4xbf16>, vector<16x4xf32> -> vector<16x4xf32>
      %98 = arith.addf %94, %97 : vector<16x4xf32>
      %c1_i32_100 = arith.constant 1 : i32
      %99 = arith.addi %arg10, %c1_i32_100 : i32
      %c0_101 = arith.constant 0 : index
      %100 = arith.index_cast %99 : i32 to index
      %c2_102 = arith.constant 2 : index
      %c0_103 = arith.constant 0 : index
      %101 = vector.load %arg1[%c0_101, %100, %c2_102, %c0_103] : memref<1x18x18x4xf32, #tpu.memory_space<vmem>>, vector<1x1x16x4xf32>
      %102 = vector.shape_cast %101 : vector<1x1x16x4xf32> to vector<16x4xf32>
      %103 = arith.truncf %102 : vector<16x4xf32> to vector<16x4xbf16>
      %c1_i32_104 = arith.constant 1 : i32
      %104 = arith.addi %arg10, %c1_i32_104 : i32
      %c0_105 = arith.constant 0 : index
      %105 = arith.index_cast %104 : i32 to index
      %c2_106 = arith.constant 2 : index
      %c0_107 = arith.constant 0 : index
      %106 = vector.load %arg2[%c0_105, %105, %c2_106, %c0_107] : memref<1x18x18x4xf32, #tpu.memory_space<vmem>>, vector<1x1x16x4xf32>
      %107 = vector.shape_cast %106 : vector<1x1x16x4xf32> to vector<16x4xf32>
      %108 = arith.truncf %107 : vector<16x4xf32> to vector<16x4xbf16>
      %c1_108 = arith.constant 1 : index
      %c2_109 = arith.constant 2 : index
      %c0_110 = arith.constant 0 : index
      %c0_111 = arith.constant 0 : index
      %109 = vector.load %arg3[%c1_108, %c2_109, %c0_110, %c0_111] : memref<3x3x4x4xbf16, #tpu.memory_space<vmem>>, vector<1x1x4x4xbf16>
      %110 = vector.shape_cast %109 : vector<1x1x4x4xbf16> to vector<4x4xbf16>
      %cst_112 = arith.constant dense<0.000000e+00> : vector<16x4xf32>
      %111 = tpu.matmul %103, %110, %cst_112 {dimension_numbers = #tpu.dot_dimension_numbers<[1], [0], [0], [1], [0, 0, 1, 1], [], []>} : vector<16x4xbf16>, vector<4x4xbf16>, vector<16x4xf32> -> vector<16x4xf32>
      %112 = arith.addf %98, %111 : vector<16x4xf32>
      %c1_113 = arith.constant 1 : index
      %c2_114 = arith.constant 2 : index
      %c0_115 = arith.constant 0 : index
      %c0_116 = arith.constant 0 : index
      %113 = vector.load %arg4[%c1_113, %c2_114, %c0_115, %c0_116] : memref<3x3x4x4xbf16, #tpu.memory_space<vmem>>, vector<1x1x4x4xbf16>
      %114 = vector.shape_cast %113 : vector<1x1x4x4xbf16> to vector<4x4xbf16>
      %cst_117 = arith.constant dense<0.000000e+00> : vector<16x4xf32>
      %115 = tpu.matmul %108, %114, %cst_117 {dimension_numbers = #tpu.dot_dimension_numbers<[1], [0], [0], [1], [0, 0, 1, 1], [], []>} : vector<16x4xbf16>, vector<4x4xbf16>, vector<16x4xf32> -> vector<16x4xf32>
      %116 = arith.addf %112, %115 : vector<16x4xf32>
      %c2_i32 = arith.constant 2 : i32
      %117 = arith.addi %arg10, %c2_i32 : i32
      %c0_118 = arith.constant 0 : index
      %118 = arith.index_cast %117 : i32 to index
      %c0_119 = arith.constant 0 : index
      %c0_120 = arith.constant 0 : index
      %119 = vector.load %arg1[%c0_118, %118, %c0_119, %c0_120] : memref<1x18x18x4xf32, #tpu.memory_space<vmem>>, vector<1x1x16x4xf32>
      %120 = vector.shape_cast %119 : vector<1x1x16x4xf32> to vector<16x4xf32>
      %121 = arith.truncf %120 : vector<16x4xf32> to vector<16x4xbf16>
      %c2_i32_121 = arith.constant 2 : i32
      %122 = arith.addi %arg10, %c2_i32_121 : i32
      %c0_122 = arith.constant 0 : index
      %123 = arith.index_cast %122 : i32 to index
      %c0_123 = arith.constant 0 : index
      %c0_124 = arith.constant 0 : index
      %124 = vector.load %arg2[%c0_122, %123, %c0_123, %c0_124] : memref<1x18x18x4xf32, #tpu.memory_space<vmem>>, vector<1x1x16x4xf32>
      %125 = vector.shape_cast %124 : vector<1x1x16x4xf32> to vector<16x4xf32>
      %126 = arith.truncf %125 : vector<16x4xf32> to vector<16x4xbf16>
      %c2_125 = arith.constant 2 : index
      %c0_126 = arith.constant 0 : index
      %c0_127 = arith.constant 0 : index
      %c0_128 = arith.constant 0 : index
      %127 = vector.load %arg3[%c2_125, %c0_126, %c0_127, %c0_128] : memref<3x3x4x4xbf16, #tpu.memory_space<vmem>>, vector<1x1x4x4xbf16>
      %128 = vector.shape_cast %127 : vector<1x1x4x4xbf16> to vector<4x4xbf16>
      %cst_129 = arith.constant dense<0.000000e+00> : vector<16x4xf32>
      %129 = tpu.matmul %121, %128, %cst_129 {dimension_numbers = #tpu.dot_dimension_numbers<[1], [0], [0], [1], [0, 0, 1, 1], [], []>} : vector<16x4xbf16>, vector<4x4xbf16>, vector<16x4xf32> -> vector<16x4xf32>
      %130 = arith.addf %116, %129 : vector<16x4xf32>
      %c2_130 = arith.constant 2 : index
      %c0_131 = arith.constant 0 : index
      %c0_132 = arith.constant 0 : index
      %c0_133 = arith.constant 0 : index
      %131 = vector.load %arg4[%c2_130, %c0_131, %c0_132, %c0_133] : memref<3x3x4x4xbf16, #tpu.memory_space<vmem>>, vector<1x1x4x4xbf16>
      %132 = vector.shape_cast %131 : vector<1x1x4x4xbf16> to vector<4x4xbf16>
      %cst_134 = arith.constant dense<0.000000e+00> : vector<16x4xf32>
      %133 = tpu.matmul %126, %132, %cst_134 {dimension_numbers = #tpu.dot_dimension_numbers<[1], [0], [0], [1], [0, 0, 1, 1], [], []>} : vector<16x4xbf16>, vector<4x4xbf16>, vector<16x4xf32> -> vector<16x4xf32>
      %134 = arith.addf %130, %133 : vector<16x4xf32>
      %c2_i32_135 = arith.constant 2 : i32
      %135 = arith.addi %arg10, %c2_i32_135 : i32
      %c0_136 = arith.constant 0 : index
      %136 = arith.index_cast %135 : i32 to index
      %c1_137 = arith.constant 1 : index
      %c0_138 = arith.constant 0 : index
      %137 = vector.load %arg1[%c0_136, %136, %c1_137, %c0_138] : memref<1x18x18x4xf32, #tpu.memory_space<vmem>>, vector<1x1x16x4xf32>
      %138 = vector.shape_cast %137 : vector<1x1x16x4xf32> to vector<16x4xf32>
      %139 = arith.truncf %138 : vector<16x4xf32> to vector<16x4xbf16>
      %c2_i32_139 = arith.constant 2 : i32
      %140 = arith.addi %arg10, %c2_i32_139 : i32
      %c0_140 = arith.constant 0 : index
      %141 = arith.index_cast %140 : i32 to index
      %c1_141 = arith.constant 1 : index
      %c0_142 = arith.constant 0 : index
      %142 = vector.load %arg2[%c0_140, %141, %c1_141, %c0_142] : memref<1x18x18x4xf32, #tpu.memory_space<vmem>>, vector<1x1x16x4xf32>
      %143 = vector.shape_cast %142 : vector<1x1x16x4xf32> to vector<16x4xf32>
      %144 = arith.truncf %143 : vector<16x4xf32> to vector<16x4xbf16>
      %c2_143 = arith.constant 2 : index
      %c1_144 = arith.constant 1 : index
      %c0_145 = arith.constant 0 : index
      %c0_146 = arith.constant 0 : index
      %145 = vector.load %arg3[%c2_143, %c1_144, %c0_145, %c0_146] : memref<3x3x4x4xbf16, #tpu.memory_space<vmem>>, vector<1x1x4x4xbf16>
      %146 = vector.shape_cast %145 : vector<1x1x4x4xbf16> to vector<4x4xbf16>
      %cst_147 = arith.constant dense<0.000000e+00> : vector<16x4xf32>
      %147 = tpu.matmul %139, %146, %cst_147 {dimension_numbers = #tpu.dot_dimension_numbers<[1], [0], [0], [1], [0, 0, 1, 1], [], []>} : vector<16x4xbf16>, vector<4x4xbf16>, vector<16x4xf32> -> vector<16x4xf32>
      %148 = arith.addf %134, %147 : vector<16x4xf32>
      %c2_148 = arith.constant 2 : index
      %c1_149 = arith.constant 1 : index
      %c0_150 = arith.constant 0 : index
      %c0_151 = arith.constant 0 : index
      %149 = vector.load %arg4[%c2_148, %c1_149, %c0_150, %c0_151] : memref<3x3x4x4xbf16, #tpu.memory_space<vmem>>, vector<1x1x4x4xbf16>
      %150 = vector.shape_cast %149 : vector<1x1x4x4xbf16> to vector<4x4xbf16>
      %cst_152 = arith.constant dense<0.000000e+00> : vector<16x4xf32>
      %151 = tpu.matmul %144, %150, %cst_152 {dimension_numbers = #tpu.dot_dimension_numbers<[1], [0], [0], [1], [0, 0, 1, 1], [], []>} : vector<16x4xbf16>, vector<4x4xbf16>, vector<16x4xf32> -> vector<16x4xf32>
      %152 = arith.addf %148, %151 : vector<16x4xf32>
      %c2_i32_153 = arith.constant 2 : i32
      %153 = arith.addi %arg10, %c2_i32_153 : i32
      %c0_154 = arith.constant 0 : index
      %154 = arith.index_cast %153 : i32 to index
      %c2_155 = arith.constant 2 : index
      %c0_156 = arith.constant 0 : index
      %155 = vector.load %arg1[%c0_154, %154, %c2_155, %c0_156] : memref<1x18x18x4xf32, #tpu.memory_space<vmem>>, vector<1x1x16x4xf32>
      %156 = vector.shape_cast %155 : vector<1x1x16x4xf32> to vector<16x4xf32>
      %157 = arith.truncf %156 : vector<16x4xf32> to vector<16x4xbf16>
      %c2_i32_157 = arith.constant 2 : i32
      %158 = arith.addi %arg10, %c2_i32_157 : i32
      %c0_158 = arith.constant 0 : index
      %159 = arith.index_cast %158 : i32 to index
      %c2_159 = arith.constant 2 : index
      %c0_160 = arith.constant 0 : index
      %160 = vector.load %arg2[%c0_158, %159, %c2_159, %c0_160] : memref<1x18x18x4xf32, #tpu.memory_space<vmem>>, vector<1x1x16x4xf32>
      %161 = vector.shape_cast %160 : vector<1x1x16x4xf32> to vector<16x4xf32>
      %162 = arith.truncf %161 : vector<16x4xf32> to vector<16x4xbf16>
      %c2_161 = arith.constant 2 : index
      %c2_162 = arith.constant 2 : index
      %c0_163 = arith.constant 0 : index
      %c0_164 = arith.constant 0 : index
      %163 = vector.load %arg3[%c2_161, %c2_162, %c0_163, %c0_164] : memref<3x3x4x4xbf16, #tpu.memory_space<vmem>>, vector<1x1x4x4xbf16>
      %164 = vector.shape_cast %163 : vector<1x1x4x4xbf16> to vector<4x4xbf16>
      %cst_165 = arith.constant dense<0.000000e+00> : vector<16x4xf32>
      %165 = tpu.matmul %157, %164, %cst_165 {dimension_numbers = #tpu.dot_dimension_numbers<[1], [0], [0], [1], [0, 0, 1, 1], [], []>} : vector<16x4xbf16>, vector<4x4xbf16>, vector<16x4xf32> -> vector<16x4xf32>
      %166 = arith.addf %152, %165 : vector<16x4xf32>
      %c2_166 = arith.constant 2 : index
      %c2_167 = arith.constant 2 : index
      %c0_168 = arith.constant 0 : index
      %c0_169 = arith.constant 0 : index
      %167 = vector.load %arg4[%c2_166, %c2_167, %c0_168, %c0_169] : memref<3x3x4x4xbf16, #tpu.memory_space<vmem>>, vector<1x1x4x4xbf16>
      %168 = vector.shape_cast %167 : vector<1x1x4x4xbf16> to vector<4x4xbf16>
      %cst_170 = arith.constant dense<0.000000e+00> : vector<16x4xf32>
      %169 = tpu.matmul %162, %168, %cst_170 {dimension_numbers = #tpu.dot_dimension_numbers<[1], [0], [0], [1], [0, 0, 1, 1], [], []>} : vector<16x4xbf16>, vector<4x4xbf16>, vector<16x4xf32> -> vector<16x4xf32>
      %170 = arith.addf %166, %169 : vector<16x4xf32>
      %171 = vector.shape_cast %1 : vector<4xf32> to vector<1x4xf32>
      %172 = vector.broadcast %171 : vector<1x4xf32> to vector<16x4xf32>
      %173 = arith.addf %170, %172 : vector<16x4xf32>
      %cst_171 = arith.constant 0.000000e+00 : f32
      %174 = vector.broadcast %cst_171 : f32 to vector<16x4xf32>
      %175 = arith.maximumf %173, %174 : vector<16x4xf32>
      %c1_i32_172 = arith.constant 1 : i32
      %176 = arith.addi %arg10, %c1_i32_172 : i32
      %177 = arith.index_cast %176 : i32 to index
      %c1_173 = arith.constant 1 : index
      %c0_174 = arith.constant 0 : index
      %178 = vector.load %arg9[%177, %c1_173, %c0_174] : memref<18x18x4xf32, #tpu.memory_space<vmem>>, vector<1x16x4xf32>
      %179 = vector.shape_cast %178 : vector<1x16x4xf32> to vector<16x4xf32>
      %180 = vector.shape_cast %175 : vector<16x4xf32> to vector<1x16x4xf32>
      tpu.vector_store %arg9[%177, %c1_173, %c0_174], %180 {strides = array<i32>} : memref<18x18x4xf32, #tpu.memory_space<vmem>>, vector<1x16x4xf32>,
    }
    %c16_i32_6 = arith.constant 16 : i32
    %c0_i32_7 = arith.constant 0 : i32
    %c16_i32_8 = arith.constant 16 : i32
    %7 = arith.addi %c0_i32_7, %c16_i32_8 : i32
    %c1_i32_9 = arith.constant 1 : i32
    scf.for %arg10 = %c0_i32_7 to %7 step %c1_i32_9  : i32 {
      %cst_11 = arith.constant 0.000000e+00 : f32
      %8 = vector.broadcast %cst_11 : f32 to vector<16x4xf32>
      %c0_i32_12 = arith.constant 0 : i32
      %9 = arith.addi %arg10, %c0_i32_12 : i32
      %10 = arith.index_cast %9 : i32 to index
      %c0_13 = arith.constant 0 : index
      %c0_14 = arith.constant 0 : index
      %11 = vector.load %arg9[%10, %c0_13, %c0_14] : memref<18x18x4xf32, #tpu.memory_space<vmem>>, vector<1x16x4xf32>
      %12 = vector.shape_cast %11 : vector<1x16x4xf32> to vector<16x4xf32>
      %13 = arith.truncf %12 : vector<16x4xf32> to vector<16x4xbf16>
      %c0_15 = arith.constant 0 : index
      %c0_16 = arith.constant 0 : index
      %c0_17 = arith.constant 0 : index
      %c0_18 = arith.constant 0 : index
      %14 = vector.load %arg6[%c0_15, %c0_16, %c0_17, %c0_18] : memref<3x3x4x4xbf16, #tpu.memory_space<vmem>>, vector<1x1x4x4xbf16>
      %15 = vector.shape_cast %14 : vector<1x1x4x4xbf16> to vector<4x4xbf16>
      %cst_19 = arith.constant dense<0.000000e+00> : vector<16x4xf32>
      %16 = tpu.matmul %13, %15, %cst_19 {dimension_numbers = #tpu.dot_dimension_numbers<[1], [0], [0], [1], [0, 0, 1, 1], [], []>} : vector<16x4xbf16>, vector<4x4xbf16>, vector<16x4xf32> -> vector<16x4xf32>
      %17 = arith.addf %8, %16 : vector<16x4xf32>
      %c0_i32_20 = arith.constant 0 : i32
      %18 = arith.addi %arg10, %c0_i32_20 : i32
      %19 = arith.index_cast %18 : i32 to index
      %c1 = arith.constant 1 : index
      %c0_21 = arith.constant 0 : index
      %20 = vector.load %arg9[%19, %c1, %c0_21] : memref<18x18x4xf32, #tpu.memory_space<vmem>>, vector<1x16x4xf32>
      %21 = vector.shape_cast %20 : vector<1x16x4xf32> to vector<16x4xf32>
      %22 = arith.truncf %21 : vector<16x4xf32> to vector<16x4xbf16>
      %c0_22 = arith.constant 0 : index
      %c1_23 = arith.constant 1 : index
      %c0_24 = arith.constant 0 : index
      %c0_25 = arith.constant 0 : index
      %23 = vector.load %arg6[%c0_22, %c1_23, %c0_24, %c0_25] : memref<3x3x4x4xbf16, #tpu.memory_space<vmem>>, vector<1x1x4x4xbf16>
      %24 = vector.shape_cast %23 : vector<1x1x4x4xbf16> to vector<4x4xbf16>
      %cst_26 = arith.constant dense<0.000000e+00> : vector<16x4xf32>
      %25 = tpu.matmul %22, %24, %cst_26 {dimension_numbers = #tpu.dot_dimension_numbers<[1], [0], [0], [1], [0, 0, 1, 1], [], []>} : vector<16x4xbf16>, vector<4x4xbf16>, vector<16x4xf32> -> vector<16x4xf32>
      %26 = arith.addf %17, %25 : vector<16x4xf32>
      %c0_i32_27 = arith.constant 0 : i32
      %27 = arith.addi %arg10, %c0_i32_27 : i32
      %28 = arith.index_cast %27 : i32 to index
      %c2 = arith.constant 2 : index
      %c0_28 = arith.constant 0 : index
      %29 = vector.load %arg9[%28, %c2, %c0_28] : memref<18x18x4xf32, #tpu.memory_space<vmem>>, vector<1x16x4xf32>
      %30 = vector.shape_cast %29 : vector<1x16x4xf32> to vector<16x4xf32>
      %31 = arith.truncf %30 : vector<16x4xf32> to vector<16x4xbf16>
      %c0_29 = arith.constant 0 : index
      %c2_30 = arith.constant 2 : index
      %c0_31 = arith.constant 0 : index
      %c0_32 = arith.constant 0 : index
      %32 = vector.load %arg6[%c0_29, %c2_30, %c0_31, %c0_32] : memref<3x3x4x4xbf16, #tpu.memory_space<vmem>>, vector<1x1x4x4xbf16>
      %33 = vector.shape_cast %32 : vector<1x1x4x4xbf16> to vector<4x4xbf16>
      %cst_33 = arith.constant dense<0.000000e+00> : vector<16x4xf32>
      %34 = tpu.matmul %31, %33, %cst_33 {dimension_numbers = #tpu.dot_dimension_numbers<[1], [0], [0], [1], [0, 0, 1, 1], [], []>} : vector<16x4xbf16>, vector<4x4xbf16>, vector<16x4xf32> -> vector<16x4xf32>
      %35 = arith.addf %26, %34 : vector<16x4xf32>
      %c1_i32_34 = arith.constant 1 : i32
      %36 = arith.addi %arg10, %c1_i32_34 : i32
      %37 = arith.index_cast %36 : i32 to index
      %c0_35 = arith.constant 0 : index
      %c0_36 = arith.constant 0 : index
      %38 = vector.load %arg9[%37, %c0_35, %c0_36] : memref<18x18x4xf32, #tpu.memory_space<vmem>>, vector<1x16x4xf32>
      %39 = vector.shape_cast %38 : vector<1x16x4xf32> to vector<16x4xf32>
      %40 = arith.truncf %39 : vector<16x4xf32> to vector<16x4xbf16>
      %c1_37 = arith.constant 1 : index
      %c0_38 = arith.constant 0 : index
      %c0_39 = arith.constant 0 : index
      %c0_40 = arith.constant 0 : index
      %41 = vector.load %arg6[%c1_37, %c0_38, %c0_39, %c0_40] : memref<3x3x4x4xbf16, #tpu.memory_space<vmem>>, vector<1x1x4x4xbf16>
      %42 = vector.shape_cast %41 : vector<1x1x4x4xbf16> to vector<4x4xbf16>
      %cst_41 = arith.constant dense<0.000000e+00> : vector<16x4xf32>
      %43 = tpu.matmul %40, %42, %cst_41 {dimension_numbers = #tpu.dot_dimension_numbers<[1], [0], [0], [1], [0, 0, 1, 1], [], []>} : vector<16x4xbf16>, vector<4x4xbf16>, vector<16x4xf32> -> vector<16x4xf32>
      %44 = arith.addf %35, %43 : vector<16x4xf32>
      %c1_i32_42 = arith.constant 1 : i32
      %45 = arith.addi %arg10, %c1_i32_42 : i32
      %46 = arith.index_cast %45 : i32 to index
      %c1_43 = arith.constant 1 : index
      %c0_44 = arith.constant 0 : index
      %47 = vector.load %arg9[%46, %c1_43, %c0_44] : memref<18x18x4xf32, #tpu.memory_space<vmem>>, vector<1x16x4xf32>
      %48 = vector.shape_cast %47 : vector<1x16x4xf32> to vector<16x4xf32>
      %49 = arith.truncf %48 : vector<16x4xf32> to vector<16x4xbf16>
      %c1_45 = arith.constant 1 : index
      %c1_46 = arith.constant 1 : index
      %c0_47 = arith.constant 0 : index
      %c0_48 = arith.constant 0 : index
      %50 = vector.load %arg6[%c1_45, %c1_46, %c0_47, %c0_48] : memref<3x3x4x4xbf16, #tpu.memory_space<vmem>>, vector<1x1x4x4xbf16>
      %51 = vector.shape_cast %50 : vector<1x1x4x4xbf16> to vector<4x4xbf16>
      %cst_49 = arith.constant dense<0.000000e+00> : vector<16x4xf32>
      %52 = tpu.matmul %49, %51, %cst_49 {dimension_numbers = #tpu.dot_dimension_numbers<[1], [0], [0], [1], [0, 0, 1, 1], [], []>} : vector<16x4xbf16>, vector<4x4xbf16>, vector<16x4xf32> -> vector<16x4xf32>
      %53 = arith.addf %44, %52 : vector<16x4xf32>
      %c1_i32_50 = arith.constant 1 : i32
      %54 = arith.addi %arg10, %c1_i32_50 : i32
      %55 = arith.index_cast %54 : i32 to index
      %c2_51 = arith.constant 2 : index
      %c0_52 = arith.constant 0 : index
      %56 = vector.load %arg9[%55, %c2_51, %c0_52] : memref<18x18x4xf32, #tpu.memory_space<vmem>>, vector<1x16x4xf32>
      %57 = vector.shape_cast %56 : vector<1x16x4xf32> to vector<16x4xf32>
      %58 = arith.truncf %57 : vector<16x4xf32> to vector<16x4xbf16>
      %c1_53 = arith.constant 1 : index
      %c2_54 = arith.constant 2 : index
      %c0_55 = arith.constant 0 : index
      %c0_56 = arith.constant 0 : index
      %59 = vector.load %arg6[%c1_53, %c2_54, %c0_55, %c0_56] : memref<3x3x4x4xbf16, #tpu.memory_space<vmem>>, vector<1x1x4x4xbf16>
      %60 = vector.shape_cast %59 : vector<1x1x4x4xbf16> to vector<4x4xbf16>
      %cst_57 = arith.constant dense<0.000000e+00> : vector<16x4xf32>
      %61 = tpu.matmul %58, %60, %cst_57 {dimension_numbers = #tpu.dot_dimension_numbers<[1], [0], [0], [1], [0, 0, 1, 1], [], []>} : vector<16x4xbf16>, vector<4x4xbf16>, vector<16x4xf32> -> vector<16x4xf32>
      %62 = arith.addf %53, %61 : vector<16x4xf32>
      %c2_i32 = arith.constant 2 : i32
      %63 = arith.addi %arg10, %c2_i32 : i32
      %64 = arith.index_cast %63 : i32 to index
      %c0_58 = arith.constant 0 : index
      %c0_59 = arith.constant 0 : index
      %65 = vector.load %arg9[%64, %c0_58, %c0_59] : memref<18x18x4xf32, #tpu.memory_space<vmem>>, vector<1x16x4xf32>
      %66 = vector.shape_cast %65 : vector<1x16x4xf32> to vector<16x4xf32>
      %67 = arith.truncf %66 : vector<16x4xf32> to vector<16x4xbf16>
      %c2_60 = arith.constant 2 : index
      %c0_61 = arith.constant 0 : index
      %c0_62 = arith.constant 0 : index
      %c0_63 = arith.constant 0 : index
      %68 = vector.load %arg6[%c2_60, %c0_61, %c0_62, %c0_63] : memref<3x3x4x4xbf16, #tpu.memory_space<vmem>>, vector<1x1x4x4xbf16>
      %69 = vector.shape_cast %68 : vector<1x1x4x4xbf16> to vector<4x4xbf16>
      %cst_64 = arith.constant dense<0.000000e+00> : vector<16x4xf32>
      %70 = tpu.matmul %67, %69, %cst_64 {dimension_numbers = #tpu.dot_dimension_numbers<[1], [0], [0], [1], [0, 0, 1, 1], [], []>} : vector<16x4xbf16>, vector<4x4xbf16>, vector<16x4xf32> -> vector<16x4xf32>
      %71 = arith.addf %62, %70 : vector<16x4xf32>
      %c2_i32_65 = arith.constant 2 : i32
      %72 = arith.addi %arg10, %c2_i32_65 : i32
      %73 = arith.index_cast %72 : i32 to index
      %c1_66 = arith.constant 1 : index
      %c0_67 = arith.constant 0 : index
      %74 = vector.load %arg9[%73, %c1_66, %c0_67] : memref<18x18x4xf32, #tpu.memory_space<vmem>>, vector<1x16x4xf32>
      %75 = vector.shape_cast %74 : vector<1x16x4xf32> to vector<16x4xf32>
      %76 = arith.truncf %75 : vector<16x4xf32> to vector<16x4xbf16>
      %c2_68 = arith.constant 2 : index
      %c1_69 = arith.constant 1 : index
      %c0_70 = arith.constant 0 : index
      %c0_71 = arith.constant 0 : index
      %77 = vector.load %arg6[%c2_68, %c1_69, %c0_70, %c0_71] : memref<3x3x4x4xbf16, #tpu.memory_space<vmem>>, vector<1x1x4x4xbf16>
      %78 = vector.shape_cast %77 : vector<1x1x4x4xbf16> to vector<4x4xbf16>
      %cst_72 = arith.constant dense<0.000000e+00> : vector<16x4xf32>
      %79 = tpu.matmul %76, %78, %cst_72 {dimension_numbers = #tpu.dot_dimension_numbers<[1], [0], [0], [1], [0, 0, 1, 1], [], []>} : vector<16x4xbf16>, vector<4x4xbf16>, vector<16x4xf32> -> vector<16x4xf32>
      %80 = arith.addf %71, %79 : vector<16x4xf32>
      %c2_i32_73 = arith.constant 2 : i32
      %81 = arith.addi %arg10, %c2_i32_73 : i32
      %82 = arith.index_cast %81 : i32 to index
      %c2_74 = arith.constant 2 : index
      %c0_75 = arith.constant 0 : index
      %83 = vector.load %arg9[%82, %c2_74, %c0_75] : memref<18x18x4xf32, #tpu.memory_space<vmem>>, vector<1x16x4xf32>
      %84 = vector.shape_cast %83 : vector<1x16x4xf32> to vector<16x4xf32>
      %85 = arith.truncf %84 : vector<16x4xf32> to vector<16x4xbf16>
      %c2_76 = arith.constant 2 : index
      %c2_77 = arith.constant 2 : index
      %c0_78 = arith.constant 0 : index
      %c0_79 = arith.constant 0 : index
      %86 = vector.load %arg6[%c2_76, %c2_77, %c0_78, %c0_79] : memref<3x3x4x4xbf16, #tpu.memory_space<vmem>>, vector<1x1x4x4xbf16>
      %87 = vector.shape_cast %86 : vector<1x1x4x4xbf16> to vector<4x4xbf16>
      %cst_80 = arith.constant dense<0.000000e+00> : vector<16x4xf32>
      %88 = tpu.matmul %85, %87, %cst_80 {dimension_numbers = #tpu.dot_dimension_numbers<[1], [0], [0], [1], [0, 0, 1, 1], [], []>} : vector<16x4xbf16>, vector<4x4xbf16>, vector<16x4xf32> -> vector<16x4xf32>
      %89 = arith.addf %80, %88 : vector<16x4xf32>
      %90 = vector.shape_cast %3 : vector<4xf32> to vector<1x4xf32>
      %91 = vector.broadcast %90 : vector<1x4xf32> to vector<16x4xf32>
      %92 = arith.addf %89, %91 : vector<16x4xf32>
      %cst_81 = arith.constant 0.000000e+00 : f32
      %93 = vector.broadcast %cst_81 : f32 to vector<16x4xf32>
      %94 = arith.maximumf %92, %93 : vector<16x4xf32>
      %c0_82 = arith.constant 0 : index
      %95 = arith.index_cast %arg10 : i32 to index
      %c0_83 = arith.constant 0 : index
      %c0_84 = arith.constant 0 : index
      %96 = vector.load %arg8[%c0_82, %95, %c0_83, %c0_84] : memref<1x16x16x4xf32, #tpu.memory_space<vmem>>, vector<1x1x16x4xf32>
      %97 = vector.shape_cast %96 : vector<1x1x16x4xf32> to vector<16x4xf32>
      %98 = vector.shape_cast %94 : vector<16x4xf32> to vector<1x1x16x4xf32>
      tpu.vector_store %arg8[%c0_82, %95, %c0_83, %c0_84], %98 {strides = array<i32>} : memref<1x16x16x4xf32, #tpu.memory_space<vmem>>, vector<1x1x16x4xf32>,
    }
    %c16_i32_10 = arith.constant 16 : i32
    return
  }
  func.func @transform_0(%arg0: i32) -> (i32, i32, i32, i32) {
    %c0_i32 = arith.constant 0 : i32
    %c0_i32_0 = arith.constant 0 : i32
    %c0_i32_1 = arith.constant 0 : i32
    %c0_i32_2 = arith.constant 0 : i32
    return %arg0, %c0_i32, %c0_i32_0, %c0_i32_1 : i32, i32, i32, i32
  }
  func.func @transform_1(%arg0: i32) -> (i32, i32, i32, i32) {
    %c0_i32 = arith.constant 0 : i32
    %c0_i32_0 = arith.constant 0 : i32
    %c0_i32_1 = arith.constant 0 : i32
    %c0_i32_2 = arith.constant 0 : i32
    return %arg0, %c0_i32, %c0_i32_0, %c0_i32_1 : i32, i32, i32, i32
  }
  func.func @transform_2(%arg0: i32) -> (i32, i32, i32, i32) {
    %c0_i32 = arith.constant 0 : i32
    %c0_i32_0 = arith.constant 0 : i32
    %c0_i32_1 = arith.constant 0 : i32
    %c0_i32_2 = arith.constant 0 : i32
    %c0_i32_3 = arith.constant 0 : i32
    return %c0_i32, %c0_i32_0, %c0_i32_1, %c0_i32_2 : i32, i32, i32, i32
  }
  func.func @transform_3(%arg0: i32) -> (i32, i32, i32, i32) {
    %c0_i32 = arith.constant 0 : i32
    %c0_i32_0 = arith.constant 0 : i32
    %c0_i32_1 = arith.constant 0 : i32
    %c0_i32_2 = arith.constant 0 : i32
    %c0_i32_3 = arith.constant 0 : i32
    return %c0_i32, %c0_i32_0, %c0_i32_1, %c0_i32_2 : i32, i32, i32, i32
  }
  func.func @transform_4(%arg0: i32) -> (i32, i32) {
    %c0_i32 = arith.constant 0 : i32
    %c0_i32_0 = arith.constant 0 : i32
    %c0_i32_1 = arith.constant 0 : i32
    return %c0_i32, %c0_i32_0 : i32, i32
  }
  func.func @transform_5(%arg0: i32) -> (i32, i32, i32, i32) {
    %c0_i32 = arith.constant 0 : i32
    %c0_i32_0 = arith.constant 0 : i32
    %c0_i32_1 = arith.constant 0 : i32
    %c0_i32_2 = arith.constant 0 : i32
    %c0_i32_3 = arith.constant 0 : i32
    return %c0_i32, %c0_i32_0, %c0_i32_1, %c0_i32_2 : i32, i32, i32, i32
  }
  func.func @transform_6(%arg0: i32) -> (i32, i32) {
    %c0_i32 = arith.constant 0 : i32
    %c0_i32_0 = arith.constant 0 : i32
    %c0_i32_1 = arith.constant 0 : i32
    return %c0_i32, %c0_i32_0 : i32, i32
  }
  func.func @transform_7(%arg0: i32) -> (i32, i32, i32, i32) {
    %c0_i32 = arith.constant 0 : i32
    %c0_i32_0 = arith.constant 0 : i32
    %c0_i32_1 = arith.constant 0 : i32
    %c0_i32_2 = arith.constant 0 : i32
    return %arg0, %c0_i32, %c0_i32_0, %c0_i32_1 : i32, i32, i32, i32
  }
}

</mosaic_0001>

<llo_original>
// kernel: upblock2d_forward.2
$region0: #{upblock2d_forward.2}
  #allocation0 [shape = 'u32[]', space=smem, size = 0x4, offset = 0x4, fixed_abs, tag = 'smem constant byte address 0x4 - core index']
  #allocation1 [shape = 'u32[144,128]{1,0:T(1,128)}', space=vmem, size = 0x12000, scoped, tag = 'internal scratch']
  %s0 = inlined_call_operand.vmem [shape: f32[2,9,9,4], index: 0, kind: input, shape index: {}]
  %s1 = inlined_call_operand.vmem [shape: bf16[3,3,4,4], index: 1, kind: input, shape index: {}]
  %s2 = inlined_call_operand.vmem [shape: f32[1,4], index: 2, kind: input, shape index: {}]
  %s3 = inlined_call_operand.vmem [shape: f32[8,8,8,4], index: 3, kind: output, shape index: {}]
  %s4 = sld [smem:[#allocation0]]
  $region52: #{upblock2d_forward.2} parent=0
    _
  %s6 = ssub.s32 1, %s4
  %s7 = scalar_select 0, %s6, %s4
  loop: start=0, step=1, limit=4
  $region2: #{upblock2d_forward.2} parent=0 // loop_pre_header
    _
  $region3: #{upblock2d_forward.2} parent=0 // loop_header
    %s9 = sphi 0, %s13
    %p10 = scmp.ge.s32.totalorder %s9, 4
    %s19 = sphi 0, %s21
    %s22 = sphi 0, %s19
    %s23 = sphi 0, %s22
    %s39 = sphi 0, %s23
    %s43 = sphi 0, %s43
    %s45 = sphi 0, %s43
    %s46 = sphi 0, %s45
    %s60 = sphi 0, %s46
    %s64 = sphi 0, %s64
    %s66 = sphi 0, %s64
    %s67 = sphi 0, %s66
    %s81 = sphi 0, %s67
    %s87 = sphi 0, %s89
    %s90 = sphi 0, %s87
    %s91 = sphi 0, %s90
    %s107 = sphi 0, %s91
  $region4: #{upblock2d_forward.2} parent=0 // loop_header_branch
    %12 = sbr.rel (%p10) target = $region8
  $region5: #{upblock2d_forward.2} parent=0 // loop_body
    %s14 = ssub.s32 %s9, 1
    %s15 = ssub.s32 %s9, 2
    %s16 = sadd.s32 %s9, 1
    %s17 = ssub.s32 %s9, %s16
    %p18 = scmp.eq.s32.totalorder %s17, 0
    %s20 = sadd.s32 %s19, 1
    %s21 = scalar_select %p18, %s19, %s20
    %p24 = pneg %p18
    %p25 = scmp.eq.s32.totalorder %s9, 1
    %p26 = por %p24, %p25
    %p27 = scmp.ne.s32.totalorder %s19, %s22
    %p28 = scmp.eq.s32.totalorder %s9, 0
    %p29 = por %p27, %p28
    %p30 = scmp.ne.s32.totalorder %s19, %s22
    %p31 = scmp.eq.s32.totalorder %s14, 1
    %p32 = por %p30, %p31
    %p33 = scmp.ne.s32.totalorder %s22, %s23
    %p34 = scmp.eq.s32.totalorder %s14, 0
    %p35 = por %p33, %p34
    %p36 = scmp.ne.s32.totalorder %s22, %s23
    %p37 = scmp.eq.s32.totalorder %s15, 1
    %p38 = por %p36, %p37
    %p40 = scmp.ne.s32.totalorder %s23, %s39
    %p41 = scmp.eq.s32.totalorder %s15, 0
    %p42 = por %p40, %p41
    %s44 = sadd.s32 %s43, 1
    %p47 = scmp.eq.s32.totalorder %s9, 1
    %p48 = scmp.ne.s32.totalorder %s43, %s45
    %p49 = scmp.eq.s32.totalorder %s9, 0
    %p50 = por %p48, %p49
    %p51 = scmp.ne.s32.totalorder %s43, %s45
    %p52 = scmp.eq.s32.totalorder %s14, 1
    %p53 = por %p51, %p52
    %p54 = scmp.ne.s32.totalorder %s45, %s46
    %p55 = scmp.eq.s32.totalorder %s14, 0
    %p56 = por %p54, %p55
    %p57 = scmp.ne.s32.totalorder %s45, %s46
    %p58 = scmp.eq.s32.totalorder %s15, 1
    %p59 = por %p57, %p58
    %p61 = scmp.ne.s32.totalorder %s46, %s60
    %p62 = scmp.eq.s32.totalorder %s15, 0
    %p63 = por %p61, %p62
    %s65 = sadd.s32 %s64, 1
    %p68 = scmp.eq.s32.totalorder %s9, 1
    %p69 = scmp.ne.s32.totalorder %s64, %s66
    %p70 = scmp.eq.s32.totalorder %s9, 0
    %p71 = por %p69, %p70
    %p72 = scmp.ne.s32.totalorder %s64, %s66
    %p73 = scmp.eq.s32.totalorder %s14, 1
    %p74 = por %p72, %p73
    %p75 = scmp.ne.s32.totalorder %s66, %s67
    %p76 = scmp.eq.s32.totalorder %s14, 0
    %p77 = por %p75, %p76
    %p78 = scmp.ne.s32.totalorder %s66, %s67
    %p79 = scmp.eq.s32.totalorder %s15, 1
    %p80 = por %p78, %p79
    %p82 = scmp.ne.s32.totalorder %s67, %s81
    %p83 = scmp.eq.s32.totalorder %s15, 0
    %p84 = por %p82, %p83
    %s85 = ssub.s32 %s9, %s16
    %p86 = scmp.eq.s32.totalorder %s85, 0
    %s88 = sadd.s32 %s87, 1
    %s89 = scalar_select %p86, %s87, %s88
    %p92 = pneg %p86
    %p93 = scmp.eq.s32.totalorder %s9, 1
    %p94 = por %p92, %p93
    %p95 = scmp.ne.s32.totalorder %s87, %s90
    %p96 = scmp.eq.s32.totalorder %s9, 0
    %p97 = por %p95, %p96
    %p98 = scmp.ne.s32.totalorder %s87, %s90
    %p99 = scmp.eq.s32.totalorder %s14, 1
    %p100 = por %p98, %p99
    %p101 = scmp.ne.s32.totalorder %s90, %s91
    %p102 = scmp.eq.s32.totalorder %s14, 0
    %p103 = por %p101, %p102
    %p104 = scmp.ne.s32.totalorder %s90, %s91
    %p105 = scmp.eq.s32.totalorder %s15, 1
    %p106 = por %p104, %p105
    %p108 = scmp.ne.s32.totalorder %s91, %s107
    %p109 = scmp.eq.s32.totalorder %s15, 0
    %p110 = por %p108, %p109
    %p111 = scmp.le.s32.totalorder 1, %s9
    %p112 = scmp.lt.s32.totalorder %s9, 3
    %p113 = pnand %p111, %p112
    %p114 = pneg %p113
    // Predicated region
    $region9: #{upblock2d_forward.2} parent=5 // pred_check
      _
    $region10: #{upblock2d_forward.2} parent=5 // pred_check_branch
      %116 = sbr.rel (%p113) target = $region12
    $region11: #{upblock2d_forward.2} parent=5 // pred_region
      %s117 = ssub.s32 %s9, 1
      // Predicated region
      $region13: #{upblock2d_forward.2} parent=11 // pred_check
        %p118 = pneg %p56
      $region14: #{upblock2d_forward.2} parent=11 // pred_check_branch
        %120 = sbr.rel (%p118) target = $region16
      $region15: #{upblock2d_forward.2} parent=11 // pred_region
        _
      $region16: #{upblock2d_forward.2} parent=11 // pred_fallthru
        _
      // Predicated region
      $region17: #{upblock2d_forward.2} parent=11 // pred_check
        %p121 = pneg %p77
      $region18: #{upblock2d_forward.2} parent=11 // pred_check_branch
        %123 = sbr.rel (%p121) target = $region20
      $region19: #{upblock2d_forward.2} parent=11 // pred_region
        _
      $region20: #{upblock2d_forward.2} parent=11 // pred_fallthru
        _
    $region12: #{upblock2d_forward.2} parent=5 // pred_fallthru
      _
    %p124 = scmp.lt.s32.totalorder %s9, 2
    // Predicated region
    $region21: #{upblock2d_forward.2} parent=5 // pred_check
      %p125 = pneg %p124
    $region22: #{upblock2d_forward.2} parent=5 // pred_check_branch
      %127 = sbr.rel (%p125) target = $region24
    $region23: #{upblock2d_forward.2} parent=5 // pred_region
      // Predicated region
      $region25: #{upblock2d_forward.2} parent=23 // pred_check
        %p128 = pneg %p29
      $region26: #{upblock2d_forward.2} parent=23 // pred_check_branch
        %130 = sbr.rel (%p128) target = $region28
      $region27: #{upblock2d_forward.2} parent=23 // pred_region
        %p131 = scmp.lt.s32.totalorder %s9, 1
        %s132 = scalar_select %p131, %s9, 1
        %s133 = smul.addr %s132, 18
        %s134 = smul.addr %s133, 8
        %s135 = scalar_lea.vmem %s0, %s134
      $region28: #{upblock2d_forward.2} parent=23 // pred_fallthru
        _
    $region24: #{upblock2d_forward.2} parent=5 // pred_fallthru
      _
    %p136 = scmp.le.s32.totalorder 1, %s9
    %p137 = scmp.lt.s32.totalorder %s9, 3
    %p138 = pnand %p136, %p137
    %p139 = pneg %p138
    // Predicated region
    $region29: #{upblock2d_forward.2} parent=5 // pred_check
      _
    $region30: #{upblock2d_forward.2} parent=5 // pred_check_branch
      %141 = sbr.rel (%p138) target = $region32
    $region31: #{upblock2d_forward.2} parent=5 // pred_region
      %s142 = ssub.s32 %s9, 1
      %p143 = scmp.lt.s32.totalorder %s14, 1
      %s144 = scalar_select %p143, %s14, 1
      %s145 = smul.addr %s144, 18
      %s146 = smul.addr %s145, 8
      %s147 = scalar_lea.vmem %s0, %s146
      %p148 = pneg %p35
      %p149 = pneg %p32
      %p150 = pneg %p56
      %p151 = pneg %p53
      %p152 = pneg %p77
      %p153 = pneg %p74
      %p154 = pneg %p103
      %p155 = pneg %p100
      %s156 = smul.u32 4, %s14
      %p157 = scmp.lt.s32.totalorder %s156, 7
      %s158 = scalar_select %p157, %s156, 7
      %s159 = smul.addr %s158, 8
      %s160 = smul.addr %s159, 8
      %s161 = scalar_lea.vmem %s3, %s160
      %p162 = scmp.lt.s32.totalorder %s14, 1
      %s163 = scalar_select %p162, %s14, 1
      %s164 = smul.addr %s163, 18
      %s165 = smul.addr %s164, 8
      %s166 = scalar_lea.vmem %s0, %s165
      %s167 = smul.u32 4, %s14
      %p168 = scmp.lt.s32.totalorder %s167, 7
      %s169 = scalar_select %p168, %s167, 7
      %s170 = smul.addr %s169, 8
      %s171 = smul.addr %s170, 8
      %s172 = scalar_lea.vmem %s3, %s171
      %s173 = smul.u32 4, %s14
      %v175 = vld [vmem:[%s2] sm:$0x1]
      loop: start=0, step=1, limit=8
      $region33: #{upblock2d_forward.2} parent=31 // loop_pre_header
        _
      $region34: #{upblock2d_forward.2} parent=31 // loop_header
        %s177 = sphi 0, %s181
        %p178 = scmp.ge.s32.totalorder %s177, 8
      $region35: #{upblock2d_forward.2} parent=31 // loop_header_branch
        %180 = sbr.rel (%p178) target = $region39
      $region36: #{upblock2d_forward.2} parent=31 // loop_body
        %s182 = smul.u32 %s177, 16
        %s183 = scalar_lea.vmem %s166, %s182
        %v184 = vld [vmem:[%s183] sm:$0xff]
        %v185 = vpack.c.bf16 %v184, %v184
        %s186 = scalar_lea.vmem %s1, 8
        %v187 = vld [vmem:[%s186] sm:$0x3]
        %v189 = vlaneseq
        %v190 = vshrl.u32 %v189, 7
        %v191 = vsub.s32 0, %v190
        %v192 = vrot.slane %v175, %v191
        %vm194 = vcmask 31744
        %v196 = vsel %vm194, %v185, 0
        %vm198 = vcmask 1041408
        %v200 = vsel %vm198, %v187, 0
        %202 = vmatprep.subr.bf16.mxu0 0
        %203 = vmatpush1.bf16.msra.mxu0 0
        %204 = vmatprep.subr.bf16.mxu0 0
        %205 = vmatpush1.bf16.msra.mxu0 0
        %206 = vmatprep.subr.bf16.mxu0 0
        %207 = vmatpush1.bf16.msra.mxu0 0
        %208 = vmatprep.subr.bf16.mxu0 0
        %209 = vmatpush1.bf16.msra.mxu0 0
        %210 = vmatprep.subr.bf16.mxu0 0
        %211 = vmatpush1.bf16.msra.mxu0 0
        %212 = vmatprep.subr.bf16.mxu0 0
        %213 = vmatpush1.bf16.msra.mxu0 0
        %214 = vmatprep.subr.bf16.mxu0 0
        %215 = vmatpush1.bf16.msra.mxu0 0
        %216 = vmatprep.subr.bf16.mxu0 0
        %217 = vmatpush1.bf16.msra.mxu0 %v200
        %218 = vmatprep.subr.bf16.mxu0 0
        %219 = vmatpush2.bf16.msra.mxu0 0
        %220 = vmatprep.subr.bf16.mxu0 0
        %221 = vmatpush2.bf16.msra.mxu0 0
        %222 = vmatprep.subr.bf16.mxu0 0
        %223 = vmatpush2.bf16.msra.mxu0 0
        %224 = vmatprep.subr.bf16.mxu0 0
        %225 = vmatpush2.bf16.msra.mxu0 0
        %226 = vmatprep.subr.bf16.mxu0 0
        %227 = vmatpush2.bf16.msra.mxu0 0
        %228 = vmatprep.subr.bf16.mxu0 0
        %229 = vmatpush2.bf16.msra.mxu0 0
        %230 = vmatprep.subr.bf16.mxu0 0
        %231 = vmatpush2.bf16.msra.mxu0 0
        %232 = vmatprep.subr.bf16.mxu0 0
        %233 = vmatpush2.bf16.msra.mxu0 0
        %234 = vmatprep.mubr.bf16.mxu0 0
        %235 = vmatmul.mubr.bf16.gmra.mxu0 %v196
        %v236 = vpop.f32.mrf.mxu0
        %v237 = vadd.f32 %v192, %v236
        %v238 = vpop.f32.mrf.mxu0
        %v239 = vpop.f32.mrf.mxu0
        %v240 = vpop.f32.mrf.mxu0
        %241 = vdwg.mxu0
        %v242 = vmax.f32 %v237, 0.0
        %s243 = smul.u32 %s177, 8
        %s244 = scalar_lea.vmem %s172, %s243
        %245 = vst.msk [vmem:[%s244] sm:$0xff] %vm194, %v242
        %v246 = vld [vmem:[%s183] sm:$0xff]
        %v247 = vpack.c.bf16 %v246, %v246
        %s248 = scalar_lea.vmem %s1, 10
        %v249 = vld [vmem:[%s248] sm:$0x3]
        %v250 = vld [vmem:[%s183 + $0x1] sm:$0xff]
        %v251 = vpack.c.bf16 %v250, %v250
        %s252 = scalar_lea.vmem %s1, 6
        %v253 = vld [vmem:[%s252] sm:$0x3]
        %v255 = vsel %vm194, %v251, 0
        %v258 = vsel %vm198, %v253, 0
        %260 = vmatprep.subr.bf16.mxu0 0
        %261 = vmatpush1.bf16.msra.mxu0 0
        %262 = vmatprep.subr.bf16.mxu0 0
        %263 = vmatpush1.bf16.msra.mxu0 0
        %264 = vmatprep.subr.bf16.mxu0 0
        %265 = vmatpush1.bf16.msra.mxu0 0
        %266 = vmatprep.subr.bf16.mxu0 0
        %267 = vmatpush1.bf16.msra.mxu0 0
        %268 = vmatprep.subr.bf16.mxu0 0
        %269 = vmatpush1.bf16.msra.mxu0 0
        %270 = vmatprep.subr.bf16.mxu0 0
        %271 = vmatpush1.bf16.msra.mxu0 0
        %272 = vmatprep.subr.bf16.mxu0 0
        %273 = vmatpush1.bf16.msra.mxu0 0
        %274 = vmatprep.subr.bf16.mxu0 0
        %275 = vmatpush1.bf16.msra.mxu0 %v258
        %276 = vmatprep.subr.bf16.mxu0 0
        %277 = vmatpush2.bf16.msra.mxu0 0
        %278 = vmatprep.subr.bf16.mxu0 0
        %279 = vmatpush2.bf16.msra.mxu0 0
        %280 = vmatprep.subr.bf16.mxu0 0
        %281 = vmatpush2.bf16.msra.mxu0 0
        %282 = vmatprep.subr.bf16.mxu0 0
        %283 = vmatpush2.bf16.msra.mxu0 0
        %284 = vmatprep.subr.bf16.mxu0 0
        %285 = vmatpush2.bf16.msra.mxu0 0
        %286 = vmatprep.subr.bf16.mxu0 0
        %287 = vmatpush2.bf16.msra.mxu0 0
        %288 = vmatprep.subr.bf16.mxu0 0
        %289 = vmatpush2.bf16.msra.mxu0 0
        %290 = vmatprep.subr.bf16.mxu0 0
        %291 = vmatpush2.bf16.msra.mxu0 0
        %292 = vmatprep.mubr.bf16.mxu0 0
        %293 = vmatmul.mubr.bf16.gmra.mxu0 %v255
        %v294 = vpop.f32.mrf.mxu0
        %v295 = vadd.f32 0.0, %v294
        %v296 = vpop.f32.mrf.mxu0
        %v297 = vpop.f32.mrf.mxu0
        %v298 = vpop.f32.mrf.mxu0
        %299 = vdwg.mxu0
        %v301 = vsel %vm194, %v247, 0
        %v304 = vsel %vm198, %v249, 0
        %306 = vmatprep.subr.bf16.mxu0 0
        %307 = vmatpush1.bf16.msra.mxu0 0
        %308 = vmatprep.subr.bf16.mxu0 0
        %309 = vmatpush1.bf16.msra.mxu0 0
        %310 = vmatprep.subr.bf16.mxu0 0
        %311 = vmatpush1.bf16.msra.mxu0 0
        %312 = vmatprep.subr.bf16.mxu0 0
        %313 = vmatpush1.bf16.msra.mxu0 0
        %314 = vmatprep.subr.bf16.mxu0 0
        %315 = vmatpush1.bf16.msra.mxu0 0
        %316 = vmatprep.subr.bf16.mxu0 0
        %317 = vmatpush1.bf16.msra.mxu0 0
        %318 = vmatprep.subr.bf16.mxu0 0
        %319 = vmatpush1.bf16.msra.mxu0 0
        %320 = vmatprep.subr.bf16.mxu0 0
        %321 = vmatpush1.bf16.msra.mxu0 %v304
        %322 = vmatprep.subr.bf16.mxu0 0
        %323 = vmatpush2.bf16.msra.mxu0 0
        %324 = vmatprep.subr.bf16.mxu0 0
        %325 = vmatpush2.bf16.msra.mxu0 0
        %326 = vmatprep.subr.bf16.mxu0 0
        %327 = vmatpush2.bf16.msra.mxu0 0
        %328 = vmatprep.subr.bf16.mxu0 0
        %329 = vmatpush2.bf16.msra.mxu0 0
        %330 = vmatprep.subr.bf16.mxu0 0
        %331 = vmatpush2.bf16.msra.mxu0 0
        %332 = vmatprep.subr.bf16.mxu0 0
        %333 = vmatpush2.bf16.msra.mxu0 0
        %334 = vmatprep.subr.bf16.mxu0 0
        %335 = vmatpush2.bf16.msra.mxu0 0
        %336 = vmatprep.subr.bf16.mxu0 0
        %337 = vmatpush2.bf16.msra.mxu0 0
        %338 = vmatprep.mubr.bf16.mxu0 0
        %339 = vmatmul.mubr.bf16.gmra.mxu0 %v301
        %v340 = vpop.f32.mrf.mxu0
        %v341 = vadd.f32 %v295, %v340
        %v342 = vpop.f32.mrf.mxu0
        %v343 = vpop.f32.mrf.mxu0
        %v344 = vpop.f32.mrf.mxu0
        %345 = vdwg.mxu0
        %v346 = vadd.f32 %v341, %v192
        %v347 = vmax.f32 %v346, 0.0
        %s348 = sadd.s32 %s243, 64
        %s349 = scalar_lea.vmem %s172, %s348
        %350 = vst.msk [vmem:[%s349] sm:$0xff] %vm194, %v347
        %v351 = vld [vmem:[%s183] sm:$0xff]
        %v352 = vpack.c.bf16 %v351, %v351
        %s353 = scalar_lea.vmem %s1, 14
        %v354 = vld [vmem:[%s353] sm:$0x3]
        %s355 = sadd.s32 %s177, 1
        %s356 = smul.u32 %s355, 16
        %s357 = scalar_lea.vmem %s166, %s356
        %v358 = vld [vmem:[%s357] sm:$0xff]
        %v359 = vpack.c.bf16 %v358, %v358
        %s360 = scalar_lea.vmem %s1, 2
        %v361 = vld [vmem:[%s360] sm:$0x3]
        %v363 = vsel %vm194, %v359, 0
        %v366 = vsel %vm198, %v361, 0
        %368 = vmatprep.subr.bf16.mxu0 0
        %369 = vmatpush1.bf16.msra.mxu0 0
        %370 = vmatprep.subr.bf16.mxu0 0
        %371 = vmatpush1.bf16.msra.mxu0 0
        %372 = vmatprep.subr.bf16.mxu0 0
        %373 = vmatpush1.bf16.msra.mxu0 0
        %374 = vmatprep.subr.bf16.mxu0 0
        %375 = vmatpush1.bf16.msra.mxu0 0
        %376 = vmatprep.subr.bf16.mxu0 0
        %377 = vmatpush1.bf16.msra.mxu0 0
        %378 = vmatprep.subr.bf16.mxu0 0
        %379 = vmatpush1.bf16.msra.mxu0 0
        %380 = vmatprep.subr.bf16.mxu0 0
        %381 = vmatpush1.bf16.msra.mxu0 0
        %382 = vmatprep.subr.bf16.mxu0 0
        %383 = vmatpush1.bf16.msra.mxu0 %v366
        %384 = vmatprep.subr.bf16.mxu0 0
        %385 = vmatpush2.bf16.msra.mxu0 0
        %386 = vmatprep.subr.bf16.mxu0 0
        %387 = vmatpush2.bf16.msra.mxu0 0
        %388 = vmatprep.subr.bf16.mxu0 0
        %389 = vmatpush2.bf16.msra.mxu0 0
        %390 = vmatprep.subr.bf16.mxu0 0
        %391 = vmatpush2.bf16.msra.mxu0 0
        %392 = vmatprep.subr.bf16.mxu0 0
        %393 = vmatpush2.bf16.msra.mxu0 0
        %394 = vmatprep.subr.bf16.mxu0 0
        %395 = vmatpush2.bf16.msra.mxu0 0
        %396 = vmatprep.subr.bf16.mxu0 0
        %397 = vmatpush2.bf16.msra.mxu0 0
        %398 = vmatprep.subr.bf16.mxu0 0
        %399 = vmatpush2.bf16.msra.mxu0 0
        %400 = vmatprep.mubr.bf16.mxu0 0
        %401 = vmatmul.mubr.bf16.gmra.mxu0 %v363
        %v402 = vpop.f32.mrf.mxu0
        %v403 = vadd.f32 0.0, %v402
        %v404 = vpop.f32.mrf.mxu0
        %v405 = vpop.f32.mrf.mxu0
        %v406 = vpop.f32.mrf.mxu0
        %407 = vdwg.mxu0
        %v409 = vsel %vm194, %v352, 0
        %v412 = vsel %vm198, %v354, 0
        %414 = vmatprep.subr.bf16.mxu0 0
        %415 = vmatpush1.bf16.msra.mxu0 0
        %416 = vmatprep.subr.bf16.mxu0 0
        %417 = vmatpush1.bf16.msra.mxu0 0
        %418 = vmatprep.subr.bf16.mxu0 0
        %419 = vmatpush1.bf16.msra.mxu0 0
        %420 = vmatprep.subr.bf16.mxu0 0
        %421 = vmatpush1.bf16.msra.mxu0 0
        %422 = vmatprep.subr.bf16.mxu0 0
        %423 = vmatpush1.bf16.msra.mxu0 0
        %424 = vmatprep.subr.bf16.mxu0 0
        %425 = vmatpush1.bf16.msra.mxu0 0
        %426 = vmatprep.subr.bf16.mxu0 0
        %427 = vmatpush1.bf16.msra.mxu0 0
        %428 = vmatprep.subr.bf16.mxu0 0
        %429 = vmatpush1.bf16.msra.mxu0 %v412
        %430 = vmatprep.subr.bf16.mxu0 0
        %431 = vmatpush2.bf16.msra.mxu0 0
        %432 = vmatprep.subr.bf16.mxu0 0
        %433 = vmatpush2.bf16.msra.mxu0 0
        %434 = vmatprep.subr.bf16.mxu0 0
        %435 = vmatpush2.bf16.msra.mxu0 0
        %436 = vmatprep.subr.bf16.mxu0 0
        %437 = vmatpush2.bf16.msra.mxu0 0
        %438 = vmatprep.subr.bf16.mxu0 0
        %439 = vmatpush2.bf16.msra.mxu0 0
        %440 = vmatprep.subr.bf16.mxu0 0
        %441 = vmatpush2.bf16.msra.mxu0 0
        %442 = vmatprep.subr.bf16.mxu0 0
        %443 = vmatpush2.bf16.msra.mxu0 0
        %444 = vmatprep.subr.bf16.mxu0 0
        %445 = vmatpush2.bf16.msra.mxu0 0
        %446 = vmatprep.mubr.bf16.mxu0 0
        %447 = vmatmul.mubr.bf16.gmra.mxu0 %v409
        %v448 = vpop.f32.mrf.mxu0
        %v449 = vadd.f32 %v403, %v448
        %v450 = vpop.f32.mrf.mxu0
        %v451 = vpop.f32.mrf.mxu0
        %v452 = vpop.f32.mrf.mxu0
        %453 = vdwg.mxu0
        %v454 = vadd.f32 %v449, %v192
        %v455 = vmax.f32 %v454, 0.0
        %s456 = sadd.s32 %s243, 128
        %s457 = scalar_lea.vmem %s172, %s456
        %458 = vst.msk [vmem:[%s457] sm:$0xff] %vm194, %v455
        %v459 = vld [vmem:[%s183] sm:$0xff]
        %v460 = vpack.c.bf16 %v459, %v459
        %s461 = scalar_lea.vmem %s1, 16
        %v462 = vld [vmem:[%s461] sm:$0x3]
        %v463 = vld [vmem:[%s183 + $0x1] sm:$0xff]
        %v464 = vpack.c.bf16 %v463, %v463
        %s465 = scalar_lea.vmem %s1, 12
        %v466 = vld [vmem:[%s465] sm:$0x3]
        %v468 = vsel %vm194, %v464, 0
        %v471 = vsel %vm198, %v466, 0
        %473 = vmatprep.subr.bf16.mxu0 0
        %474 = vmatpush1.bf16.msra.mxu0 0
        %475 = vmatprep.subr.bf16.mxu0 0
        %476 = vmatpush1.bf16.msra.mxu0 0
        %477 = vmatprep.subr.bf16.mxu0 0
        %478 = vmatpush1.bf16.msra.mxu0 0
        %479 = vmatprep.subr.bf16.mxu0 0
        %480 = vmatpush1.bf16.msra.mxu0 0
        %481 = vmatprep.subr.bf16.mxu0 0
        %482 = vmatpush1.bf16.msra.mxu0 0
        %483 = vmatprep.subr.bf16.mxu0 0
        %484 = vmatpush1.bf16.msra.mxu0 0
        %485 = vmatprep.subr.bf16.mxu0 0
        %486 = vmatpush1.bf16.msra.mxu0 0
        %487 = vmatprep.subr.bf16.mxu0 0
        %488 = vmatpush1.bf16.msra.mxu0 %v471
        %489 = vmatprep.subr.bf16.mxu0 0
        %490 = vmatpush2.bf16.msra.mxu0 0
        %491 = vmatprep.subr.bf16.mxu0 0
        %492 = vmatpush2.bf16.msra.mxu0 0
        %493 = vmatprep.subr.bf16.mxu0 0
        %494 = vmatpush2.bf16.msra.mxu0 0
        %495 = vmatprep.subr.bf16.mxu0 0
        %496 = vmatpush2.bf16.msra.mxu0 0
        %497 = vmatprep.subr.bf16.mxu0 0
        %498 = vmatpush2.bf16.msra.mxu0 0
        %499 = vmatprep.subr.bf16.mxu0 0
        %500 = vmatpush2.bf16.msra.mxu0 0
        %501 = vmatprep.subr.bf16.mxu0 0
        %502 = vmatpush2.bf16.msra.mxu0 0
        %503 = vmatprep.subr.bf16.mxu0 0
        %504 = vmatpush2.bf16.msra.mxu0 0
        %505 = vmatprep.mubr.bf16.mxu0 0
        %506 = vmatmul.mubr.bf16.gmra.mxu0 %v468
        %v507 = vpop.f32.mrf.mxu0
        %v508 = vadd.f32 0.0, %v507
        %v509 = vpop.f32.mrf.mxu0
        %v510 = vpop.f32.mrf.mxu0
        %v511 = vpop.f32.mrf.mxu0
        %512 = vdwg.mxu0
        %v514 = vsel %vm194, %v460, 0
        %v517 = vsel %vm198, %v462, 0
        %519 = vmatprep.subr.bf16.mxu0 0
        %520 = vmatpush1.bf16.msra.mxu0 0
        %521 = vmatprep.subr.bf16.mxu0 0
        %522 = vmatpush1.bf16.msra.mxu0 0
        %523 = vmatprep.subr.bf16.mxu0 0
        %524 = vmatpush1.bf16.msra.mxu0 0
        %525 = vmatprep.subr.bf16.mxu0 0
        %526 = vmatpush1.bf16.msra.mxu0 0
        %527 = vmatprep.subr.bf16.mxu0 0
        %528 = vmatpush1.bf16.msra.mxu0 0
        %529 = vmatprep.subr.bf16.mxu0 0
        %530 = vmatpush1.bf16.msra.mxu0 0
        %531 = vmatprep.subr.bf16.mxu0 0
        %532 = vmatpush1.bf16.msra.mxu0 0
        %533 = vmatprep.subr.bf16.mxu0 0
        %534 = vmatpush1.bf16.msra.mxu0 %v517
        %535 = vmatprep.subr.bf16.mxu0 0
        %536 = vmatpush2.bf16.msra.mxu0 0
        %537 = vmatprep.subr.bf16.mxu0 0
        %538 = vmatpush2.bf16.msra.mxu0 0
        %539 = vmatprep.subr.bf16.mxu0 0
        %540 = vmatpush2.bf16.msra.mxu0 0
        %541 = vmatprep.subr.bf16.mxu0 0
        %542 = vmatpush2.bf16.msra.mxu0 0
        %543 = vmatprep.subr.bf16.mxu0 0
        %544 = vmatpush2.bf16.msra.mxu0 0
        %545 = vmatprep.subr.bf16.mxu0 0
        %546 = vmatpush2.bf16.msra.mxu0 0
        %547 = vmatprep.subr.bf16.mxu0 0
        %548 = vmatpush2.bf16.msra.mxu0 0
        %549 = vmatprep.subr.bf16.mxu0 0
        %550 = vmatpush2.bf16.msra.mxu0 0
        %551 = vmatprep.mubr.bf16.mxu0 0
        %552 = vmatmul.mubr.bf16.gmra.mxu0 %v514
        %v553 = vpop.f32.mrf.mxu0
        %v554 = vadd.f32 %v508, %v553
        %v555 = vpop.f32.mrf.mxu0
        %v556 = vpop.f32.mrf.mxu0
        %v557 = vpop.f32.mrf.mxu0
        %558 = vdwg.mxu0
        %v559 = vld [vmem:[%s357] sm:$0xff]
        %v560 = vpack.c.bf16 %v559, %v559
        %s561 = scalar_lea.vmem %s1, 4
        %v562 = vld [vmem:[%s561] sm:$0x3]
        %v564 = vsel %vm194, %v560, 0
        %v567 = vsel %vm198, %v562, 0
        %569 = vmatprep.subr.bf16.mxu0 0
        %570 = vmatpush1.bf16.msra.mxu0 0
        %571 = vmatprep.subr.bf16.mxu0 0
        %572 = vmatpush1.bf16.msra.mxu0 0
        %573 = vmatprep.subr.bf16.mxu0 0
        %574 = vmatpush1.bf16.msra.mxu0 0
        %575 = vmatprep.subr.bf16.mxu0 0
        %576 = vmatpush1.bf16.msra.mxu0 0
        %577 = vmatprep.subr.bf16.mxu0 0
        %578 = vmatpush1.bf16.msra.mxu0 0
        %579 = vmatprep.subr.bf16.mxu0 0
        %580 = vmatpush1.bf16.msra.mxu0 0
        %581 = vmatprep.subr.bf16.mxu0 0
        %582 = vmatpush1.bf16.msra.mxu0 0
        %583 = vmatprep.subr.bf16.mxu0 0
        %584 = vmatpush1.bf16.msra.mxu0 %v567
        %585 = vmatprep.subr.bf16.mxu0 0
        %586 = vmatpush2.bf16.msra.mxu0 0
        %587 = vmatprep.subr.bf16.mxu0 0
        %588 = vmatpush2.bf16.msra.mxu0 0
        %589 = vmatprep.subr.bf16.mxu0 0
        %590 = vmatpush2.bf16.msra.mxu0 0
        %591 = vmatprep.subr.bf16.mxu0 0
        %592 = vmatpush2.bf16.msra.mxu0 0
        %593 = vmatprep.subr.bf16.mxu0 0
        %594 = vmatpush2.bf16.msra.mxu0 0
        %595 = vmatprep.subr.bf16.mxu0 0
        %596 = vmatpush2.bf16.msra.mxu0 0
        %597 = vmatprep.subr.bf16.mxu0 0
        %598 = vmatpush2.bf16.msra.mxu0 0
        %599 = vmatprep.subr.bf16.mxu0 0
        %600 = vmatpush2.bf16.msra.mxu0 0
        %601 = vmatprep.mubr.bf16.mxu0 0
        %602 = vmatmul.mubr.bf16.gmra.mxu0 %v564
        %v603 = vpop.f32.mrf.mxu0
        %v604 = vadd.f32 0.0, %v603
        %v605 = vpop.f32.mrf.mxu0
        %v606 = vpop.f32.mrf.mxu0
        %v607 = vpop.f32.mrf.mxu0
        %608 = vdwg.mxu0
        %v609 = vadd.f32 %v554, %v604
        %v610 = vld [vmem:[%s357 + $0x1] sm:$0xff]
        %v611 = vpack.c.bf16 %v610, %v610
        %v612 = vld [vmem:[%s1] sm:$0x3]
        %v614 = vsel %vm194, %v611, 0
        %v617 = vsel %vm198, %v612, 0
        %619 = vmatprep.subr.bf16.mxu0 0
        %620 = vmatpush1.bf16.msra.mxu0 0
        %621 = vmatprep.subr.bf16.mxu0 0
        %622 = vmatpush1.bf16.msra.mxu0 0
        %623 = vmatprep.subr.bf16.mxu0 0
        %624 = vmatpush1.bf16.msra.mxu0 0
        %625 = vmatprep.subr.bf16.mxu0 0
        %626 = vmatpush1.bf16.msra.mxu0 0
        %627 = vmatprep.subr.bf16.mxu0 0
        %628 = vmatpush1.bf16.msra.mxu0 0
        %629 = vmatprep.subr.bf16.mxu0 0
        %630 = vmatpush1.bf16.msra.mxu0 0
        %631 = vmatprep.subr.bf16.mxu0 0
        %632 = vmatpush1.bf16.msra.mxu0 0
        %633 = vmatprep.subr.bf16.mxu0 0
        %634 = vmatpush1.bf16.msra.mxu0 %v617
        %635 = vmatprep.subr.bf16.mxu0 0
        %636 = vmatpush2.bf16.msra.mxu0 0
        %637 = vmatprep.subr.bf16.mxu0 0
        %638 = vmatpush2.bf16.msra.mxu0 0
        %639 = vmatprep.subr.bf16.mxu0 0
        %640 = vmatpush2.bf16.msra.mxu0 0
        %641 = vmatprep.subr.bf16.mxu0 0
        %642 = vmatpush2.bf16.msra.mxu0 0
        %643 = vmatprep.subr.bf16.mxu0 0
        %644 = vmatpush2.bf16.msra.mxu0 0
        %645 = vmatprep.subr.bf16.mxu0 0
        %646 = vmatpush2.bf16.msra.mxu0 0
        %647 = vmatprep.subr.bf16.mxu0 0
        %648 = vmatpush2.bf16.msra.mxu0 0
        %649 = vmatprep.subr.bf16.mxu0 0
        %650 = vmatpush2.bf16.msra.mxu0 0
        %651 = vmatprep.mubr.bf16.mxu0 0
        %652 = vmatmul.mubr.bf16.gmra.mxu0 %v614
        %v653 = vpop.f32.mrf.mxu0
        %v654 = vadd.f32 0.0, %v653
        %v655 = vpop.f32.mrf.mxu0
        %v656 = vpop.f32.mrf.mxu0
        %v657 = vpop.f32.mrf.mxu0
        %658 = vdwg.mxu0
        %v659 = vadd.f32 %v609, %v654
        %v660 = vadd.f32 %v659, %v192
        %v661 = vmax.f32 %v660, 0.0
        %s662 = sadd.s32 %s243, 192
        %s663 = scalar_lea.vmem %s172, %s662
        %664 = vst.msk [vmem:[%s663] sm:$0xff] %vm194, %v661
      $region37: #{upblock2d_forward.2} parent=31 // loop_footer
        %s181 = sadd.s32 1, %s177
      $region38: #{upblock2d_forward.2} parent=31 // loop_footer_branch
        %176 = sbr.rel target = $region34
      $region39: #{upblock2d_forward.2} parent=31 // loop_exit
        _
      %s665 = smul.u32 4, %s14
      %p666 = scmp.lt.s32.totalorder %s665, 7
      %s667 = scalar_select %p666, %s665, 7
      %s668 = smul.addr %s667, 8
      %s669 = smul.addr %s668, 8
      %s670 = scalar_lea.vmem %s3, %s669
      // Predicated region
      $region40: #{upblock2d_forward.2} parent=31 // pred_check
        %p671 = pneg %p100
      $region41: #{upblock2d_forward.2} parent=31 // pred_check_branch
        %673 = sbr.rel (%p671) target = $region43
      $region42: #{upblock2d_forward.2} parent=31 // pred_region
        %s674 = smul.u32 4, %s14
      $region43: #{upblock2d_forward.2} parent=31 // pred_fallthru
        _
    $region32: #{upblock2d_forward.2} parent=5 // pred_fallthru
      _
    %p675 = scmp.le.s32.totalorder 2, %s9
    // Predicated region
    $region44: #{upblock2d_forward.2} parent=5 // pred_check
      %p676 = pneg %p675
    $region45: #{upblock2d_forward.2} parent=5 // pred_check_branch
      %678 = sbr.rel (%p676) target = $region47
    $region46: #{upblock2d_forward.2} parent=5 // pred_region
      %s679 = ssub.s32 %s9, 2
      // Predicated region
      $region48: #{upblock2d_forward.2} parent=46 // pred_check
        %p680 = pneg %p106
      $region49: #{upblock2d_forward.2} parent=46 // pred_check_branch
        %682 = sbr.rel (%p680) target = $region51
      $region50: #{upblock2d_forward.2} parent=46 // pred_region
        %s683 = smul.u32 4, %s15
        %p684 = scmp.lt.s32.totalorder %s683, 7
        %s685 = scalar_select %p684, %s683, 7
        %s686 = smul.addr %s685, 8
        %s687 = smul.addr %s686, 8
        %s688 = scalar_lea.vmem %s3, %s687
      $region51: #{upblock2d_forward.2} parent=46 // pred_fallthru
        _
    $region47: #{upblock2d_forward.2} parent=5 // pred_fallthru
      _
  $region6: #{upblock2d_forward.2} parent=0 // loop_footer
    %s13 = sadd.s32 1, %s9
  $region7: #{upblock2d_forward.2} parent=0 // loop_footer_branch
    %8 = sbr.rel target = $region3
  $region8: #{upblock2d_forward.2} parent=0 // loop_exit
    _

// kernel: upblock2d_forward.3
$region0: #{upblock2d_forward.3}
  #allocation0 [shape = 'u32[]', space=smem, size = 0x4, offset = 0x4, fixed_abs, tag = 'smem constant byte address 0x4 - core index']
  #allocation1 [shape = 'u32[144,128]{1,0:T(1,128)}', space=vmem, size = 0x12000, scoped, tag = 'internal scratch']
  #allocation2 [shape = 'f32[18,18,4]{2,1,0:T(8,128)}', space=vmem, size = 0x36000, scoped, tag = 'scratch operand']
  %s0 = inlined_call_operand.vmem [shape: f32[2,18,18,4], index: 0, kind: input, shape index: {}]
  %s1 = inlined_call_operand.vmem [shape: f32[2,18,18,4], index: 1, kind: input, shape index: {}]
  %s2 = inlined_call_operand.vmem [shape: bf16[3,3,4,4], index: 2, kind: input, shape index: {}]
  %s3 = inlined_call_operand.vmem [shape: bf16[3,3,4,4], index: 3, kind: input, shape index: {}]
  %s4 = inlined_call_operand.vmem [shape: f32[1,4], index: 4, kind: input, shape index: {}]
  %s5 = inlined_call_operand.vmem [shape: bf16[3,3,4,4], index: 5, kind: input, shape index: {}]
  %s6 = inlined_call_operand.vmem [shape: f32[1,4], index: 6, kind: input, shape index: {}]
  %s7 = inlined_call_operand.vmem [shape: f32[2,16,16,4], index: 7, kind: output, shape index: {}]
  %s8 = sld [smem:[#allocation0]]
  $region75: #{upblock2d_forward.3} parent=0
    _
  %s10 = ssub.s32 1, %s8
  %s11 = scalar_select 0, %s10, %s8
  loop: start=0, step=1, limit=4
  $region2: #{upblock2d_forward.3} parent=0 // loop_pre_header
    _
  $region3: #{upblock2d_forward.3} parent=0 // loop_header
    %s13 = sphi 0, %s17
    %p14 = scmp.ge.s32.totalorder %s13, 4
    %s23 = sphi 0, %s25
    %s26 = sphi 0, %s23
    %s27 = sphi 0, %s26
    %s43 = sphi 0, %s27
    %s49 = sphi 0, %s51
    %s52 = sphi 0, %s49
    %s53 = sphi 0, %s52
    %s69 = sphi 0, %s53
    %s73 = sphi 0, %s73
    %s75 = sphi 0, %s73
    %s76 = sphi 0, %s75
    %s90 = sphi 0, %s76
    %s94 = sphi 0, %s94
    %s96 = sphi 0, %s94
    %s97 = sphi 0, %s96
    %s111 = sphi 0, %s97
    %s115 = sphi 0, %s115
    %s117 = sphi 0, %s115
    %s118 = sphi 0, %s117
    %s132 = sphi 0, %s118
    %s136 = sphi 0, %s136
    %s138 = sphi 0, %s136
    %s139 = sphi 0, %s138
    %s153 = sphi 0, %s139
    %s157 = sphi 0, %s157
    %s159 = sphi 0, %s157
    %s160 = sphi 0, %s159
    %s174 = sphi 0, %s160
    %s180 = sphi 0, %s182
    %s183 = sphi 0, %s180
    %s184 = sphi 0, %s183
    %s200 = sphi 0, %s184
  $region4: #{upblock2d_forward.3} parent=0 // loop_header_branch
    %16 = sbr.rel (%p14) target = $region8
  $region5: #{upblock2d_forward.3} parent=0 // loop_body
    %s18 = ssub.s32 %s13, 1
    %s19 = ssub.s32 %s13, 2
    %s20 = sadd.s32 %s13, 1
    %s21 = ssub.s32 %s13, %s20
    %p22 = scmp.eq.s32.totalorder %s21, 0
    %s24 = sadd.s32 %s23, 1
    %s25 = scalar_select %p22, %s23, %s24
    %p28 = pneg %p22
    %p29 = scmp.eq.s32.totalorder %s13, 1
    %p30 = por %p28, %p29
    %p31 = scmp.ne.s32.totalorder %s23, %s26
    %p32 = scmp.eq.s32.totalorder %s13, 0
    %p33 = por %p31, %p32
    %p34 = scmp.ne.s32.totalorder %s23, %s26
    %p35 = scmp.eq.s32.totalorder %s18, 1
    %p36 = por %p34, %p35
    %p37 = scmp.ne.s32.totalorder %s26, %s27
    %p38 = scmp.eq.s32.totalorder %s18, 0
    %p39 = por %p37, %p38
    %p40 = scmp.ne.s32.totalorder %s26, %s27
    %p41 = scmp.eq.s32.totalorder %s19, 1
    %p42 = por %p40, %p41
    %p44 = scmp.ne.s32.totalorder %s27, %s43
    %p45 = scmp.eq.s32.totalorder %s19, 0
    %p46 = por %p44, %p45
    %s47 = ssub.s32 %s13, %s20
    %p48 = scmp.eq.s32.totalorder %s47, 0
    %s50 = sadd.s32 %s49, 1
    %s51 = scalar_select %p48, %s49, %s50
    %p54 = pneg %p48
    %p55 = scmp.eq.s32.totalorder %s13, 1
    %p56 = por %p54, %p55
    %p57 = scmp.ne.s32.totalorder %s49, %s52
    %p58 = scmp.eq.s32.totalorder %s13, 0
    %p59 = por %p57, %p58
    %p60 = scmp.ne.s32.totalorder %s49, %s52
    %p61 = scmp.eq.s32.totalorder %s18, 1
    %p62 = por %p60, %p61
    %p63 = scmp.ne.s32.totalorder %s52, %s53
    %p64 = scmp.eq.s32.totalorder %s18, 0
    %p65 = por %p63, %p64
    %p66 = scmp.ne.s32.totalorder %s52, %s53
    %p67 = scmp.eq.s32.totalorder %s19, 1
    %p68 = por %p66, %p67
    %p70 = scmp.ne.s32.totalorder %s53, %s69
    %p71 = scmp.eq.s32.totalorder %s19, 0
    %p72 = por %p70, %p71
    %s74 = sadd.s32 %s73, 1
    %p77 = scmp.eq.s32.totalorder %s13, 1
    %p78 = scmp.ne.s32.totalorder %s73, %s75
    %p79 = scmp.eq.s32.totalorder %s13, 0
    %p80 = por %p78, %p79
    %p81 = scmp.ne.s32.totalorder %s73, %s75
    %p82 = scmp.eq.s32.totalorder %s18, 1
    %p83 = por %p81, %p82
    %p84 = scmp.ne.s32.totalorder %s75, %s76
    %p85 = scmp.eq.s32.totalorder %s18, 0
    %p86 = por %p84, %p85
    %p87 = scmp.ne.s32.totalorder %s75, %s76
    %p88 = scmp.eq.s32.totalorder %s19, 1
    %p89 = por %p87, %p88
    %p91 = scmp.ne.s32.totalorder %s76, %s90
    %p92 = scmp.eq.s32.totalorder %s19, 0
    %p93 = por %p91, %p92
    %s95 = sadd.s32 %s94, 1
    %p98 = scmp.eq.s32.totalorder %s13, 1
    %p99 = scmp.ne.s32.totalorder %s94, %s96
    %p100 = scmp.eq.s32.totalorder %s13, 0
    %p101 = por %p99, %p100
    %p102 = scmp.ne.s32.totalorder %s94, %s96
    %p103 = scmp.eq.s32.totalorder %s18, 1
    %p104 = por %p102, %p103
    %p105 = scmp.ne.s32.totalorder %s96, %s97
    %p106 = scmp.eq.s32.totalorder %s18, 0
    %p107 = por %p105, %p106
    %p108 = scmp.ne.s32.totalorder %s96, %s97
    %p109 = scmp.eq.s32.totalorder %s19, 1
    %p110 = por %p108, %p109
    %p112 = scmp.ne.s32.totalorder %s97, %s111
    %p113 = scmp.eq.s32.totalorder %s19, 0
    %p114 = por %p112, %p113
    %s116 = sadd.s32 %s115, 1
    %p119 = scmp.eq.s32.totalorder %s13, 1
    %p120 = scmp.ne.s32.totalorder %s115, %s117
    %p121 = scmp.eq.s32.totalorder %s13, 0
    %p122 = por %p120, %p121
    %p123 = scmp.ne.s32.totalorder %s115, %s117
    %p124 = scmp.eq.s32.totalorder %s18, 1
    %p125 = por %p123, %p124
    %p126 = scmp.ne.s32.totalorder %s117, %s118
    %p127 = scmp.eq.s32.totalorder %s18, 0
    %p128 = por %p126, %p127
    %p129 = scmp.ne.s32.totalorder %s117, %s118
    %p130 = scmp.eq.s32.totalorder %s19, 1
    %p131 = por %p129, %p130
    %p133 = scmp.ne.s32.totalorder %s118, %s132
    %p134 = scmp.eq.s32.totalorder %s19, 0
    %p135 = por %p133, %p134
    %s137 = sadd.s32 %s136, 1
    %p140 = scmp.eq.s32.totalorder %s13, 1
    %p141 = scmp.ne.s32.totalorder %s136, %s138
    %p142 = scmp.eq.s32.totalorder %s13, 0
    %p143 = por %p141, %p142
    %p144 = scmp.ne.s32.totalorder %s136, %s138
    %p145 = scmp.eq.s32.totalorder %s18, 1
    %p146 = por %p144, %p145
    %p147 = scmp.ne.s32.totalorder %s138, %s139
    %p148 = scmp.eq.s32.totalorder %s18, 0
    %p149 = por %p147, %p148
    %p150 = scmp.ne.s32.totalorder %s138, %s139
    %p151 = scmp.eq.s32.totalorder %s19, 1
    %p152 = por %p150, %p151
    %p154 = scmp.ne.s32.totalorder %s139, %s153
    %p155 = scmp.eq.s32.totalorder %s19, 0
    %p156 = por %p154, %p155
    %s158 = sadd.s32 %s157, 1
    %p161 = scmp.eq.s32.totalorder %s13, 1
    %p162 = scmp.ne.s32.totalorder %s157, %s159
    %p163 = scmp.eq.s32.totalorder %s13, 0
    %p164 = por %p162, %p163
    %p165 = scmp.ne.s32.totalorder %s157, %s159
    %p166 = scmp.eq.s32.totalorder %s18, 1
    %p167 = por %p165, %p166
    %p168 = scmp.ne.s32.totalorder %s159, %s160
    %p169 = scmp.eq.s32.totalorder %s18, 0
    %p170 = por %p168, %p169
    %p171 = scmp.ne.s32.totalorder %s159, %s160
    %p172 = scmp.eq.s32.totalorder %s19, 1
    %p173 = por %p171, %p172
    %p175 = scmp.ne.s32.totalorder %s160, %s174
    %p176 = scmp.eq.s32.totalorder %s19, 0
    %p177 = por %p175, %p176
    %s178 = ssub.s32 %s13, %s20
    %p179 = scmp.eq.s32.totalorder %s178, 0
    %s181 = sadd.s32 %s180, 1
    %s182 = scalar_select %p179, %s180, %s181
    %p185 = pneg %p179
    %p186 = scmp.eq.s32.totalorder %s13, 1
    %p187 = por %p185, %p186
    %p188 = scmp.ne.s32.totalorder %s180, %s183
    %p189 = scmp.eq.s32.totalorder %s13, 0
    %p190 = por %p188, %p189
    %p191 = scmp.ne.s32.totalorder %s180, %s183
    %p192 = scmp.eq.s32.totalorder %s18, 1
    %p193 = por %p191, %p192
    %p194 = scmp.ne.s32.totalorder %s183, %s184
    %p195 = scmp.eq.s32.totalorder %s18, 0
    %p196 = por %p194, %p195
    %p197 = scmp.ne.s32.totalorder %s183, %s184
    %p198 = scmp.eq.s32.totalorder %s19, 1
    %p199 = por %p197, %p198
    %p201 = scmp.ne.s32.totalorder %s184, %s200
    %p202 = scmp.eq.s32.totalorder %s19, 0
    %p203 = por %p201, %p202
    %p204 = scmp.le.s32.totalorder 1, %s13
    %p205 = scmp.lt.s32.totalorder %s13, 3
    %p206 = pnand %p204, %p205
    %p207 = pneg %p206
    // Predicated region
    $region9: #{upblock2d_forward.3} parent=5 // pred_check
      _
    $region10: #{upblock2d_forward.3} parent=5 // pred_check_branch
      %209 = sbr.rel (%p206) target = $region12
    $region11: #{upblock2d_forward.3} parent=5 // pred_region
      %s210 = ssub.s32 %s13, 1
      // Predicated region
      $region13: #{upblock2d_forward.3} parent=11 // pred_check
        %p211 = pneg %p86
      $region14: #{upblock2d_forward.3} parent=11 // pred_check_branch
        %213 = sbr.rel (%p211) target = $region16
      $region15: #{upblock2d_forward.3} parent=11 // pred_region
        _
      $region16: #{upblock2d_forward.3} parent=11 // pred_fallthru
        _
      // Predicated region
      $region17: #{upblock2d_forward.3} parent=11 // pred_check
        %p214 = pneg %p107
      $region18: #{upblock2d_forward.3} parent=11 // pred_check_branch
        %216 = sbr.rel (%p214) target = $region20
      $region19: #{upblock2d_forward.3} parent=11 // pred_region
        _
      $region20: #{upblock2d_forward.3} parent=11 // pred_fallthru
        _
      // Predicated region
      $region21: #{upblock2d_forward.3} parent=11 // pred_check
        %p217 = pneg %p128
      $region22: #{upblock2d_forward.3} parent=11 // pred_check_branch
        %219 = sbr.rel (%p217) target = $region24
      $region23: #{upblock2d_forward.3} parent=11 // pred_region
        _
      $region24: #{upblock2d_forward.3} parent=11 // pred_fallthru
        _
      // Predicated region
      $region25: #{upblock2d_forward.3} parent=11 // pred_check
        %p220 = pneg %p149
      $region26: #{upblock2d_forward.3} parent=11 // pred_check_branch
        %222 = sbr.rel (%p220) target = $region28
      $region27: #{upblock2d_forward.3} parent=11 // pred_region
        _
      $region28: #{upblock2d_forward.3} parent=11 // pred_fallthru
        _
      // Predicated region
      $region29: #{upblock2d_forward.3} parent=11 // pred_check
        %p223 = pneg %p170
      $region30: #{upblock2d_forward.3} parent=11 // pred_check_branch
        %225 = sbr.rel (%p223) target = $region32
      $region31: #{upblock2d_forward.3} parent=11 // pred_region
        _
      $region32: #{upblock2d_forward.3} parent=11 // pred_fallthru
        _
    $region12: #{upblock2d_forward.3} parent=5 // pred_fallthru
      _
    %p226 = scmp.lt.s32.totalorder %s13, 2
    // Predicated region
    $region33: #{upblock2d_forward.3} parent=5 // pred_check
      %p227 = pneg %p226
    $region34: #{upblock2d_forward.3} parent=5 // pred_check_branch
      %229 = sbr.rel (%p227) target = $region36
    $region35: #{upblock2d_forward.3} parent=5 // pred_region
      // Predicated region
      $region37: #{upblock2d_forward.3} parent=35 // pred_check
        %p230 = pneg %p33
      $region38: #{upblock2d_forward.3} parent=35 // pred_check_branch
        %232 = sbr.rel (%p230) target = $region40
      $region39: #{upblock2d_forward.3} parent=35 // pred_region
        %p233 = scmp.lt.s32.totalorder %s13, 1
        %s234 = scalar_select %p233, %s13, 1
        %s235 = smul.addr %s234, 54
        %s236 = smul.addr %s235, 8
        %s237 = scalar_lea.vmem %s0, %s236
      $region40: #{upblock2d_forward.3} parent=35 // pred_fallthru
        _
      // Predicated region
      $region41: #{upblock2d_forward.3} parent=35 // pred_check
        %p238 = pneg %p59
      $region42: #{upblock2d_forward.3} parent=35 // pred_check_branch
        %240 = sbr.rel (%p238) target = $region44
      $region43: #{upblock2d_forward.3} parent=35 // pred_region
        %p241 = scmp.lt.s32.totalorder %s13, 1
        %s242 = scalar_select %p241, %s13, 1
        %s243 = smul.addr %s242, 54
        %s244 = smul.addr %s243, 8
        %s245 = scalar_lea.vmem %s1, %s244
      $region44: #{upblock2d_forward.3} parent=35 // pred_fallthru
        _
    $region36: #{upblock2d_forward.3} parent=5 // pred_fallthru
      _
    %p246 = scmp.le.s32.totalorder 1, %s13
    %p247 = scmp.lt.s32.totalorder %s13, 3
    %p248 = pnand %p246, %p247
    %p249 = pneg %p248
    // Predicated region
    $region45: #{upblock2d_forward.3} parent=5 // pred_check
      _
    $region46: #{upblock2d_forward.3} parent=5 // pred_check_branch
      %251 = sbr.rel (%p248) target = $region48
    $region47: #{upblock2d_forward.3} parent=5 // pred_region
      %s252 = ssub.s32 %s13, 1
      %p253 = scmp.lt.s32.totalorder %s18, 1
      %s254 = scalar_select %p253, %s18, 1
      %s255 = smul.addr %s254, 54
      %s256 = smul.addr %s255, 8
      %s257 = scalar_lea.vmem %s0, %s256
      %p258 = pneg %p39
      %p259 = pneg %p36
      %p260 = scmp.lt.s32.totalorder %s18, 1
      %s261 = scalar_select %p260, %s18, 1
      %s262 = smul.addr %s261, 54
      %s263 = smul.addr %s262, 8
      %s264 = scalar_lea.vmem %s1, %s263
      %p265 = pneg %p65
      %p266 = pneg %p62
      %p267 = pneg %p86
      %p268 = pneg %p83
      %p269 = pneg %p107
      %p270 = pneg %p104
      %p271 = pneg %p128
      %p272 = pneg %p125
      %p273 = pneg %p149
      %p274 = pneg %p146
      %p275 = pneg %p170
      %p276 = pneg %p167
      %p277 = pneg %p196
      %p278 = pneg %p193
      %p279 = scmp.lt.s32.totalorder %s18, 1
      %s280 = scalar_select %p279, %s18, 1
      %s281 = smul.addr %s280, 32
      %s282 = smul.addr %s281, 8
      %s283 = scalar_lea.vmem %s7, %s282
      %p284 = scmp.lt.s32.totalorder %s18, 1
      %s285 = scalar_select %p284, %s18, 1
      %s286 = smul.addr %s285, 54
      %s287 = smul.addr %s286, 8
      %s288 = scalar_lea.vmem %s0, %s287
      %p289 = scmp.lt.s32.totalorder %s18, 1
      %s290 = scalar_select %p289, %s18, 1
      %s291 = smul.addr %s290, 54
      %s292 = smul.addr %s291, 8
      %s293 = scalar_lea.vmem %s1, %s292
      %p294 = scmp.lt.s32.totalorder %s18, 1
      %s295 = scalar_select %p294, %s18, 1
      %s296 = smul.addr %s295, 32
      %s297 = smul.addr %s296, 8
      %s298 = scalar_lea.vmem %s7, %s297
      %v300 = vld [vmem:[%s4] sm:$0x1]
      %v301 = vld [vmem:[%s6] sm:$0x1]
      %vm302 = vcmask 31744
      %303 = vst.msk [vmem:[#allocation2] sm:$0xff] %vm302, 0.0
      %304 = vst.msk [vmem:[#allocation2 + $0x8] sm:$0xff] %vm302, 0.0
      %vm305 = vcmask 25600
      %306 = vst.msk [vmem:[#allocation2 + $0x10] sm:$0x3] %vm305, 0.0
      %307 = vst.msk [vmem:[#allocation2 + $0x18] sm:$0xff] %vm302, 0.0
      %308 = vst.msk [vmem:[#allocation2 + $0x20] sm:$0xff] %vm302, 0.0
      %309 = vst.msk [vmem:[#allocation2 + $0x28] sm:$0x3] %vm305, 0.0
      %310 = vst.msk [vmem:[#allocation2 + $0x30] sm:$0xff] %vm302, 0.0
      %311 = vst.msk [vmem:[#allocation2 + $0x38] sm:$0xff] %vm302, 0.0
      %312 = vst.msk [vmem:[#allocation2 + $0x40] sm:$0x3] %vm305, 0.0
      %313 = vst.msk [vmem:[#allocation2 + $0x48] sm:$0xff] %vm302, 0.0
      %314 = vst.msk [vmem:[#allocation2 + $0x50] sm:$0xff] %vm302, 0.0
      %315 = vst.msk [vmem:[#allocation2 + $0x58] sm:$0x3] %vm305, 0.0
      %316 = vst.msk [vmem:[#allocation2 + $0x60] sm:$0xff] %vm302, 0.0
      %317 = vst.msk [vmem:[#allocation2 + $0x68] sm:$0xff] %vm302, 0.0
      %318 = vst.msk [vmem:[#allocation2 + $0x70] sm:$0x3] %vm305, 0.0
      %319 = vst.msk [vmem:[#allocation2 + $0x78] sm:$0xff] %vm302, 0.0
      %320 = vst.msk [vmem:[#allocation2 + $0x80] sm:$0xff] %vm302, 0.0
      %321 = vst.msk [vmem:[#allocation2 + $0x88] sm:$0x3] %vm305, 0.0
      %322 = vst.msk [vmem:[#allocation2 + $0x90] sm:$0xff] %vm302, 0.0
      %323 = vst.msk [vmem:[#allocation2 + $0x98] sm:$0xff] %vm302, 0.0
      %324 = vst.msk [vmem:[#allocation2 + $0xa0] sm:$0x3] %vm305, 0.0
      %325 = vst.msk [vmem:[#allocation2 + $0xa8] sm:$0xff] %vm302, 0.0
      %326 = vst.msk [vmem:[#allocation2 + $0xb0] sm:$0xff] %vm302, 0.0
      %327 = vst.msk [vmem:[#allocation2 + $0xb8] sm:$0x3] %vm305, 0.0
      %328 = vst.msk [vmem:[#allocation2 + $0xc0] sm:$0xff] %vm302, 0.0
      %329 = vst.msk [vmem:[#allocation2 + $0xc8] sm:$0xff] %vm302, 0.0
      %330 = vst.msk [vmem:[#allocation2 + $0xd0] sm:$0x3] %vm305, 0.0
      %331 = vst.msk [vmem:[#allocation2 + $0xd8] sm:$0xff] %vm302, 0.0
      %332 = vst.msk [vmem:[#allocation2 + $0xe0] sm:$0xff] %vm302, 0.0
      %333 = vst.msk [vmem:[#allocation2 + $0xe8] sm:$0x3] %vm305, 0.0
      %334 = vst.msk [vmem:[#allocation2 + $0xf0] sm:$0xff] %vm302, 0.0
      %335 = vst.msk [vmem:[#allocation2 + $0xf8] sm:$0xff] %vm302, 0.0
      %336 = vst.msk [vmem:[#allocation2 + $0x100] sm:$0x3] %vm305, 0.0
      %337 = vst.msk [vmem:[#allocation2 + $0x108] sm:$0xff] %vm302, 0.0
      %338 = vst.msk [vmem:[#allocation2 + $0x110] sm:$0xff] %vm302, 0.0
      %339 = vst.msk [vmem:[#allocation2 + $0x118] sm:$0x3] %vm305, 0.0
      %340 = vst.msk [vmem:[#allocation2 + $0x120] sm:$0xff] %vm302, 0.0
      %341 = vst.msk [vmem:[#allocation2 + $0x128] sm:$0xff] %vm302, 0.0
      %342 = vst.msk [vmem:[#allocation2 + $0x130] sm:$0x3] %vm305, 0.0
      %343 = vst.msk [vmem:[#allocation2 + $0x138] sm:$0xff] %vm302, 0.0
      %344 = vst.msk [vmem:[#allocation2 + $0x140] sm:$0xff] %vm302, 0.0
      %345 = vst.msk [vmem:[#allocation2 + $0x148] sm:$0x3] %vm305, 0.0
      %346 = vst.msk [vmem:[#allocation2 + $0x150] sm:$0xff] %vm302, 0.0
      %347 = vst.msk [vmem:[#allocation2 + $0x158] sm:$0xff] %vm302, 0.0
      %348 = vst.msk [vmem:[#allocation2 + $0x160] sm:$0x3] %vm305, 0.0
      %349 = vst.msk [vmem:[#allocation2 + $0x168] sm:$0xff] %vm302, 0.0
      %350 = vst.msk [vmem:[#allocation2 + $0x170] sm:$0xff] %vm302, 0.0
      %351 = vst.msk [vmem:[#allocation2 + $0x178] sm:$0x3] %vm305, 0.0
      %352 = vst.msk [vmem:[#allocation2 + $0x180] sm:$0xff] %vm302, 0.0
      %353 = vst.msk [vmem:[#allocation2 + $0x188] sm:$0xff] %vm302, 0.0
      %354 = vst.msk [vmem:[#allocation2 + $0x190] sm:$0x3] %vm305, 0.0
      %355 = vst.msk [vmem:[#allocation2 + $0x198] sm:$0xff] %vm302, 0.0
      %356 = vst.msk [vmem:[#allocation2 + $0x1a0] sm:$0xff] %vm302, 0.0
      %357 = vst.msk [vmem:[#allocation2 + $0x1a8] sm:$0x3] %vm305, 0.0
      loop: start=0, step=1, limit=16
      $region49: #{upblock2d_forward.3} parent=47 // loop_pre_header
        _
      $region50: #{upblock2d_forward.3} parent=47 // loop_header
        %s359 = sphi 0, %s363
        %p360 = scmp.ge.s32.totalorder %s359, 16
      $region51: #{upblock2d_forward.3} parent=47 // loop_header_branch
        %362 = sbr.rel (%p360) target = $region55
      $region52: #{upblock2d_forward.3} parent=47 // loop_body
        %s364 = smul.u32 %s359, 24
        %s365 = scalar_lea.vmem %s288, %s364
        %v366 = vld [vmem:[%s365] sm:$0xff]
        %v367 = vld [vmem:[%s365 + $0x8] sm:$0xff]
        %v368 = vpack.c.bf16 %v367, %v366
        %s369 = scalar_lea.vmem %s293, %s364
        %v370 = vld [vmem:[%s369] sm:$0xff]
        %v371 = vld [vmem:[%s369 + $0x8] sm:$0xff]
        %v372 = vpack.c.bf16 %v371, %v370
        %v373 = vld [vmem:[%s2] sm:$0x3]
        %v374 = vld [vmem:[%s3] sm:$0x3]
        %v376 = vsel %vm302, %v372, 0
        %vm378 = vcmask 1041408
        %v380 = vsel %vm378, %v374, 0
        %382 = vmatprep.subr.bf16.mxu0 0
        %383 = vmatpush1.bf16.msra.mxu0 0
        %384 = vmatprep.subr.bf16.mxu0 0
        %385 = vmatpush1.bf16.msra.mxu0 0
        %386 = vmatprep.subr.bf16.mxu0 0
        %387 = vmatpush1.bf16.msra.mxu0 0
        %388 = vmatprep.subr.bf16.mxu0 0
        %389 = vmatpush1.bf16.msra.mxu0 0
        %390 = vmatprep.subr.bf16.mxu0 0
        %391 = vmatpush1.bf16.msra.mxu0 0
        %392 = vmatprep.subr.bf16.mxu0 0
        %393 = vmatpush1.bf16.msra.mxu0 0
        %394 = vmatprep.subr.bf16.mxu0 0
        %395 = vmatpush1.bf16.msra.mxu0 0
        %396 = vmatprep.subr.bf16.mxu0 0
        %397 = vmatpush1.bf16.msra.mxu0 %v380
        %398 = vmatprep.subr.bf16.mxu0 0
        %399 = vmatpush2.bf16.msra.mxu0 0
        %400 = vmatprep.subr.bf16.mxu0 0
        %401 = vmatpush2.bf16.msra.mxu0 0
        %402 = vmatprep.subr.bf16.mxu0 0
        %403 = vmatpush2.bf16.msra.mxu0 0
        %404 = vmatprep.subr.bf16.mxu0 0
        %405 = vmatpush2.bf16.msra.mxu0 0
        %406 = vmatprep.subr.bf16.mxu0 0
        %407 = vmatpush2.bf16.msra.mxu0 0
        %408 = vmatprep.subr.bf16.mxu0 0
        %409 = vmatpush2.bf16.msra.mxu0 0
        %410 = vmatprep.subr.bf16.mxu0 0
        %411 = vmatpush2.bf16.msra.mxu0 0
        %412 = vmatprep.subr.bf16.mxu0 0
        %413 = vmatpush2.bf16.msra.mxu0 0
        %414 = vmatprep.mubr.bf16.mxu0 0
        %415 = vmatmul.mubr.bf16.gmra.mxu0 %v376
        %v416 = vpop.f32.mrf.mxu0
        %v417 = vadd.f32 0.0, %v416
        %v418 = vpop.f32.mrf.mxu0
        %v419 = vpop.f32.mrf.mxu0
        %v420 = vadd.f32 0.0, %v419
        %v421 = vpop.f32.mrf.mxu0
        %422 = vdwg.mxu0
        %v424 = vsel %vm302, %v368, 0
        %v427 = vsel %vm378, %v373, 0
        %429 = vmatprep.subr.bf16.mxu0 0
        %430 = vmatpush1.bf16.msra.mxu0 0
        %431 = vmatprep.subr.bf16.mxu0 0
        %432 = vmatpush1.bf16.msra.mxu0 0
        %433 = vmatprep.subr.bf16.mxu0 0
        %434 = vmatpush1.bf16.msra.mxu0 0
        %435 = vmatprep.subr.bf16.mxu0 0
        %436 = vmatpush1.bf16.msra.mxu0 0
        %437 = vmatprep.subr.bf16.mxu0 0
        %438 = vmatpush1.bf16.msra.mxu0 0
        %439 = vmatprep.subr.bf16.mxu0 0
        %440 = vmatpush1.bf16.msra.mxu0 0
        %441 = vmatprep.subr.bf16.mxu0 0
        %442 = vmatpush1.bf16.msra.mxu0 0
        %443 = vmatprep.subr.bf16.mxu0 0
        %444 = vmatpush1.bf16.msra.mxu0 %v427
        %445 = vmatprep.subr.bf16.mxu0 0
        %446 = vmatpush2.bf16.msra.mxu0 0
        %447 = vmatprep.subr.bf16.mxu0 0
        %448 = vmatpush2.bf16.msra.mxu0 0
        %449 = vmatprep.subr.bf16.mxu0 0
        %450 = vmatpush2.bf16.msra.mxu0 0
        %451 = vmatprep.subr.bf16.mxu0 0
        %452 = vmatpush2.bf16.msra.mxu0 0
        %453 = vmatprep.subr.bf16.mxu0 0
        %454 = vmatpush2.bf16.msra.mxu0 0
        %455 = vmatprep.subr.bf16.mxu0 0
        %456 = vmatpush2.bf16.msra.mxu0 0
        %457 = vmatprep.subr.bf16.mxu0 0
        %458 = vmatpush2.bf16.msra.mxu0 0
        %459 = vmatprep.subr.bf16.mxu0 0
        %460 = vmatpush2.bf16.msra.mxu0 0
        %461 = vmatprep.mubr.bf16.mxu0 0
        %462 = vmatmul.mubr.bf16.gmra.mxu0 %v424
        %v463 = vpop.f32.mrf.mxu0
        %v464 = vadd.f32 %v417, %v463
        %v465 = vpop.f32.mrf.mxu0
        %v466 = vpop.f32.mrf.mxu0
        %v467 = vadd.f32 %v420, %v466
        %v468 = vpop.f32.mrf.mxu0
        %469 = vdwg.mxu0
        %v470 = vld [vmem:[%s365 + $0x1] sm:$0xff]
        %v471 = vld [vmem:[%s365 + $0x9] sm:$0xff]
        %v472 = vpack.c.bf16 %v471, %v470
        %v473 = vld [vmem:[%s369 + $0x1] sm:$0xff]
        %v474 = vld [vmem:[%s369 + $0x9] sm:$0xff]
        %v475 = vpack.c.bf16 %v474, %v473
        %s476 = scalar_lea.vmem %s2, 2
        %v477 = vld [vmem:[%s476] sm:$0x3]
        %v479 = vsel %vm302, %v472, 0
        %v482 = vsel %vm378, %v477, 0
        %484 = vmatprep.subr.bf16.mxu0 0
        %485 = vmatpush1.bf16.msra.mxu0 0
        %486 = vmatprep.subr.bf16.mxu0 0
        %487 = vmatpush1.bf16.msra.mxu0 0
        %488 = vmatprep.subr.bf16.mxu0 0
        %489 = vmatpush1.bf16.msra.mxu0 0
        %490 = vmatprep.subr.bf16.mxu0 0
        %491 = vmatpush1.bf16.msra.mxu0 0
        %492 = vmatprep.subr.bf16.mxu0 0
        %493 = vmatpush1.bf16.msra.mxu0 0
        %494 = vmatprep.subr.bf16.mxu0 0
        %495 = vmatpush1.bf16.msra.mxu0 0
        %496 = vmatprep.subr.bf16.mxu0 0
        %497 = vmatpush1.bf16.msra.mxu0 0
        %498 = vmatprep.subr.bf16.mxu0 0
        %499 = vmatpush1.bf16.msra.mxu0 %v482
        %500 = vmatprep.subr.bf16.mxu0 0
        %501 = vmatpush2.bf16.msra.mxu0 0
        %502 = vmatprep.subr.bf16.mxu0 0
        %503 = vmatpush2.bf16.msra.mxu0 0
        %504 = vmatprep.subr.bf16.mxu0 0
        %505 = vmatpush2.bf16.msra.mxu0 0
        %506 = vmatprep.subr.bf16.mxu0 0
        %507 = vmatpush2.bf16.msra.mxu0 0
        %508 = vmatprep.subr.bf16.mxu0 0
        %509 = vmatpush2.bf16.msra.mxu0 0
        %510 = vmatprep.subr.bf16.mxu0 0
        %511 = vmatpush2.bf16.msra.mxu0 0
        %512 = vmatprep.subr.bf16.mxu0 0
        %513 = vmatpush2.bf16.msra.mxu0 0
        %514 = vmatprep.subr.bf16.mxu0 0
        %515 = vmatpush2.bf16.msra.mxu0 0
        %516 = vmatprep.mubr.bf16.mxu0 0
        %517 = vmatmul.mubr.bf16.gmra.mxu0 %v479
        %v518 = vpop.f32.mrf.mxu0
        %v519 = vadd.f32 0.0, %v518
        %v520 = vpop.f32.mrf.mxu0
        %v521 = vpop.f32.mrf.mxu0
        %v522 = vadd.f32 0.0, %v521
        %v523 = vpop.f32.mrf.mxu0
        %524 = vdwg.mxu0
        %v525 = vadd.f32 %v464, %v519
        %v526 = vadd.f32 %v467, %v522
        %s527 = scalar_lea.vmem %s3, 2
        %v528 = vld [vmem:[%s527] sm:$0x3]
        %v530 = vsel %vm302, %v475, 0
        %v533 = vsel %vm378, %v528, 0
        %535 = vmatprep.subr.bf16.mxu0 0
        %536 = vmatpush1.bf16.msra.mxu0 0
        %537 = vmatprep.subr.bf16.mxu0 0
        %538 = vmatpush1.bf16.msra.mxu0 0
        %539 = vmatprep.subr.bf16.mxu0 0
        %540 = vmatpush1.bf16.msra.mxu0 0
        %541 = vmatprep.subr.bf16.mxu0 0
        %542 = vmatpush1.bf16.msra.mxu0 0
        %543 = vmatprep.subr.bf16.mxu0 0
        %544 = vmatpush1.bf16.msra.mxu0 0
        %545 = vmatprep.subr.bf16.mxu0 0
        %546 = vmatpush1.bf16.msra.mxu0 0
        %547 = vmatprep.subr.bf16.mxu0 0
        %548 = vmatpush1.bf16.msra.mxu0 0
        %549 = vmatprep.subr.bf16.mxu0 0
        %550 = vmatpush1.bf16.msra.mxu0 %v533
        %551 = vmatprep.subr.bf16.mxu0 0
        %552 = vmatpush2.bf16.msra.mxu0 0
        %553 = vmatprep.subr.bf16.mxu0 0
        %554 = vmatpush2.bf16.msra.mxu0 0
        %555 = vmatprep.subr.bf16.mxu0 0
        %556 = vmatpush2.bf16.msra.mxu0 0
        %557 = vmatprep.subr.bf16.mxu0 0
        %558 = vmatpush2.bf16.msra.mxu0 0
        %559 = vmatprep.subr.bf16.mxu0 0
        %560 = vmatpush2.bf16.msra.mxu0 0
        %561 = vmatprep.subr.bf16.mxu0 0
        %562 = vmatpush2.bf16.msra.mxu0 0
        %563 = vmatprep.subr.bf16.mxu0 0
        %564 = vmatpush2.bf16.msra.mxu0 0
        %565 = vmatprep.subr.bf16.mxu0 0
        %566 = vmatpush2.bf16.msra.mxu0 0
        %567 = vmatprep.mubr.bf16.mxu0 0
        %568 = vmatmul.mubr.bf16.gmra.mxu0 %v530
        %v569 = vpop.f32.mrf.mxu0
        %v570 = vadd.f32 0.0, %v569
        %v571 = vpop.f32.mrf.mxu0
        %v572 = vpop.f32.mrf.mxu0
        %v573 = vadd.f32 0.0, %v572
        %v574 = vpop.f32.mrf.mxu0
        %575 = vdwg.mxu0
        %v576 = vadd.f32 %v525, %v570
        %v577 = vadd.f32 %v526, %v573
        %v578 = vld [vmem:[%s365 + $0x2] sm:$0xff]
        %v579 = vld [vmem:[%s365 + $0xa] sm:$0xff]
        %v580 = vpack.c.bf16 %v579, %v578
        %v581 = vld [vmem:[%s369 + $0x2] sm:$0xff]
        %v582 = vld [vmem:[%s369 + $0xa] sm:$0xff]
        %v583 = vpack.c.bf16 %v582, %v581
        %s584 = scalar_lea.vmem %s2, 4
        %v585 = vld [vmem:[%s584] sm:$0x3]
        %v587 = vsel %vm302, %v580, 0
        %v590 = vsel %vm378, %v585, 0
        %592 = vmatprep.subr.bf16.mxu0 0
        %593 = vmatpush1.bf16.msra.mxu0 0
        %594 = vmatprep.subr.bf16.mxu0 0
        %595 = vmatpush1.bf16.msra.mxu0 0
        %596 = vmatprep.subr.bf16.mxu0 0
        %597 = vmatpush1.bf16.msra.mxu0 0
        %598 = vmatprep.subr.bf16.mxu0 0
        %599 = vmatpush1.bf16.msra.mxu0 0
        %600 = vmatprep.subr.bf16.mxu0 0
        %601 = vmatpush1.bf16.msra.mxu0 0
        %602 = vmatprep.subr.bf16.mxu0 0
        %603 = vmatpush1.bf16.msra.mxu0 0
        %604 = vmatprep.subr.bf16.mxu0 0
        %605 = vmatpush1.bf16.msra.mxu0 0
        %606 = vmatprep.subr.bf16.mxu0 0
        %607 = vmatpush1.bf16.msra.mxu0 %v590
        %608 = vmatprep.subr.bf16.mxu0 0
        %609 = vmatpush2.bf16.msra.mxu0 0
        %610 = vmatprep.subr.bf16.mxu0 0
        %611 = vmatpush2.bf16.msra.mxu0 0
        %612 = vmatprep.subr.bf16.mxu0 0
        %613 = vmatpush2.bf16.msra.mxu0 0
        %614 = vmatprep.subr.bf16.mxu0 0
        %615 = vmatpush2.bf16.msra.mxu0 0
        %616 = vmatprep.subr.bf16.mxu0 0
        %617 = vmatpush2.bf16.msra.mxu0 0
        %618 = vmatprep.subr.bf16.mxu0 0
        %619 = vmatpush2.bf16.msra.mxu0 0
        %620 = vmatprep.subr.bf16.mxu0 0
        %621 = vmatpush2.bf16.msra.mxu0 0
        %622 = vmatprep.subr.bf16.mxu0 0
        %623 = vmatpush2.bf16.msra.mxu0 0
        %624 = vmatprep.mubr.bf16.mxu0 0
        %625 = vmatmul.mubr.bf16.gmra.mxu0 %v587
        %v626 = vpop.f32.mrf.mxu0
        %v627 = vadd.f32 0.0, %v626
        %v628 = vpop.f32.mrf.mxu0
        %v629 = vpop.f32.mrf.mxu0
        %v630 = vadd.f32 0.0, %v629
        %v631 = vpop.f32.mrf.mxu0
        %632 = vdwg.mxu0
        %v633 = vadd.f32 %v576, %v627
        %v634 = vadd.f32 %v577, %v630
        %s635 = scalar_lea.vmem %s3, 4
        %v636 = vld [vmem:[%s635] sm:$0x3]
        %v638 = vsel %vm302, %v583, 0
        %v641 = vsel %vm378, %v636, 0
        %643 = vmatprep.subr.bf16.mxu0 0
        %644 = vmatpush1.bf16.msra.mxu0 0
        %645 = vmatprep.subr.bf16.mxu0 0
        %646 = vmatpush1.bf16.msra.mxu0 0
        %647 = vmatprep.subr.bf16.mxu0 0
        %648 = vmatpush1.bf16.msra.mxu0 0
        %649 = vmatprep.subr.bf16.mxu0 0
        %650 = vmatpush1.bf16.msra.mxu0 0
        %651 = vmatprep.subr.bf16.mxu0 0
        %652 = vmatpush1.bf16.msra.mxu0 0
        %653 = vmatprep.subr.bf16.mxu0 0
        %654 = vmatpush1.bf16.msra.mxu0 0
        %655 = vmatprep.subr.bf16.mxu0 0
        %656 = vmatpush1.bf16.msra.mxu0 0
        %657 = vmatprep.subr.bf16.mxu0 0
        %658 = vmatpush1.bf16.msra.mxu0 %v641
        %659 = vmatprep.subr.bf16.mxu0 0
        %660 = vmatpush2.bf16.msra.mxu0 0
        %661 = vmatprep.subr.bf16.mxu0 0
        %662 = vmatpush2.bf16.msra.mxu0 0
        %663 = vmatprep.subr.bf16.mxu0 0
        %664 = vmatpush2.bf16.msra.mxu0 0
        %665 = vmatprep.subr.bf16.mxu0 0
        %666 = vmatpush2.bf16.msra.mxu0 0
        %667 = vmatprep.subr.bf16.mxu0 0
        %668 = vmatpush2.bf16.msra.mxu0 0
        %669 = vmatprep.subr.bf16.mxu0 0
        %670 = vmatpush2.bf16.msra.mxu0 0
        %671 = vmatprep.subr.bf16.mxu0 0
        %672 = vmatpush2.bf16.msra.mxu0 0
        %673 = vmatprep.subr.bf16.mxu0 0
        %674 = vmatpush2.bf16.msra.mxu0 0
        %675 = vmatprep.mubr.bf16.mxu0 0
        %676 = vmatmul.mubr.bf16.gmra.mxu0 %v638
        %v677 = vpop.f32.mrf.mxu0
        %v678 = vadd.f32 0.0, %v677
        %v679 = vpop.f32.mrf.mxu0
        %v680 = vpop.f32.mrf.mxu0
        %v681 = vadd.f32 0.0, %v680
        %v682 = vpop.f32.mrf.mxu0
        %683 = vdwg.mxu0
        %v684 = vadd.f32 %v633, %v678
        %v685 = vadd.f32 %v634, %v681
        %s686 = sadd.s32 %s359, 1
        %s687 = smul.u32 %s686, 24
        %s688 = scalar_lea.vmem %s288, %s687
        %v689 = vld [vmem:[%s688] sm:$0xff]
        %v690 = vld [vmem:[%s688 + $0x8] sm:$0xff]
        %v691 = vpack.c.bf16 %v690, %v689
        %s692 = scalar_lea.vmem %s293, %s687
        %v693 = vld [vmem:[%s692] sm:$0xff]
        %v694 = vld [vmem:[%s692 + $0x8] sm:$0xff]
        %v695 = vpack.c.bf16 %v694, %v693
        %s696 = scalar_lea.vmem %s2, 6
        %v697 = vld [vmem:[%s696] sm:$0x3]
        %v699 = vsel %vm302, %v691, 0
        %v702 = vsel %vm378, %v697, 0
        %704 = vmatprep.subr.bf16.mxu0 0
        %705 = vmatpush1.bf16.msra.mxu0 0
        %706 = vmatprep.subr.bf16.mxu0 0
        %707 = vmatpush1.bf16.msra.mxu0 0
        %708 = vmatprep.subr.bf16.mxu0 0
        %709 = vmatpush1.bf16.msra.mxu0 0
        %710 = vmatprep.subr.bf16.mxu0 0
        %711 = vmatpush1.bf16.msra.mxu0 0
        %712 = vmatprep.subr.bf16.mxu0 0
        %713 = vmatpush1.bf16.msra.mxu0 0
        %714 = vmatprep.subr.bf16.mxu0 0
        %715 = vmatpush1.bf16.msra.mxu0 0
        %716 = vmatprep.subr.bf16.mxu0 0
        %717 = vmatpush1.bf16.msra.mxu0 0
        %718 = vmatprep.subr.bf16.mxu0 0
        %719 = vmatpush1.bf16.msra.mxu0 %v702
        %720 = vmatprep.subr.bf16.mxu0 0
        %721 = vmatpush2.bf16.msra.mxu0 0
        %722 = vmatprep.subr.bf16.mxu0 0
        %723 = vmatpush2.bf16.msra.mxu0 0
        %724 = vmatprep.subr.bf16.mxu0 0
        %725 = vmatpush2.bf16.msra.mxu0 0
        %726 = vmatprep.subr.bf16.mxu0 0
        %727 = vmatpush2.bf16.msra.mxu0 0
        %728 = vmatprep.subr.bf16.mxu0 0
        %729 = vmatpush2.bf16.msra.mxu0 0
        %730 = vmatprep.subr.bf16.mxu0 0
        %731 = vmatpush2.bf16.msra.mxu0 0
        %732 = vmatprep.subr.bf16.mxu0 0
        %733 = vmatpush2.bf16.msra.mxu0 0
        %734 = vmatprep.subr.bf16.mxu0 0
        %735 = vmatpush2.bf16.msra.mxu0 0
        %736 = vmatprep.mubr.bf16.mxu0 0
        %737 = vmatmul.mubr.bf16.gmra.mxu0 %v699
        %v738 = vpop.f32.mrf.mxu0
        %v739 = vadd.f32 0.0, %v738
        %v740 = vpop.f32.mrf.mxu0
        %v741 = vpop.f32.mrf.mxu0
        %v742 = vadd.f32 0.0, %v741
        %v743 = vpop.f32.mrf.mxu0
        %744 = vdwg.mxu0
        %v745 = vadd.f32 %v684, %v739
        %v746 = vadd.f32 %v685, %v742
        %s747 = scalar_lea.vmem %s3, 6
        %v748 = vld [vmem:[%s747] sm:$0x3]
        %v750 = vsel %vm302, %v695, 0
        %v753 = vsel %vm378, %v748, 0
        %755 = vmatprep.subr.bf16.mxu0 0
        %756 = vmatpush1.bf16.msra.mxu0 0
        %757 = vmatprep.subr.bf16.mxu0 0
        %758 = vmatpush1.bf16.msra.mxu0 0
        %759 = vmatprep.subr.bf16.mxu0 0
        %760 = vmatpush1.bf16.msra.mxu0 0
        %761 = vmatprep.subr.bf16.mxu0 0
        %762 = vmatpush1.bf16.msra.mxu0 0
        %763 = vmatprep.subr.bf16.mxu0 0
        %764 = vmatpush1.bf16.msra.mxu0 0
        %765 = vmatprep.subr.bf16.mxu0 0
        %766 = vmatpush1.bf16.msra.mxu0 0
        %767 = vmatprep.subr.bf16.mxu0 0
        %768 = vmatpush1.bf16.msra.mxu0 0
        %769 = vmatprep.subr.bf16.mxu0 0
        %770 = vmatpush1.bf16.msra.mxu0 %v753
        %771 = vmatprep.subr.bf16.mxu0 0
        %772 = vmatpush2.bf16.msra.mxu0 0
        %773 = vmatprep.subr.bf16.mxu0 0
        %774 = vmatpush2.bf16.msra.mxu0 0
        %775 = vmatprep.subr.bf16.mxu0 0
        %776 = vmatpush2.bf16.msra.mxu0 0
        %777 = vmatprep.subr.bf16.mxu0 0
        %778 = vmatpush2.bf16.msra.mxu0 0
        %779 = vmatprep.subr.bf16.mxu0 0
        %780 = vmatpush2.bf16.msra.mxu0 0
        %781 = vmatprep.subr.bf16.mxu0 0
        %782 = vmatpush2.bf16.msra.mxu0 0
        %783 = vmatprep.subr.bf16.mxu0 0
        %784 = vmatpush2.bf16.msra.mxu0 0
        %785 = vmatprep.subr.bf16.mxu0 0
        %786 = vmatpush2.bf16.msra.mxu0 0
        %787 = vmatprep.mubr.bf16.mxu0 0
        %788 = vmatmul.mubr.bf16.gmra.mxu0 %v750
        %v789 = vpop.f32.mrf.mxu0
        %v790 = vadd.f32 0.0, %v789
        %v791 = vpop.f32.mrf.mxu0
        %v792 = vpop.f32.mrf.mxu0
        %v793 = vadd.f32 0.0, %v792
        %v794 = vpop.f32.mrf.mxu0
        %795 = vdwg.mxu0
        %v796 = vadd.f32 %v745, %v790
        %v797 = vadd.f32 %v746, %v793
        %v798 = vld [vmem:[%s688 + $0x1] sm:$0xff]
        %v799 = vld [vmem:[%s688 + $0x9] sm:$0xff]
        %v800 = vpack.c.bf16 %v799, %v798
        %v801 = vld [vmem:[%s692 + $0x1] sm:$0xff]
        %v802 = vld [vmem:[%s692 + $0x9] sm:$0xff]
        %v803 = vpack.c.bf16 %v802, %v801
        %s804 = scalar_lea.vmem %s2, 8
        %v805 = vld [vmem:[%s804] sm:$0x3]
        %v807 = vsel %vm302, %v800, 0
        %v810 = vsel %vm378, %v805, 0
        %812 = vmatprep.subr.bf16.mxu0 0
        %813 = vmatpush1.bf16.msra.mxu0 0
        %814 = vmatprep.subr.bf16.mxu0 0
        %815 = vmatpush1.bf16.msra.mxu0 0
        %816 = vmatprep.subr.bf16.mxu0 0
        %817 = vmatpush1.bf16.msra.mxu0 0
        %818 = vmatprep.subr.bf16.mxu0 0
        %819 = vmatpush1.bf16.msra.mxu0 0
        %820 = vmatprep.subr.bf16.mxu0 0
        %821 = vmatpush1.bf16.msra.mxu0 0
        %822 = vmatprep.subr.bf16.mxu0 0
        %823 = vmatpush1.bf16.msra.mxu0 0
        %824 = vmatprep.subr.bf16.mxu0 0
        %825 = vmatpush1.bf16.msra.mxu0 0
        %826 = vmatprep.subr.bf16.mxu0 0
        %827 = vmatpush1.bf16.msra.mxu0 %v810
        %828 = vmatprep.subr.bf16.mxu0 0
        %829 = vmatpush2.bf16.msra.mxu0 0
        %830 = vmatprep.subr.bf16.mxu0 0
        %831 = vmatpush2.bf16.msra.mxu0 0
        %832 = vmatprep.subr.bf16.mxu0 0
        %833 = vmatpush2.bf16.msra.mxu0 0
        %834 = vmatprep.subr.bf16.mxu0 0
        %835 = vmatpush2.bf16.msra.mxu0 0
        %836 = vmatprep.subr.bf16.mxu0 0
        %837 = vmatpush2.bf16.msra.mxu0 0
        %838 = vmatprep.subr.bf16.mxu0 0
        %839 = vmatpush2.bf16.msra.mxu0 0
        %840 = vmatprep.subr.bf16.mxu0 0
        %841 = vmatpush2.bf16.msra.mxu0 0
        %842 = vmatprep.subr.bf16.mxu0 0
        %843 = vmatpush2.bf16.msra.mxu0 0
        %844 = vmatprep.mubr.bf16.mxu0 0
        %845 = vmatmul.mubr.bf16.gmra.mxu0 %v807
        %v846 = vpop.f32.mrf.mxu0
        %v847 = vadd.f32 0.0, %v846
        %v848 = vpop.f32.mrf.mxu0
        %v849 = vpop.f32.mrf.mxu0
        %v850 = vadd.f32 0.0, %v849
        %v851 = vpop.f32.mrf.mxu0
        %852 = vdwg.mxu0
        %v853 = vadd.f32 %v796, %v847
        %v854 = vadd.f32 %v797, %v850
        %s855 = scalar_lea.vmem %s3, 8
        %v856 = vld [vmem:[%s855] sm:$0x3]
        %v858 = vsel %vm302, %v803, 0
        %v861 = vsel %vm378, %v856, 0
        %863 = vmatprep.subr.bf16.mxu0 0
        %864 = vmatpush1.bf16.msra.mxu0 0
        %865 = vmatprep.subr.bf16.mxu0 0
        %866 = vmatpush1.bf16.msra.mxu0 0
        %867 = vmatprep.subr.bf16.mxu0 0
        %868 = vmatpush1.bf16.msra.mxu0 0
        %869 = vmatprep.subr.bf16.mxu0 0
        %870 = vmatpush1.bf16.msra.mxu0 0
        %871 = vmatprep.subr.bf16.mxu0 0
        %872 = vmatpush1.bf16.msra.mxu0 0
        %873 = vmatprep.subr.bf16.mxu0 0
        %874 = vmatpush1.bf16.msra.mxu0 0
        %875 = vmatprep.subr.bf16.mxu0 0
        %876 = vmatpush1.bf16.msra.mxu0 0
        %877 = vmatprep.subr.bf16.mxu0 0
        %878 = vmatpush1.bf16.msra.mxu0 %v861
        %879 = vmatprep.subr.bf16.mxu0 0
        %880 = vmatpush2.bf16.msra.mxu0 0
        %881 = vmatprep.subr.bf16.mxu0 0
        %882 = vmatpush2.bf16.msra.mxu0 0
        %883 = vmatprep.subr.bf16.mxu0 0
        %884 = vmatpush2.bf16.msra.mxu0 0
        %885 = vmatprep.subr.bf16.mxu0 0
        %886 = vmatpush2.bf16.msra.mxu0 0
        %887 = vmatprep.subr.bf16.mxu0 0
        %888 = vmatpush2.bf16.msra.mxu0 0
        %889 = vmatprep.subr.bf16.mxu0 0
        %890 = vmatpush2.bf16.msra.mxu0 0
        %891 = vmatprep.subr.bf16.mxu0 0
        %892 = vmatpush2.bf16.msra.mxu0 0
        %893 = vmatprep.subr.bf16.mxu0 0
        %894 = vmatpush2.bf16.msra.mxu0 0
        %895 = vmatprep.mubr.bf16.mxu0 0
        %896 = vmatmul.mubr.bf16.gmra.mxu0 %v858
        %v897 = vpop.f32.mrf.mxu0
        %v898 = vadd.f32 0.0, %v897
        %v899 = vpop.f32.mrf.mxu0
        %v900 = vpop.f32.mrf.mxu0
        %v901 = vadd.f32 0.0, %v900
        %v902 = vpop.f32.mrf.mxu0
        %903 = vdwg.mxu0
        %v904 = vadd.f32 %v853, %v898
        %v905 = vadd.f32 %v854, %v901
        %v906 = vld [vmem:[%s688 + $0x2] sm:$0xff]
        %v907 = vld [vmem:[%s688 + $0xa] sm:$0xff]
        %v908 = vpack.c.bf16 %v907, %v906
        %v909 = vld [vmem:[%s692 + $0x2] sm:$0xff]
        %v910 = vld [vmem:[%s692 + $0xa] sm:$0xff]
        %v911 = vpack.c.bf16 %v910, %v909
        %s912 = scalar_lea.vmem %s2, 10
        %v913 = vld [vmem:[%s912] sm:$0x3]
        %v915 = vsel %vm302, %v908, 0
        %v918 = vsel %vm378, %v913, 0
        %920 = vmatprep.subr.bf16.mxu0 0
        %921 = vmatpush1.bf16.msra.mxu0 0
        %922 = vmatprep.subr.bf16.mxu0 0
        %923 = vmatpush1.bf16.msra.mxu0 0
        %924 = vmatprep.subr.bf16.mxu0 0
        %925 = vmatpush1.bf16.msra.mxu0 0
        %926 = vmatprep.subr.bf16.mxu0 0
        %927 = vmatpush1.bf16.msra.mxu0 0
        %928 = vmatprep.subr.bf16.mxu0 0
        %929 = vmatpush1.bf16.msra.mxu0 0
        %930 = vmatprep.subr.bf16.mxu0 0
        %931 = vmatpush1.bf16.msra.mxu0 0
        %932 = vmatprep.subr.bf16.mxu0 0
        %933 = vmatpush1.bf16.msra.mxu0 0
        %934 = vmatprep.subr.bf16.mxu0 0
        %935 = vmatpush1.bf16.msra.mxu0 %v918
        %936 = vmatprep.subr.bf16.mxu0 0
        %937 = vmatpush2.bf16.msra.mxu0 0
        %938 = vmatprep.subr.bf16.mxu0 0
        %939 = vmatpush2.bf16.msra.mxu0 0
        %940 = vmatprep.subr.bf16.mxu0 0
        %941 = vmatpush2.bf16.msra.mxu0 0
        %942 = vmatprep.subr.bf16.mxu0 0
        %943 = vmatpush2.bf16.msra.mxu0 0
        %944 = vmatprep.subr.bf16.mxu0 0
        %945 = vmatpush2.bf16.msra.mxu0 0
        %946 = vmatprep.subr.bf16.mxu0 0
        %947 = vmatpush2.bf16.msra.mxu0 0
        %948 = vmatprep.subr.bf16.mxu0 0
        %949 = vmatpush2.bf16.msra.mxu0 0
        %950 = vmatprep.subr.bf16.mxu0 0
        %951 = vmatpush2.bf16.msra.mxu0 0
        %952 = vmatprep.mubr.bf16.mxu0 0
        %953 = vmatmul.mubr.bf16.gmra.mxu0 %v915
        %v954 = vpop.f32.mrf.mxu0
        %v955 = vadd.f32 0.0, %v954
        %v956 = vpop.f32.mrf.mxu0
        %v957 = vpop.f32.mrf.mxu0
        %v958 = vadd.f32 0.0, %v957
        %v959 = vpop.f32.mrf.mxu0
        %960 = vdwg.mxu0
        %v961 = vadd.f32 %v904, %v955
        %v962 = vadd.f32 %v905, %v958
        %s963 = scalar_lea.vmem %s3, 10
        %v964 = vld [vmem:[%s963] sm:$0x3]
        %v966 = vsel %vm302, %v911, 0
        %v969 = vsel %vm378, %v964, 0
        %971 = vmatprep.subr.bf16.mxu0 0
        %972 = vmatpush1.bf16.msra.mxu0 0
        %973 = vmatprep.subr.bf16.mxu0 0
        %974 = vmatpush1.bf16.msra.mxu0 0
        %975 = vmatprep.subr.bf16.mxu0 0
        %976 = vmatpush1.bf16.msra.mxu0 0
        %977 = vmatprep.subr.bf16.mxu0 0
        %978 = vmatpush1.bf16.msra.mxu0 0
        %979 = vmatprep.subr.bf16.mxu0 0
        %980 = vmatpush1.bf16.msra.mxu0 0
        %981 = vmatprep.subr.bf16.mxu0 0
        %982 = vmatpush1.bf16.msra.mxu0 0
        %983 = vmatprep.subr.bf16.mxu0 0
        %984 = vmatpush1.bf16.msra.mxu0 0
        %985 = vmatprep.subr.bf16.mxu0 0
        %986 = vmatpush1.bf16.msra.mxu0 %v969
        %987 = vmatprep.subr.bf16.mxu0 0
        %988 = vmatpush2.bf16.msra.mxu0 0
        %989 = vmatprep.subr.bf16.mxu0 0
        %990 = vmatpush2.bf16.msra.mxu0 0
        %991 = vmatprep.subr.bf16.mxu0 0
        %992 = vmatpush2.bf16.msra.mxu0 0
        %993 = vmatprep.subr.bf16.mxu0 0
        %994 = vmatpush2.bf16.msra.mxu0 0
        %995 = vmatprep.subr.bf16.mxu0 0
        %996 = vmatpush2.bf16.msra.mxu0 0
        %997 = vmatprep.subr.bf16.mxu0 0
        %998 = vmatpush2.bf16.msra.mxu0 0
        %999 = vmatprep.subr.bf16.mxu0 0
        %1000 = vmatpush2.bf16.msra.mxu0 0
        %1001 = vmatprep.subr.bf16.mxu0 0
        %1002 = vmatpush2.bf16.msra.mxu0 0
        %1003 = vmatprep.mubr.bf16.mxu0 0
        %1004 = vmatmul.mubr.bf16.gmra.mxu0 %v966
        %v1005 = vpop.f32.mrf.mxu0
        %v1006 = vadd.f32 0.0, %v1005
        %v1007 = vpop.f32.mrf.mxu0
        %v1008 = vpop.f32.mrf.mxu0
        %v1009 = vadd.f32 0.0, %v1008
        %v1010 = vpop.f32.mrf.mxu0
        %1011 = vdwg.mxu0
        %v1012 = vadd.f32 %v961, %v1006
        %v1013 = vadd.f32 %v962, %v1009
        %s1014 = sadd.s32 %s359, 2
        %s1015 = smul.u32 %s1014, 24
        %s1016 = scalar_lea.vmem %s288, %s1015
        %v1017 = vld [vmem:[%s1016] sm:$0xff]
        %v1018 = vld [vmem:[%s1016 + $0x8] sm:$0xff]
        %v1019 = vpack.c.bf16 %v1018, %v1017
        %s1020 = scalar_lea.vmem %s293, %s1015
        %v1021 = vld [vmem:[%s1020] sm:$0xff]
        %v1022 = vld [vmem:[%s1020 + $0x8] sm:$0xff]
        %v1023 = vpack.c.bf16 %v1022, %v1021
        %s1024 = scalar_lea.vmem %s2, 12
        %v1025 = vld [vmem:[%s1024] sm:$0x3]
        %v1027 = vsel %vm302, %v1019, 0
        %v1030 = vsel %vm378, %v1025, 0
        %1032 = vmatprep.subr.bf16.mxu0 0
        %1033 = vmatpush1.bf16.msra.mxu0 0
        %1034 = vmatprep.subr.bf16.mxu0 0
        %1035 = vmatpush1.bf16.msra.mxu0 0
        %1036 = vmatprep.subr.bf16.mxu0 0
        %1037 = vmatpush1.bf16.msra.mxu0 0
        %1038 = vmatprep.subr.bf16.mxu0 0
        %1039 = vmatpush1.bf16.msra.mxu0 0
        %1040 = vmatprep.subr.bf16.mxu0 0
        %1041 = vmatpush1.bf16.msra.mxu0 0
        %1042 = vmatprep.subr.bf16.mxu0 0
        %1043 = vmatpush1.bf16.msra.mxu0 0
        %1044 = vmatprep.subr.bf16.mxu0 0
        %1045 = vmatpush1.bf16.msra.mxu0 0
        %1046 = vmatprep.subr.bf16.mxu0 0
        %1047 = vmatpush1.bf16.msra.mxu0 %v1030
        %1048 = vmatprep.subr.bf16.mxu0 0
        %1049 = vmatpush2.bf16.msra.mxu0 0
        %1050 = vmatprep.subr.bf16.mxu0 0
        %1051 = vmatpush2.bf16.msra.mxu0 0
        %1052 = vmatprep.subr.bf16.mxu0 0
        %1053 = vmatpush2.bf16.msra.mxu0 0
        %1054 = vmatprep.subr.bf16.mxu0 0
        %1055 = vmatpush2.bf16.msra.mxu0 0
        %1056 = vmatprep.subr.bf16.mxu0 0
        %1057 = vmatpush2.bf16.msra.mxu0 0
        %1058 = vmatprep.subr.bf16.mxu0 0
        %1059 = vmatpush2.bf16.msra.mxu0 0
        %1060 = vmatprep.subr.bf16.mxu0 0
        %1061 = vmatpush2.bf16.msra.mxu0 0
        %1062 = vmatprep.subr.bf16.mxu0 0
        %1063 = vmatpush2.bf16.msra.mxu0 0
        %1064 = vmatprep.mubr.bf16.mxu0 0
        %1065 = vmatmul.mubr.bf16.gmra.mxu0 %v1027
        %v1066 = vpop.f32.mrf.mxu0
        %v1067 = vadd.f32 0.0, %v1066
        %v1068 = vpop.f32.mrf.mxu0
        %v1069 = vpop.f32.mrf.mxu0
        %v1070 = vadd.f32 0.0, %v1069
        %v1071 = vpop.f32.mrf.mxu0
        %1072 = vdwg.mxu0
        %v1073 = vadd.f32 %v1012, %v1067
        %v1074 = vadd.f32 %v1013, %v1070
        %s1075 = scalar_lea.vmem %s3, 12
        %v1076 = vld [vmem:[%s1075] sm:$0x3]
        %v1078 = vsel %vm302, %v1023, 0
        %v1081 = vsel %vm378, %v1076, 0
        %1083 = vmatprep.subr.bf16.mxu0 0
        %1084 = vmatpush1.bf16.msra.mxu0 0
        %1085 = vmatprep.subr.bf16.mxu0 0
        %1086 = vmatpush1.bf16.msra.mxu0 0
        %1087 = vmatprep.subr.bf16.mxu0 0
        %1088 = vmatpush1.bf16.msra.mxu0 0
        %1089 = vmatprep.subr.bf16.mxu0 0
        %1090 = vmatpush1.bf16.msra.mxu0 0
        %1091 = vmatprep.subr.bf16.mxu0 0
        %1092 = vmatpush1.bf16.msra.mxu0 0
        %1093 = vmatprep.subr.bf16.mxu0 0
        %1094 = vmatpush1.bf16.msra.mxu0 0
        %1095 = vmatprep.subr.bf16.mxu0 0
        %1096 = vmatpush1.bf16.msra.mxu0 0
        %1097 = vmatprep.subr.bf16.mxu0 0
        %1098 = vmatpush1.bf16.msra.mxu0 %v1081
        %1099 = vmatprep.subr.bf16.mxu0 0
        %1100 = vmatpush2.bf16.msra.mxu0 0
        %1101 = vmatprep.subr.bf16.mxu0 0
        %1102 = vmatpush2.bf16.msra.mxu0 0
        %1103 = vmatprep.subr.bf16.mxu0 0
        %1104 = vmatpush2.bf16.msra.mxu0 0
        %1105 = vmatprep.subr.bf16.mxu0 0
        %1106 = vmatpush2.bf16.msra.mxu0 0
        %1107 = vmatprep.subr.bf16.mxu0 0
        %1108 = vmatpush2.bf16.msra.mxu0 0
        %1109 = vmatprep.subr.bf16.mxu0 0
        %1110 = vmatpush2.bf16.msra.mxu0 0
        %1111 = vmatprep.subr.bf16.mxu0 0
        %1112 = vmatpush2.bf16.msra.mxu0 0
        %1113 = vmatprep.subr.bf16.mxu0 0
        %1114 = vmatpush2.bf16.msra.mxu0 0
        %1115 = vmatprep.mubr.bf16.mxu0 0
        %1116 = vmatmul.mubr.bf16.gmra.mxu0 %v1078
        %v1117 = vpop.f32.mrf.mxu0
        %v1118 = vadd.f32 0.0, %v1117
        %v1119 = vpop.f32.mrf.mxu0
        %v1120 = vpop.f32.mrf.mxu0
        %v1121 = vadd.f32 0.0, %v1120
        %v1122 = vpop.f32.mrf.mxu0
        %1123 = vdwg.mxu0
        %v1124 = vadd.f32 %v1073, %v1118
        %v1125 = vadd.f32 %v1074, %v1121
        %v1126 = vld [vmem:[%s1016 + $0x1] sm:$0xff]
        %v1127 = vld [vmem:[%s1016 + $0x9] sm:$0xff]
        %v1128 = vpack.c.bf16 %v1127, %v1126
        %v1129 = vld [vmem:[%s1020 + $0x1] sm:$0xff]
        %v1130 = vld [vmem:[%s1020 + $0x9] sm:$0xff]
        %v1131 = vpack.c.bf16 %v1130, %v1129
        %s1132 = scalar_lea.vmem %s2, 14
        %v1133 = vld [vmem:[%s1132] sm:$0x3]
        %v1135 = vsel %vm302, %v1128, 0
        %v1138 = vsel %vm378, %v1133, 0
        %1140 = vmatprep.subr.bf16.mxu0 0
        %1141 = vmatpush1.bf16.msra.mxu0 0
        %1142 = vmatprep.subr.bf16.mxu0 0
        %1143 = vmatpush1.bf16.msra.mxu0 0
        %1144 = vmatprep.subr.bf16.mxu0 0
        %1145 = vmatpush1.bf16.msra.mxu0 0
        %1146 = vmatprep.subr.bf16.mxu0 0
        %1147 = vmatpush1.bf16.msra.mxu0 0
        %1148 = vmatprep.subr.bf16.mxu0 0
        %1149 = vmatpush1.bf16.msra.mxu0 0
        %1150 = vmatprep.subr.bf16.mxu0 0
        %1151 = vmatpush1.bf16.msra.mxu0 0
        %1152 = vmatprep.subr.bf16.mxu0 0
        %1153 = vmatpush1.bf16.msra.mxu0 0
        %1154 = vmatprep.subr.bf16.mxu0 0
        %1155 = vmatpush1.bf16.msra.mxu0 %v1138
        %1156 = vmatprep.subr.bf16.mxu0 0
        %1157 = vmatpush2.bf16.msra.mxu0 0
        %1158 = vmatprep.subr.bf16.mxu0 0
        %1159 = vmatpush2.bf16.msra.mxu0 0
        %1160 = vmatprep.subr.bf16.mxu0 0
        %1161 = vmatpush2.bf16.msra.mxu0 0
        %1162 = vmatprep.subr.bf16.mxu0 0
        %1163 = vmatpush2.bf16.msra.mxu0 0
        %1164 = vmatprep.subr.bf16.mxu0 0
        %1165 = vmatpush2.bf16.msra.mxu0 0
        %1166 = vmatprep.subr.bf16.mxu0 0
        %1167 = vmatpush2.bf16.msra.mxu0 0
        %1168 = vmatprep.subr.bf16.mxu0 0
        %1169 = vmatpush2.bf16.msra.mxu0 0
        %1170 = vmatprep.subr.bf16.mxu0 0
        %1171 = vmatpush2.bf16.msra.mxu0 0
        %1172 = vmatprep.mubr.bf16.mxu0 0
        %1173 = vmatmul.mubr.bf16.gmra.mxu0 %v1135
        %v1174 = vpop.f32.mrf.mxu0
        %v1175 = vadd.f32 0.0, %v1174
        %v1176 = vpop.f32.mrf.mxu0
        %v1177 = vpop.f32.mrf.mxu0
        %v1178 = vadd.f32 0.0, %v1177
        %v1179 = vpop.f32.mrf.mxu0
        %1180 = vdwg.mxu0
        %v1181 = vadd.f32 %v1124, %v1175
        %v1182 = vadd.f32 %v1125, %v1178
        %s1183 = scalar_lea.vmem %s3, 14
        %v1184 = vld [vmem:[%s1183] sm:$0x3]
        %v1186 = vsel %vm302, %v1131, 0
        %v1189 = vsel %vm378, %v1184, 0
        %1191 = vmatprep.subr.bf16.mxu0 0
        %1192 = vmatpush1.bf16.msra.mxu0 0
        %1193 = vmatprep.subr.bf16.mxu0 0
        %1194 = vmatpush1.bf16.msra.mxu0 0
        %1195 = vmatprep.subr.bf16.mxu0 0
        %1196 = vmatpush1.bf16.msra.mxu0 0
        %1197 = vmatprep.subr.bf16.mxu0 0
        %1198 = vmatpush1.bf16.msra.mxu0 0
        %1199 = vmatprep.subr.bf16.mxu0 0
        %1200 = vmatpush1.bf16.msra.mxu0 0
        %1201 = vmatprep.subr.bf16.mxu0 0
        %1202 = vmatpush1.bf16.msra.mxu0 0
        %1203 = vmatprep.subr.bf16.mxu0 0
        %1204 = vmatpush1.bf16.msra.mxu0 0
        %1205 = vmatprep.subr.bf16.mxu0 0
        %1206 = vmatpush1.bf16.msra.mxu0 %v1189
        %1207 = vmatprep.subr.bf16.mxu0 0
        %1208 = vmatpush2.bf16.msra.mxu0 0
        %1209 = vmatprep.subr.bf16.mxu0 0
        %1210 = vmatpush2.bf16.msra.mxu0 0
        %1211 = vmatprep.subr.bf16.mxu0 0
        %1212 = vmatpush2.bf16.msra.mxu0 0
        %1213 = vmatprep.subr.bf16.mxu0 0
        %1214 = vmatpush2.bf16.msra.mxu0 0
        %1215 = vmatprep.subr.bf16.mxu0 0
        %1216 = vmatpush2.bf16.msra.mxu0 0
        %1217 = vmatprep.subr.bf16.mxu0 0
        %1218 = vmatpush2.bf16.msra.mxu0 0
        %1219 = vmatprep.subr.bf16.mxu0 0
        %1220 = vmatpush2.bf16.msra.mxu0 0
        %1221 = vmatprep.subr.bf16.mxu0 0
        %1222 = vmatpush2.bf16.msra.mxu0 0
        %1223 = vmatprep.mubr.bf16.mxu0 0
        %1224 = vmatmul.mubr.bf16.gmra.mxu0 %v1186
        %v1225 = vpop.f32.mrf.mxu0
        %v1226 = vadd.f32 0.0, %v1225
        %v1227 = vpop.f32.mrf.mxu0
        %v1228 = vpop.f32.mrf.mxu0
        %v1229 = vadd.f32 0.0, %v1228
        %v1230 = vpop.f32.mrf.mxu0
        %1231 = vdwg.mxu0
        %v1232 = vadd.f32 %v1181, %v1226
        %v1233 = vadd.f32 %v1182, %v1229
        %v1234 = vld [vmem:[%s1016 + $0x2] sm:$0xff]
        %v1235 = vld [vmem:[%s1016 + $0xa] sm:$0xff]
        %v1236 = vpack.c.bf16 %v1235, %v1234
        %v1237 = vld [vmem:[%s1020 + $0x2] sm:$0xff]
        %v1238 = vld [vmem:[%s1020 + $0xa] sm:$0xff]
        %v1239 = vpack.c.bf16 %v1238, %v1237
        %s1240 = scalar_lea.vmem %s2, 16
        %v1241 = vld [vmem:[%s1240] sm:$0x3]
        %v1243 = vsel %vm302, %v1236, 0
        %v1246 = vsel %vm378, %v1241, 0
        %1248 = vmatprep.subr.bf16.mxu0 0
        %1249 = vmatpush1.bf16.msra.mxu0 0
        %1250 = vmatprep.subr.bf16.mxu0 0
        %1251 = vmatpush1.bf16.msra.mxu0 0
        %1252 = vmatprep.subr.bf16.mxu0 0
        %1253 = vmatpush1.bf16.msra.mxu0 0
        %1254 = vmatprep.subr.bf16.mxu0 0
        %1255 = vmatpush1.bf16.msra.mxu0 0
        %1256 = vmatprep.subr.bf16.mxu0 0
        %1257 = vmatpush1.bf16.msra.mxu0 0
        %1258 = vmatprep.subr.bf16.mxu0 0
        %1259 = vmatpush1.bf16.msra.mxu0 0
        %1260 = vmatprep.subr.bf16.mxu0 0
        %1261 = vmatpush1.bf16.msra.mxu0 0
        %1262 = vmatprep.subr.bf16.mxu0 0
        %1263 = vmatpush1.bf16.msra.mxu0 %v1246
        %1264 = vmatprep.subr.bf16.mxu0 0
        %1265 = vmatpush2.bf16.msra.mxu0 0
        %1266 = vmatprep.subr.bf16.mxu0 0
        %1267 = vmatpush2.bf16.msra.mxu0 0
        %1268 = vmatprep.subr.bf16.mxu0 0
        %1269 = vmatpush2.bf16.msra.mxu0 0
        %1270 = vmatprep.subr.bf16.mxu0 0
        %1271 = vmatpush2.bf16.msra.mxu0 0
        %1272 = vmatprep.subr.bf16.mxu0 0
        %1273 = vmatpush2.bf16.msra.mxu0 0
        %1274 = vmatprep.subr.bf16.mxu0 0
        %1275 = vmatpush2.bf16.msra.mxu0 0
        %1276 = vmatprep.subr.bf16.mxu0 0
        %1277 = vmatpush2.bf16.msra.mxu0 0
        %1278 = vmatprep.subr.bf16.mxu0 0
        %1279 = vmatpush2.bf16.msra.mxu0 0
        %1280 = vmatprep.mubr.bf16.mxu0 0
        %1281 = vmatmul.mubr.bf16.gmra.mxu0 %v1243
        %v1282 = vpop.f32.mrf.mxu0
        %v1283 = vadd.f32 0.0, %v1282
        %v1284 = vpop.f32.mrf.mxu0
        %v1285 = vpop.f32.mrf.mxu0
        %v1286 = vadd.f32 0.0, %v1285
        %v1287 = vpop.f32.mrf.mxu0
        %1288 = vdwg.mxu0
        %v1289 = vadd.f32 %v1232, %v1283
        %v1290 = vadd.f32 %v1233, %v1286
        %s1291 = scalar_lea.vmem %s3, 16
        %v1292 = vld [vmem:[%s1291] sm:$0x3]
        %v1294 = vsel %vm302, %v1239, 0
        %v1297 = vsel %vm378, %v1292, 0
        %1299 = vmatprep.subr.bf16.mxu0 0
        %1300 = vmatpush1.bf16.msra.mxu0 0
        %1301 = vmatprep.subr.bf16.mxu0 0
        %1302 = vmatpush1.bf16.msra.mxu0 0
        %1303 = vmatprep.subr.bf16.mxu0 0
        %1304 = vmatpush1.bf16.msra.mxu0 0
        %1305 = vmatprep.subr.bf16.mxu0 0
        %1306 = vmatpush1.bf16.msra.mxu0 0
        %1307 = vmatprep.subr.bf16.mxu0 0
        %1308 = vmatpush1.bf16.msra.mxu0 0
        %1309 = vmatprep.subr.bf16.mxu0 0
        %1310 = vmatpush1.bf16.msra.mxu0 0
        %1311 = vmatprep.subr.bf16.mxu0 0
        %1312 = vmatpush1.bf16.msra.mxu0 0
        %1313 = vmatprep.subr.bf16.mxu0 0
        %1314 = vmatpush1.bf16.msra.mxu0 %v1297
        %1315 = vmatprep.subr.bf16.mxu0 0
        %1316 = vmatpush2.bf16.msra.mxu0 0
        %1317 = vmatprep.subr.bf16.mxu0 0
        %1318 = vmatpush2.bf16.msra.mxu0 0
        %1319 = vmatprep.subr.bf16.mxu0 0
        %1320 = vmatpush2.bf16.msra.mxu0 0
        %1321 = vmatprep.subr.bf16.mxu0 0
        %1322 = vmatpush2.bf16.msra.mxu0 0
        %1323 = vmatprep.subr.bf16.mxu0 0
        %1324 = vmatpush2.bf16.msra.mxu0 0
        %1325 = vmatprep.subr.bf16.mxu0 0
        %1326 = vmatpush2.bf16.msra.mxu0 0
        %1327 = vmatprep.subr.bf16.mxu0 0
        %1328 = vmatpush2.bf16.msra.mxu0 0
        %1329 = vmatprep.subr.bf16.mxu0 0
        %1330 = vmatpush2.bf16.msra.mxu0 0
        %1331 = vmatprep.mubr.bf16.mxu0 0
        %1332 = vmatmul.mubr.bf16.gmra.mxu0 %v1294
        %v1333 = vpop.f32.mrf.mxu0
        %v1334 = vadd.f32 0.0, %v1333
        %v1335 = vpop.f32.mrf.mxu0
        %v1336 = vpop.f32.mrf.mxu0
        %v1337 = vadd.f32 0.0, %v1336
        %v1338 = vpop.f32.mrf.mxu0
        %1339 = vdwg.mxu0
        %v1340 = vadd.f32 %v1289, %v1334
        %v1341 = vadd.f32 %v1290, %v1337
        %v1343 = vlaneseq
        %v1344 = vshrl.u32 %v1343, 7
        %v1345 = vsub.s32 0, %v1344
        %v1346 = vrot.slane %v300, %v1345
        %v1348 = vadd.f32 %v1340, %v1346
        %v1349 = vadd.f32 %v1341, %v1346
        %v1350 = vmax.f32 %v1348, 0.0
        %v1351 = vmax.f32 %v1349, 0.0
        %s1352 = scalar_lea.vmem [#allocation2], %s687
        %1353 = vst.msk [vmem:[%s1352 + $0x1] sm:$0xff] %vm302, %v1350
        %1354 = vst.msk [vmem:[%s1352 + $0x9] sm:$0xff] %vm302, %v1351
      $region53: #{upblock2d_forward.3} parent=47 // loop_footer
        %s363 = sadd.s32 1, %s359
      $region54: #{upblock2d_forward.3} parent=47 // loop_footer_branch
        %358 = sbr.rel target = $region50
      $region55: #{upblock2d_forward.3} parent=47 // loop_exit
        _
      loop: start=0, step=1, limit=16
      $region56: #{upblock2d_forward.3} parent=47 // loop_pre_header
        _
      $region57: #{upblock2d_forward.3} parent=47 // loop_header
        %s1356 = sphi 0, %s1360
        %p1357 = scmp.ge.s32.totalorder %s1356, 16
      $region58: #{upblock2d_forward.3} parent=47 // loop_header_branch
        %1359 = sbr.rel (%p1357) target = $region62
      $region59: #{upblock2d_forward.3} parent=47 // loop_body
        %s1361 = smul.u32 %s1356, 24
        %s1362 = scalar_lea.vmem [#allocation2], %s1361
        %v1363 = vld [vmem:[%s1362] sm:$0xff]
        %v1364 = vld [vmem:[%s1362 + $0x8] sm:$0xff]
        %v1365 = vpack.c.bf16 %v1364, %v1363
        %v1366 = vld [vmem:[%s5] sm:$0x3]
        %v1367 = vld [vmem:[%s1362 + $0x1] sm:$0xff]
        %v1368 = vld [vmem:[%s1362 + $0x9] sm:$0xff]
        %v1369 = vpack.c.bf16 %v1368, %v1367
        %s1370 = scalar_lea.vmem %s5, 2
        %v1371 = vld [vmem:[%s1370] sm:$0x3]
        %v1373 = vsel %vm302, %v1369, 0
        %vm1375 = vcmask 1041408
        %v1377 = vsel %vm1375, %v1371, 0
        %1379 = vmatprep.subr.bf16.mxu0 0
        %1380 = vmatpush1.bf16.msra.mxu0 0
        %1381 = vmatprep.subr.bf16.mxu0 0
        %1382 = vmatpush1.bf16.msra.mxu0 0
        %1383 = vmatprep.subr.bf16.mxu0 0
        %1384 = vmatpush1.bf16.msra.mxu0 0
        %1385 = vmatprep.subr.bf16.mxu0 0
        %1386 = vmatpush1.bf16.msra.mxu0 0
        %1387 = vmatprep.subr.bf16.mxu0 0
        %1388 = vmatpush1.bf16.msra.mxu0 0
        %1389 = vmatprep.subr.bf16.mxu0 0
        %1390 = vmatpush1.bf16.msra.mxu0 0
        %1391 = vmatprep.subr.bf16.mxu0 0
        %1392 = vmatpush1.bf16.msra.mxu0 0
        %1393 = vmatprep.subr.bf16.mxu0 0
        %1394 = vmatpush1.bf16.msra.mxu0 %v1377
        %1395 = vmatprep.subr.bf16.mxu0 0
        %1396 = vmatpush2.bf16.msra.mxu0 0
        %1397 = vmatprep.subr.bf16.mxu0 0
        %1398 = vmatpush2.bf16.msra.mxu0 0
        %1399 = vmatprep.subr.bf16.mxu0 0
        %1400 = vmatpush2.bf16.msra.mxu0 0
        %1401 = vmatprep.subr.bf16.mxu0 0
        %1402 = vmatpush2.bf16.msra.mxu0 0
        %1403 = vmatprep.subr.bf16.mxu0 0
        %1404 = vmatpush2.bf16.msra.mxu0 0
        %1405 = vmatprep.subr.bf16.mxu0 0
        %1406 = vmatpush2.bf16.msra.mxu0 0
        %1407 = vmatprep.subr.bf16.mxu0 0
        %1408 = vmatpush2.bf16.msra.mxu0 0
        %1409 = vmatprep.subr.bf16.mxu0 0
        %1410 = vmatpush2.bf16.msra.mxu0 0
        %1411 = vmatprep.mubr.bf16.mxu0 0
        %1412 = vmatmul.mubr.bf16.gmra.mxu0 %v1373
        %v1413 = vpop.f32.mrf.mxu0
        %v1414 = vadd.f32 0.0, %v1413
        %v1415 = vpop.f32.mrf.mxu0
        %v1416 = vpop.f32.mrf.mxu0
        %v1417 = vadd.f32 0.0, %v1416
        %v1418 = vpop.f32.mrf.mxu0
        %1419 = vdwg.mxu0
        %v1421 = vsel %vm302, %v1365, 0
        %v1424 = vsel %vm1375, %v1366, 0
        %1426 = vmatprep.subr.bf16.mxu0 0
        %1427 = vmatpush1.bf16.msra.mxu0 0
        %1428 = vmatprep.subr.bf16.mxu0 0
        %1429 = vmatpush1.bf16.msra.mxu0 0
        %1430 = vmatprep.subr.bf16.mxu0 0
        %1431 = vmatpush1.bf16.msra.mxu0 0
        %1432 = vmatprep.subr.bf16.mxu0 0
        %1433 = vmatpush1.bf16.msra.mxu0 0
        %1434 = vmatprep.subr.bf16.mxu0 0
        %1435 = vmatpush1.bf16.msra.mxu0 0
        %1436 = vmatprep.subr.bf16.mxu0 0
        %1437 = vmatpush1.bf16.msra.mxu0 0
        %1438 = vmatprep.subr.bf16.mxu0 0
        %1439 = vmatpush1.bf16.msra.mxu0 0
        %1440 = vmatprep.subr.bf16.mxu0 0
        %1441 = vmatpush1.bf16.msra.mxu0 %v1424
        %1442 = vmatprep.subr.bf16.mxu0 0
        %1443 = vmatpush2.bf16.msra.mxu0 0
        %1444 = vmatprep.subr.bf16.mxu0 0
        %1445 = vmatpush2.bf16.msra.mxu0 0
        %1446 = vmatprep.subr.bf16.mxu0 0
        %1447 = vmatpush2.bf16.msra.mxu0 0
        %1448 = vmatprep.subr.bf16.mxu0 0
        %1449 = vmatpush2.bf16.msra.mxu0 0
        %1450 = vmatprep.subr.bf16.mxu0 0
        %1451 = vmatpush2.bf16.msra.mxu0 0
        %1452 = vmatprep.subr.bf16.mxu0 0
        %1453 = vmatpush2.bf16.msra.mxu0 0
        %1454 = vmatprep.subr.bf16.mxu0 0
        %1455 = vmatpush2.bf16.msra.mxu0 0
        %1456 = vmatprep.subr.bf16.mxu0 0
        %1457 = vmatpush2.bf16.msra.mxu0 0
        %1458 = vmatprep.mubr.bf16.mxu0 0
        %1459 = vmatmul.mubr.bf16.gmra.mxu0 %v1421
        %v1460 = vpop.f32.mrf.mxu0
        %v1461 = vadd.f32 %v1414, %v1460
        %v1462 = vpop.f32.mrf.mxu0
        %v1463 = vpop.f32.mrf.mxu0
        %v1464 = vadd.f32 %v1417, %v1463
        %v1465 = vpop.f32.mrf.mxu0
        %1466 = vdwg.mxu0
        %v1467 = vld [vmem:[%s1362 + $0x2] sm:$0xff]
        %v1468 = vld [vmem:[%s1362 + $0xa] sm:$0xff]
        %v1469 = vpack.c.bf16 %v1468, %v1467
        %s1470 = scalar_lea.vmem %s5, 4
        %v1471 = vld [vmem:[%s1470] sm:$0x3]
        %v1473 = vsel %vm302, %v1469, 0
        %v1476 = vsel %vm1375, %v1471, 0
        %1478 = vmatprep.subr.bf16.mxu0 0
        %1479 = vmatpush1.bf16.msra.mxu0 0
        %1480 = vmatprep.subr.bf16.mxu0 0
        %1481 = vmatpush1.bf16.msra.mxu0 0
        %1482 = vmatprep.subr.bf16.mxu0 0
        %1483 = vmatpush1.bf16.msra.mxu0 0
        %1484 = vmatprep.subr.bf16.mxu0 0
        %1485 = vmatpush1.bf16.msra.mxu0 0
        %1486 = vmatprep.subr.bf16.mxu0 0
        %1487 = vmatpush1.bf16.msra.mxu0 0
        %1488 = vmatprep.subr.bf16.mxu0 0
        %1489 = vmatpush1.bf16.msra.mxu0 0
        %1490 = vmatprep.subr.bf16.mxu0 0
        %1491 = vmatpush1.bf16.msra.mxu0 0
        %1492 = vmatprep.subr.bf16.mxu0 0
        %1493 = vmatpush1.bf16.msra.mxu0 %v1476
        %1494 = vmatprep.subr.bf16.mxu0 0
        %1495 = vmatpush2.bf16.msra.mxu0 0
        %1496 = vmatprep.subr.bf16.mxu0 0
        %1497 = vmatpush2.bf16.msra.mxu0 0
        %1498 = vmatprep.subr.bf16.mxu0 0
        %1499 = vmatpush2.bf16.msra.mxu0 0
        %1500 = vmatprep.subr.bf16.mxu0 0
        %1501 = vmatpush2.bf16.msra.mxu0 0
        %1502 = vmatprep.subr.bf16.mxu0 0
        %1503 = vmatpush2.bf16.msra.mxu0 0
        %1504 = vmatprep.subr.bf16.mxu0 0
        %1505 = vmatpush2.bf16.msra.mxu0 0
        %1506 = vmatprep.subr.bf16.mxu0 0
        %1507 = vmatpush2.bf16.msra.mxu0 0
        %1508 = vmatprep.subr.bf16.mxu0 0
        %1509 = vmatpush2.bf16.msra.mxu0 0
        %1510 = vmatprep.mubr.bf16.mxu0 0
        %1511 = vmatmul.mubr.bf16.gmra.mxu0 %v1473
        %v1512 = vpop.f32.mrf.mxu0
        %v1513 = vadd.f32 0.0, %v1512
        %v1514 = vpop.f32.mrf.mxu0
        %v1515 = vpop.f32.mrf.mxu0
        %v1516 = vadd.f32 0.0, %v1515
        %v1517 = vpop.f32.mrf.mxu0
        %1518 = vdwg.mxu0
        %v1519 = vadd.f32 %v1461, %v1513
        %v1520 = vadd.f32 %v1464, %v1516
        %s1521 = sadd.s32 %s1356, 1
        %s1522 = smul.u32 %s1521, 24
        %s1523 = scalar_lea.vmem [#allocation2], %s1522
        %v1524 = vld [vmem:[%s1523] sm:$0xff]
        %v1525 = vld [vmem:[%s1523 + $0x8] sm:$0xff]
        %v1526 = vpack.c.bf16 %v1525, %v1524
        %s1527 = scalar_lea.vmem %s5, 6
        %v1528 = vld [vmem:[%s1527] sm:$0x3]
        %v1530 = vsel %vm302, %v1526, 0
        %v1533 = vsel %vm1375, %v1528, 0
        %1535 = vmatprep.subr.bf16.mxu0 0
        %1536 = vmatpush1.bf16.msra.mxu0 0
        %1537 = vmatprep.subr.bf16.mxu0 0
        %1538 = vmatpush1.bf16.msra.mxu0 0
        %1539 = vmatprep.subr.bf16.mxu0 0
        %1540 = vmatpush1.bf16.msra.mxu0 0
        %1541 = vmatprep.subr.bf16.mxu0 0
        %1542 = vmatpush1.bf16.msra.mxu0 0
        %1543 = vmatprep.subr.bf16.mxu0 0
        %1544 = vmatpush1.bf16.msra.mxu0 0
        %1545 = vmatprep.subr.bf16.mxu0 0
        %1546 = vmatpush1.bf16.msra.mxu0 0
        %1547 = vmatprep.subr.bf16.mxu0 0
        %1548 = vmatpush1.bf16.msra.mxu0 0
        %1549 = vmatprep.subr.bf16.mxu0 0
        %1550 = vmatpush1.bf16.msra.mxu0 %v1533
        %1551 = vmatprep.subr.bf16.mxu0 0
        %1552 = vmatpush2.bf16.msra.mxu0 0
        %1553 = vmatprep.subr.bf16.mxu0 0
        %1554 = vmatpush2.bf16.msra.mxu0 0
        %1555 = vmatprep.subr.bf16.mxu0 0
        %1556 = vmatpush2.bf16.msra.mxu0 0
        %1557 = vmatprep.subr.bf16.mxu0 0
        %1558 = vmatpush2.bf16.msra.mxu0 0
        %1559 = vmatprep.subr.bf16.mxu0 0
        %1560 = vmatpush2.bf16.msra.mxu0 0
        %1561 = vmatprep.subr.bf16.mxu0 0
        %1562 = vmatpush2.bf16.msra.mxu0 0
        %1563 = vmatprep.subr.bf16.mxu0 0
        %1564 = vmatpush2.bf16.msra.mxu0 0
        %1565 = vmatprep.subr.bf16.mxu0 0
        %1566 = vmatpush2.bf16.msra.mxu0 0
        %1567 = vmatprep.mubr.bf16.mxu0 0
        %1568 = vmatmul.mubr.bf16.gmra.mxu0 %v1530
        %v1569 = vpop.f32.mrf.mxu0
        %v1570 = vadd.f32 0.0, %v1569
        %v1571 = vpop.f32.mrf.mxu0
        %v1572 = vpop.f32.mrf.mxu0
        %v1573 = vadd.f32 0.0, %v1572
        %v1574 = vpop.f32.mrf.mxu0
        %1575 = vdwg.mxu0
        %v1576 = vadd.f32 %v1519, %v1570
        %v1577 = vadd.f32 %v1520, %v1573
        %v1578 = vld [vmem:[%s1523 + $0x1] sm:$0xff]
        %v1579 = vld [vmem:[%s1523 + $0x9] sm:$0xff]
        %v1580 = vpack.c.bf16 %v1579, %v1578
        %s1581 = scalar_lea.vmem %s5, 8
        %v1582 = vld [vmem:[%s1581] sm:$0x3]
        %v1584 = vsel %vm302, %v1580, 0
        %v1587 = vsel %vm1375, %v1582, 0
        %1589 = vmatprep.subr.bf16.mxu0 0
        %1590 = vmatpush1.bf16.msra.mxu0 0
        %1591 = vmatprep.subr.bf16.mxu0 0
        %1592 = vmatpush1.bf16.msra.mxu0 0
        %1593 = vmatprep.subr.bf16.mxu0 0
        %1594 = vmatpush1.bf16.msra.mxu0 0
        %1595 = vmatprep.subr.bf16.mxu0 0
        %1596 = vmatpush1.bf16.msra.mxu0 0
        %1597 = vmatprep.subr.bf16.mxu0 0
        %1598 = vmatpush1.bf16.msra.mxu0 0
        %1599 = vmatprep.subr.bf16.mxu0 0
        %1600 = vmatpush1.bf16.msra.mxu0 0
        %1601 = vmatprep.subr.bf16.mxu0 0
        %1602 = vmatpush1.bf16.msra.mxu0 0
        %1603 = vmatprep.subr.bf16.mxu0 0
        %1604 = vmatpush1.bf16.msra.mxu0 %v1587
        %1605 = vmatprep.subr.bf16.mxu0 0
        %1606 = vmatpush2.bf16.msra.mxu0 0
        %1607 = vmatprep.subr.bf16.mxu0 0
        %1608 = vmatpush2.bf16.msra.mxu0 0
        %1609 = vmatprep.subr.bf16.mxu0 0
        %1610 = vmatpush2.bf16.msra.mxu0 0
        %1611 = vmatprep.subr.bf16.mxu0 0
        %1612 = vmatpush2.bf16.msra.mxu0 0
        %1613 = vmatprep.subr.bf16.mxu0 0
        %1614 = vmatpush2.bf16.msra.mxu0 0
        %1615 = vmatprep.subr.bf16.mxu0 0
        %1616 = vmatpush2.bf16.msra.mxu0 0
        %1617 = vmatprep.subr.bf16.mxu0 0
        %1618 = vmatpush2.bf16.msra.mxu0 0
        %1619 = vmatprep.subr.bf16.mxu0 0
        %1620 = vmatpush2.bf16.msra.mxu0 0
        %1621 = vmatprep.mubr.bf16.mxu0 0
        %1622 = vmatmul.mubr.bf16.gmra.mxu0 %v1584
        %v1623 = vpop.f32.mrf.mxu0
        %v1624 = vadd.f32 0.0, %v1623
        %v1625 = vpop.f32.mrf.mxu0
        %v1626 = vpop.f32.mrf.mxu0
        %v1627 = vadd.f32 0.0, %v1626
        %v1628 = vpop.f32.mrf.mxu0
        %1629 = vdwg.mxu0
        %v1630 = vadd.f32 %v1576, %v1624
        %v1631 = vadd.f32 %v1577, %v1627
        %v1632 = vld [vmem:[%s1523 + $0x2] sm:$0xff]
        %v1633 = vld [vmem:[%s1523 + $0xa] sm:$0xff]
        %v1634 = vpack.c.bf16 %v1633, %v1632
        %s1635 = scalar_lea.vmem %s5, 10
        %v1636 = vld [vmem:[%s1635] sm:$0x3]
        %v1638 = vsel %vm302, %v1634, 0
        %v1641 = vsel %vm1375, %v1636, 0
        %1643 = vmatprep.subr.bf16.mxu0 0
        %1644 = vmatpush1.bf16.msra.mxu0 0
        %1645 = vmatprep.subr.bf16.mxu0 0
        %1646 = vmatpush1.bf16.msra.mxu0 0
        %1647 = vmatprep.subr.bf16.mxu0 0
        %1648 = vmatpush1.bf16.msra.mxu0 0
        %1649 = vmatprep.subr.bf16.mxu0 0
        %1650 = vmatpush1.bf16.msra.mxu0 0
        %1651 = vmatprep.subr.bf16.mxu0 0
        %1652 = vmatpush1.bf16.msra.mxu0 0
        %1653 = vmatprep.subr.bf16.mxu0 0
        %1654 = vmatpush1.bf16.msra.mxu0 0
        %1655 = vmatprep.subr.bf16.mxu0 0
        %1656 = vmatpush1.bf16.msra.mxu0 0
        %1657 = vmatprep.subr.bf16.mxu0 0
        %1658 = vmatpush1.bf16.msra.mxu0 %v1641
        %1659 = vmatprep.subr.bf16.mxu0 0
        %1660 = vmatpush2.bf16.msra.mxu0 0
        %1661 = vmatprep.subr.bf16.mxu0 0
        %1662 = vmatpush2.bf16.msra.mxu0 0
        %1663 = vmatprep.subr.bf16.mxu0 0
        %1664 = vmatpush2.bf16.msra.mxu0 0
        %1665 = vmatprep.subr.bf16.mxu0 0
        %1666 = vmatpush2.bf16.msra.mxu0 0
        %1667 = vmatprep.subr.bf16.mxu0 0
        %1668 = vmatpush2.bf16.msra.mxu0 0
        %1669 = vmatprep.subr.bf16.mxu0 0
        %1670 = vmatpush2.bf16.msra.mxu0 0
        %1671 = vmatprep.subr.bf16.mxu0 0
        %1672 = vmatpush2.bf16.msra.mxu0 0
        %1673 = vmatprep.subr.bf16.mxu0 0
        %1674 = vmatpush2.bf16.msra.mxu0 0
        %1675 = vmatprep.mubr.bf16.mxu0 0
        %1676 = vmatmul.mubr.bf16.gmra.mxu0 %v1638
        %v1677 = vpop.f32.mrf.mxu0
        %v1678 = vadd.f32 0.0, %v1677
        %v1679 = vpop.f32.mrf.mxu0
        %v1680 = vpop.f32.mrf.mxu0
        %v1681 = vadd.f32 0.0, %v1680
        %v1682 = vpop.f32.mrf.mxu0
        %1683 = vdwg.mxu0
        %v1684 = vadd.f32 %v1630, %v1678
        %v1685 = vadd.f32 %v1631, %v1681
        %s1686 = sadd.s32 %s1356, 2
        %s1687 = smul.u32 %s1686, 24
        %s1688 = scalar_lea.vmem [#allocation2], %s1687
        %v1689 = vld [vmem:[%s1688] sm:$0xff]
        %v1690 = vld [vmem:[%s1688 + $0x8] sm:$0xff]
        %v1691 = vpack.c.bf16 %v1690, %v1689
        %s1692 = scalar_lea.vmem %s5, 12
        %v1693 = vld [vmem:[%s1692] sm:$0x3]
        %v1695 = vsel %vm302, %v1691, 0
        %v1698 = vsel %vm1375, %v1693, 0
        %1700 = vmatprep.subr.bf16.mxu0 0
        %1701 = vmatpush1.bf16.msra.mxu0 0
        %1702 = vmatprep.subr.bf16.mxu0 0
        %1703 = vmatpush1.bf16.msra.mxu0 0
        %1704 = vmatprep.subr.bf16.mxu0 0
        %1705 = vmatpush1.bf16.msra.mxu0 0
        %1706 = vmatprep.subr.bf16.mxu0 0
        %1707 = vmatpush1.bf16.msra.mxu0 0
        %1708 = vmatprep.subr.bf16.mxu0 0
        %1709 = vmatpush1.bf16.msra.mxu0 0
        %1710 = vmatprep.subr.bf16.mxu0 0
        %1711 = vmatpush1.bf16.msra.mxu0 0
        %1712 = vmatprep.subr.bf16.mxu0 0
        %1713 = vmatpush1.bf16.msra.mxu0 0
        %1714 = vmatprep.subr.bf16.mxu0 0
        %1715 = vmatpush1.bf16.msra.mxu0 %v1698
        %1716 = vmatprep.subr.bf16.mxu0 0
        %1717 = vmatpush2.bf16.msra.mxu0 0
        %1718 = vmatprep.subr.bf16.mxu0 0
        %1719 = vmatpush2.bf16.msra.mxu0 0
        %1720 = vmatprep.subr.bf16.mxu0 0
        %1721 = vmatpush2.bf16.msra.mxu0 0
        %1722 = vmatprep.subr.bf16.mxu0 0
        %1723 = vmatpush2.bf16.msra.mxu0 0
        %1724 = vmatprep.subr.bf16.mxu0 0
        %1725 = vmatpush2.bf16.msra.mxu0 0
        %1726 = vmatprep.subr.bf16.mxu0 0
        %1727 = vmatpush2.bf16.msra.mxu0 0
        %1728 = vmatprep.subr.bf16.mxu0 0
        %1729 = vmatpush2.bf16.msra.mxu0 0
        %1730 = vmatprep.subr.bf16.mxu0 0
        %1731 = vmatpush2.bf16.msra.mxu0 0
        %1732 = vmatprep.mubr.bf16.mxu0 0
        %1733 = vmatmul.mubr.bf16.gmra.mxu0 %v1695
        %v1734 = vpop.f32.mrf.mxu0
        %v1735 = vadd.f32 0.0, %v1734
        %v1736 = vpop.f32.mrf.mxu0
        %v1737 = vpop.f32.mrf.mxu0
        %v1738 = vadd.f32 0.0, %v1737
        %v1739 = vpop.f32.mrf.mxu0
        %1740 = vdwg.mxu0
        %v1741 = vadd.f32 %v1684, %v1735
        %v1742 = vadd.f32 %v1685, %v1738
        %v1743 = vld [vmem:[%s1688 + $0x1] sm:$0xff]
        %v1744 = vld [vmem:[%s1688 + $0x9] sm:$0xff]
        %v1745 = vpack.c.bf16 %v1744, %v1743
        %s1746 = scalar_lea.vmem %s5, 14
        %v1747 = vld [vmem:[%s1746] sm:$0x3]
        %v1749 = vsel %vm302, %v1745, 0
        %v1752 = vsel %vm1375, %v1747, 0
        %1754 = vmatprep.subr.bf16.mxu0 0
        %1755 = vmatpush1.bf16.msra.mxu0 0
        %1756 = vmatprep.subr.bf16.mxu0 0
        %1757 = vmatpush1.bf16.msra.mxu0 0
        %1758 = vmatprep.subr.bf16.mxu0 0
        %1759 = vmatpush1.bf16.msra.mxu0 0
        %1760 = vmatprep.subr.bf16.mxu0 0
        %1761 = vmatpush1.bf16.msra.mxu0 0
        %1762 = vmatprep.subr.bf16.mxu0 0
        %1763 = vmatpush1.bf16.msra.mxu0 0
        %1764 = vmatprep.subr.bf16.mxu0 0
        %1765 = vmatpush1.bf16.msra.mxu0 0
        %1766 = vmatprep.subr.bf16.mxu0 0
        %1767 = vmatpush1.bf16.msra.mxu0 0
        %1768 = vmatprep.subr.bf16.mxu0 0
        %1769 = vmatpush1.bf16.msra.mxu0 %v1752
        %1770 = vmatprep.subr.bf16.mxu0 0
        %1771 = vmatpush2.bf16.msra.mxu0 0
        %1772 = vmatprep.subr.bf16.mxu0 0
        %1773 = vmatpush2.bf16.msra.mxu0 0
        %1774 = vmatprep.subr.bf16.mxu0 0
        %1775 = vmatpush2.bf16.msra.mxu0 0
        %1776 = vmatprep.subr.bf16.mxu0 0
        %1777 = vmatpush2.bf16.msra.mxu0 0
        %1778 = vmatprep.subr.bf16.mxu0 0
        %1779 = vmatpush2.bf16.msra.mxu0 0
        %1780 = vmatprep.subr.bf16.mxu0 0
        %1781 = vmatpush2.bf16.msra.mxu0 0
        %1782 = vmatprep.subr.bf16.mxu0 0
        %1783 = vmatpush2.bf16.msra.mxu0 0
        %1784 = vmatprep.subr.bf16.mxu0 0
        %1785 = vmatpush2.bf16.msra.mxu0 0
        %1786 = vmatprep.mubr.bf16.mxu0 0
        %1787 = vmatmul.mubr.bf16.gmra.mxu0 %v1749
        %v1788 = vpop.f32.mrf.mxu0
        %v1789 = vadd.f32 0.0, %v1788
        %v1790 = vpop.f32.mrf.mxu0
        %v1791 = vpop.f32.mrf.mxu0
        %v1792 = vadd.f32 0.0, %v1791
        %v1793 = vpop.f32.mrf.mxu0
        %1794 = vdwg.mxu0
        %v1795 = vadd.f32 %v1741, %v1789
        %v1796 = vadd.f32 %v1742, %v1792
        %v1797 = vld [vmem:[%s1688 + $0x2] sm:$0xff]
        %v1798 = vld [vmem:[%s1688 + $0xa] sm:$0xff]
        %v1799 = vpack.c.bf16 %v1798, %v1797
        %s1800 = scalar_lea.vmem %s5, 16
        %v1801 = vld [vmem:[%s1800] sm:$0x3]
        %v1803 = vsel %vm302, %v1799, 0
        %v1806 = vsel %vm1375, %v1801, 0
        %1808 = vmatprep.subr.bf16.mxu0 0
        %1809 = vmatpush1.bf16.msra.mxu0 0
        %1810 = vmatprep.subr.bf16.mxu0 0
        %1811 = vmatpush1.bf16.msra.mxu0 0
        %1812 = vmatprep.subr.bf16.mxu0 0
        %1813 = vmatpush1.bf16.msra.mxu0 0
        %1814 = vmatprep.subr.bf16.mxu0 0
        %1815 = vmatpush1.bf16.msra.mxu0 0
        %1816 = vmatprep.subr.bf16.mxu0 0
        %1817 = vmatpush1.bf16.msra.mxu0 0
        %1818 = vmatprep.subr.bf16.mxu0 0
        %1819 = vmatpush1.bf16.msra.mxu0 0
        %1820 = vmatprep.subr.bf16.mxu0 0
        %1821 = vmatpush1.bf16.msra.mxu0 0
        %1822 = vmatprep.subr.bf16.mxu0 0
        %1823 = vmatpush1.bf16.msra.mxu0 %v1806
        %1824 = vmatprep.subr.bf16.mxu0 0
        %1825 = vmatpush2.bf16.msra.mxu0 0
        %1826 = vmatprep.subr.bf16.mxu0 0
        %1827 = vmatpush2.bf16.msra.mxu0 0
        %1828 = vmatprep.subr.bf16.mxu0 0
        %1829 = vmatpush2.bf16.msra.mxu0 0
        %1830 = vmatprep.subr.bf16.mxu0 0
        %1831 = vmatpush2.bf16.msra.mxu0 0
        %1832 = vmatprep.subr.bf16.mxu0 0
        %1833 = vmatpush2.bf16.msra.mxu0 0
        %1834 = vmatprep.subr.bf16.mxu0 0
        %1835 = vmatpush2.bf16.msra.mxu0 0
        %1836 = vmatprep.subr.bf16.mxu0 0
        %1837 = vmatpush2.bf16.msra.mxu0 0
        %1838 = vmatprep.subr.bf16.mxu0 0
        %1839 = vmatpush2.bf16.msra.mxu0 0
        %1840 = vmatprep.mubr.bf16.mxu0 0
        %1841 = vmatmul.mubr.bf16.gmra.mxu0 %v1803
        %v1842 = vpop.f32.mrf.mxu0
        %v1843 = vadd.f32 0.0, %v1842
        %v1844 = vpop.f32.mrf.mxu0
        %v1845 = vpop.f32.mrf.mxu0
        %v1846 = vadd.f32 0.0, %v1845
        %v1847 = vpop.f32.mrf.mxu0
        %1848 = vdwg.mxu0
        %v1849 = vadd.f32 %v1795, %v1843
        %v1850 = vadd.f32 %v1796, %v1846
        %v1852 = vlaneseq
        %v1853 = vshrl.u32 %v1852, 7
        %v1854 = vsub.s32 0, %v1853
        %v1855 = vrot.slane %v301, %v1854
        %v1857 = vadd.f32 %v1849, %v1855
        %v1858 = vadd.f32 %v1850, %v1855
        %v1859 = vmax.f32 %v1857, 0.0
        %v1860 = vmax.f32 %v1858, 0.0
        %s1861 = smul.u32 %s1356, 16
        %s1862 = scalar_lea.vmem %s298, %s1861
        %1863 = vst.msk [vmem:[%s1862] sm:$0xff] %vm302, %v1859
        %1864 = vst.msk [vmem:[%s1862 + $0x8] sm:$0xff] %vm302, %v1860
      $region60: #{upblock2d_forward.3} parent=47 // loop_footer
        %s1360 = sadd.s32 1, %s1356
      $region61: #{upblock2d_forward.3} parent=47 // loop_footer_branch
        %1355 = sbr.rel target = $region57
      $region62: #{upblock2d_forward.3} parent=47 // loop_exit
        _
      %p1865 = scmp.lt.s32.totalorder %s18, 1
      %s1866 = scalar_select %p1865, %s18, 1
      %s1867 = smul.addr %s1866, 32
      %s1868 = smul.addr %s1867, 8
      %s1869 = scalar_lea.vmem %s7, %s1868
      // Predicated region
      $region63: #{upblock2d_forward.3} parent=47 // pred_check
        %p1870 = pneg %p193
      $region64: #{upblock2d_forward.3} parent=47 // pred_check_branch
        %1872 = sbr.rel (%p1870) target = $region66
      $region65: #{upblock2d_forward.3} parent=47 // pred_region
        _
      $region66: #{upblock2d_forward.3} parent=47 // pred_fallthru
        _
    $region48: #{upblock2d_forward.3} parent=5 // pred_fallthru
      _
    %p1873 = scmp.le.s32.totalorder 2, %s13
    // Predicated region
    $region67: #{upblock2d_forward.3} parent=5 // pred_check
      %p1874 = pneg %p1873
    $region68: #{upblock2d_forward.3} parent=5 // pred_check_branch
      %1876 = sbr.rel (%p1874) target = $region70
    $region69: #{upblock2d_forward.3} parent=5 // pred_region
      %s1877 = ssub.s32 %s13, 2
      // Predicated region
      $region71: #{upblock2d_forward.3} parent=69 // pred_check
        %p1878 = pneg %p199
      $region72: #{upblock2d_forward.3} parent=69 // pred_check_branch
        %1880 = sbr.rel (%p1878) target = $region74
      $region73: #{upblock2d_forward.3} parent=69 // pred_region
        %p1881 = scmp.lt.s32.totalorder %s19, 1
        %s1882 = scalar_select %p1881, %s19, 1
        %s1883 = smul.addr %s1882, 32
        %s1884 = smul.addr %s1883, 8
        %s1885 = scalar_lea.vmem %s7, %s1884
      $region74: #{upblock2d_forward.3} parent=69 // pred_fallthru
        _
    $region70: #{upblock2d_forward.3} parent=5 // pred_fallthru
      _
  $region6: #{upblock2d_forward.3} parent=0 // loop_footer
    %s17 = sadd.s32 1, %s13
  $region7: #{upblock2d_forward.3} parent=0 // loop_footer_branch
    %12 = sbr.rel target = $region3
  $region8: #{upblock2d_forward.3} parent=0 // loop_exit
    _

</llo_original>
